<compile_context>
chip_gen: v7x
topology: tpu7x:2x2x1
jax: 0.10.0
libtpu: 0.0.40
codegen_flags: <defaults>
</compile_context>

<pallas_src>
import functools

import jax
import jax.numpy as jnp
from jax.experimental import pallas as pl
from jax.experimental.pallas import tpu as pltpu

CPAD = 128                       # lane-dense channel width for all activation slabs
_TM = 512                        # max pixel-row tile (multiple of 8)
_EPS = 1e-5                      # nn.BatchNorm2d default eps
_VMEM_LIMIT = 32 * 1024 * 1024   # per-tile working sets here are < 2 MiB; safe on v5e/v6e/v7x
                                 # (on v7x keep this <= ~48 MiB if tiles are ever grown)


def _round_up(x, m):
    return (x + m - 1) // m * m


def _tile_rows(m):
    """Choose (m_pad, tm): tm multiple of 8, <= _TM, and >= 2 grid steps when m >= 16
    so both v7x TensorCores get work on the 'parallel' row axis."""
    m8 = _round_up(max(m, 8), 8)
    if m8 <= 8:
        return m8, m8
    tm = min(_TM, _round_up(pl.cdiv(m8, 2), 8))
    m_pad = _round_up(m8, tm)
    return m_pad, tm


# ----------------------------------------------------------------------------
# Pallas kernels
# ----------------------------------------------------------------------------

def _conv_bias_kernel(a_ref, w_ref, shift_ref, o_ref, *, relu):
    # im2col matmul on the MXU (bf16 in, f32 acc); BN scale is pre-folded into w_ref.
    acc = jnp.dot(a_ref[...], w_ref[...], preferred_element_type=jnp.float32)
    y = acc + shift_ref[...]
    if relu:
        y = jnp.maximum(y, 0.0)
    o_ref[...] = y.astype(o_ref.dtype)


def _conv_bias_add_relu_kernel(a_ref, w_ref, shift_ref, r_ref, o_ref):
    # second conv of a BasicBlockV1: conv + folded-BN + residual add + ReLU, fused.
    acc = jnp.dot(a_ref[...], w_ref[...], preferred_element_type=jnp.float32)
    y = acc + shift_ref[...] + r_ref[...].astype(jnp.float32)
    o_ref[...] = jnp.maximum(y, 0.0).astype(o_ref.dtype)


def _maxpool_kernel(x_ref, o_ref):
    # x_ref: (K*K, tm, CPAD) -> max over the pooling-window tap axis.
    o_ref[...] = jnp.max(x_ref[...], axis=0)


def _head_kernel(x_ref, w_ref, b_ref, o_ref):
    # fused global average pool + linear: x_ref (N, H*W, CPAD), w_ref (CPAD, CLS_PAD).
    inv_hw = 1.0 / x_ref.shape[1]
    feat = jnp.sum(x_ref[...].astype(jnp.float32), axis=1) * inv_hw
    o_ref[...] = (
        jnp.dot(feat.astype(jnp.bfloat16), w_ref[...], preferred_element_type=jnp.float32)
        + b_ref[...]
    )


# ----------------------------------------------------------------------------
# Fused conv dispatcher (tiled over pixel rows)
# ----------------------------------------------------------------------------

def _fused_conv_call(a, wm, shift, residual, relu, tm):
    m_pad, k_pad = a.shape
    grid = (m_pad // tm,)

    # NOTE: fixed N=CPAD=128 output width is native on v5e's 128x128 MXU; it only half-fills
    # the 256-wide MXU on v6e/v7x, which is irrelevant while cout <= 32 (byte-bound regime).
    in_specs = [
        pl.BlockSpec((tm, k_pad), lambda i: (i, 0)),
        pl.BlockSpec((k_pad, CPAD), lambda i: (0, 0)),
        pl.BlockSpec((1, CPAD), lambda i: (0, 0)),
    ]
    args = [a, wm, shift]
    bytes_accessed = a.size * 2 + wm.size * 2 + shift.size * 4 + m_pad * CPAD * 2
    if residual is None:
        kernel = functools.partial(_conv_bias_kernel, relu=relu)
    else:
        assert residual.shape == (m_pad, CPAD)
        kernel = _conv_bias_add_relu_kernel
        in_specs.append(pl.BlockSpec((tm, CPAD), lambda i: (i, 0)))
        args.append(residual)
        bytes_accessed += residual.size * 2

    return pl.pallas_call(
        kernel,
        out_shape=jax.ShapeDtypeStruct((m_pad, CPAD), jnp.bfloat16),
        grid=grid,
        in_specs=in_specs,
        out_specs=pl.BlockSpec((tm, CPAD), lambda i: (i, 0)),
        compiler_params=pltpu.CompilerParams(
            dimension_semantics=("parallel",),
            vmem_limit_bytes=_VMEM_LIMIT,
        ),
        cost_estimate=pl.CostEstimate(
            flops=2 * m_pad * k_pad * CPAD,
            transcendentals=0,
            bytes_accessed=int(bytes_accessed),
        ),
    )(*args)


# ----------------------------------------------------------------------------
# Activation slab helpers: activations live as lane-dense (m_pad, CPAD) slabs
# ----------------------------------------------------------------------------

def _slab(data, n, h, w, m):
    return dict(data=data, n=n, h=h, w=w, m=m)


def _to_nhwc(slab):
    return slab["data"][: slab["m"]].reshape(slab["n"], slab["h"], slab["w"], CPAD)


# ----------------------------------------------------------------------------
# Layer wrappers (im2col / padding are XLA glue; all math runs in Pallas)
# ----------------------------------------------------------------------------

def conv_bn(x_nhwc, prep, *, relu=True, residual=None):
    """Fused Conv2d(bias=False) + folded inference BN (+ReLU) (+residual add+ReLU).

    x_nhwc: (N, H, W, C_store) bf16, C_store >= prep['cin'] (extra lanes are ignored).
    prep: pre-packed weight/shift + static conv metadata from prepare_params().
    residual: (m_pad, CPAD) bf16 slab data, added before the final ReLU (or None).
    Returns an activation slab dict.
    """
    n, h, wd, _ = x_nhwc.shape
    cin, kh, kw = prep["cin"], prep["kh"], prep["kw"]
    stride, pad = prep["stride"], prep["pad"]
    k_true, k_pad = prep["k_true"], prep["k_pad"]
    ho = (h + 2 * pad - kh) // stride + 1
    wo = (wd + 2 * pad - kw) // stride + 1
    m = n * ho * wo
    m_pad, tm = _tile_rows(m)

    # im2col over the TRUE input channel count (XLA glue).
    xs = x_nhwc[..., :cin]
    xp = jnp.pad(xs, ((0, 0), (pad, pad), (pad, pad), (0, 0)))
    taps = [xp[:, i:i + stride * ho:stride, j:j + stride * wo:stride, :]
            for i in range(kh) for j in range(kw)]
    a = jnp.stack(taps, axis=3).reshape(m, k_true)
    a = jnp.pad(a, ((0, m_pad - m), (0, k_pad - k_true))).astype(jnp.bfloat16)

    out = _fused_conv_call(a, prep["wm"], prep["shift"], residual, relu, tm)
    return _slab(out, n, ho, wo, m)


def maxpool_3x3_s2_p1(slab):
    x = _to_nhwc(slab)
    n, h, w, c = x.shape
    k, stride, pad = 3, 2, 1
    xp = jnp.pad(x, ((0, 0), (pad, pad), (pad, pad), (0, 0)), constant_values=-jnp.inf)
    ho = (h + 2 * pad - k) // stride + 1
    wo = (w + 2 * pad - k) // stride + 1
    m = n * ho * wo
    m_pad, tm = _tile_rows(m)
    taps = [xp[:, i:i + stride * ho:stride, j:j + stride * wo:stride, :]
            for i in range(k) for j in range(k)]
    stacked = jnp.stack(taps, axis=0).reshape(k * k, m, c)
    stacked = jnp.pad(stacked, ((0, 0), (0, m_pad - m), (0, 0)))
    out = pl.pallas_call(
        _maxpool_kernel,
        out_shape=jax.ShapeDtypeStruct((m_pad, c), jnp.bfloat16),
        grid=(m_pad // tm,),
        in_specs=[pl.BlockSpec((k * k, tm, c), lambda i: (0, i, 0))],
        out_specs=pl.BlockSpec((tm, c), lambda i: (i, 0)),
        compiler_params=pltpu.CompilerParams(
            dimension_semantics=("parallel",),
            vmem_limit_bytes=_VMEM_LIMIT,
        ),
    )(stacked)
    return _slab(out, n, ho, wo, m)


def head(slab, fc):
    """Fused adaptive_avg_pool2d(1) + nn.Linear in a single kernel."""
    x = _to_nhwc(slab)
    n, h, w, c = x.shape                        # c == CPAD
    x3 = x.reshape(n, h * w, c)
    cls_pad = fc["w"].shape[1]
    out = pl.pallas_call(
        _head_kernel,
        out_shape=jax.ShapeDtypeStruct((n, cls_pad), jnp.float32),
        grid=(1,),
        in_specs=[pl.BlockSpec((n, h * w, c), lambda i: (0, 0, 0)),
                  pl.BlockSpec((CPAD, cls_pad), lambda i: (0, 0)),
                  pl.BlockSpec((1, cls_pad), lambda i: (0, 0))],
        out_specs=pl.BlockSpec((n, cls_pad), lambda i: (0, 0)),
        compiler_params=pltpu.CompilerParams(
            dimension_semantics=("arbitrary",),
            vmem_limit_bytes=_VMEM_LIMIT,
        ),
    )(x3, fc["w"], fc["b"])
    return out[:, :fc["classes"]]


# ----------------------------------------------------------------------------
# ResNetV1 forward (BasicBlockV1)
# ----------------------------------------------------------------------------

def basic_block(slab, p):
    x_nhwc = _to_nhwc(slab)
    y = conv_bn(x_nhwc, p["conv1"], relu=True)
    if p["downsample"] is not None:
        r = conv_bn(x_nhwc, p["downsample"], relu=False)
    else:
        r = slab                                 # identity path: same m_pad by construction
    # conv2 + bn2 + residual add + ReLU fused into one kernel; residual stays in slab layout.
    return conv_bn(_to_nhwc(y), p["conv2"], residual=r["data"])


def resnet_v1_forward(prepared, x_nchw):
    x = jnp.transpose(x_nchw, (0, 2, 3, 1)).astype(jnp.bfloat16)   # NCHW -> NHWC
    # stem (thumbnail=False): conv7x7/s2/p3 + BN + ReLU fused, then maxpool 3x3/s2/p1
    slab = conv_bn(x, prepared["stem"], relu=True)
    slab = maxpool_3x3_s2_p1(slab)
    for stage in prepared["stages"]:
        for blk in stage:
            slab = basic_block(slab, blk)
    return head(slab, prepared["fc"])


# ----------------------------------------------------------------------------
# One-time parameter packing (outside the per-forward trace)
# ----------------------------------------------------------------------------

def _prep_conv(w, bn, *, stride, pad):
    cout, cin, kh, kw = w.shape
    assert cout <= CPAD
    inv = bn["gamma"] / jnp.sqrt(bn["var"] + _EPS)
    shift = jnp.pad(bn["beta"] - bn["mean"] * inv,
                    (0, CPAD - cout)).reshape(1, CPAD).astype(jnp.float32)
    # (cout,cin,kh,kw) -> (kh,kw,cin,cout), BN scale folded in, then (k_pad, CPAD) bf16.
    wt = jnp.transpose(w, (2, 3, 1, 0)) * inv[None, None, None, :]
    k_true = kh * kw * cin
    k_pad = _round_up(k_true, 128)
    wm = jnp.pad(wt.reshape(k_true, cout),
                 ((0, k_pad - k_true), (0, CPAD - cout))).astype(jnp.bfloat16)
    return dict(wm=wm, shift=shift, cin=cin, kh=kh, kw=kw,
                stride=stride, pad=pad, k_true=k_true, k_pad=k_pad)


def prepare_params(params):
    prepared = dict(
        stem=_prep_conv(params["stem_conv"], params["stem_bn"], stride=2, pad=3),
        stages=[],
    )
    for stage in params["stages"]:
        pstage = []
        for blk in stage:
            pstage.append(dict(
                conv1=_prep_conv(blk["conv1"], blk["bn1"], stride=blk["stride"], pad=1),
                conv2=_prep_conv(blk["conv2"], blk["bn2"], stride=1, pad=1),
                downsample=(_prep_conv(blk["downsample"]["conv"], blk["downsample"]["bn"],
                                       stride=blk["stride"], pad=0)
                            if blk["downsample"] is not None else None),
            ))
        prepared["stages"].append(pstage)
    classes, c_last = params["fc_w"].shape
    cls_pad = _round_up(classes, 128)
    prepared["fc"] = dict(
        w=jnp.pad(jnp.transpose(params["fc_w"]),
                  ((0, CPAD - c_last), (0, cls_pad - classes))).astype(jnp.bfloat16),
        b=jnp.pad(params["fc_b"], (0, cls_pad - classes)).reshape(1, cls_pad).astype(jnp.float32),
        classes=classes,
    )
    return prepared


# ----------------------------------------------------------------------------
# Deterministic parameter initialization (shapes follow the PyTorch module)
# ----------------------------------------------------------------------------

def init_params(key, layers=(1, 1), channels=(3, 8, 16, 32), classes=10):
    assert len(layers) == len(channels) - 2
    keys = iter(jax.random.split(key, 64))

    def conv_w(cout, cin, k):
        fan_in = cin * k * k
        return jax.random.normal(next(keys), (cout, cin, k, k), jnp.float32) * (fan_in ** -0.5)

    def bn_p(c):
        return dict(
            gamma=jnp.ones((c,), jnp.float32),
            beta=jnp.zeros((c,), jnp.float32),
            mean=jnp.zeros((c,), jnp.float32),
            var=jnp.ones((c,), jnp.float32),
        )

    params = dict(
        stem_conv=conv_w(channels[1], channels[0], 7),
        stem_bn=bn_p(channels[1]),
        stages=[],
        fc_w=jax.random.normal(next(keys), (classes, channels[-1]), jnp.float32) * 0.05,
        fc_b=jax.random.normal(next(keys), (classes,), jnp.float32) * 0.01,
    )
    for i, num_layer in enumerate(layers):
        stride = 1 if i == 0 else 2
        cin, cout = channels[i + 1], channels[i + 2]
        stage = [dict(
            stride=stride,
            conv1=conv_w(cout, cin, 3), bn1=bn_p(cout),
            conv2=conv_w(cout, cout, 3), bn2=bn_p(cout),
            downsample=(dict(conv=conv_w(cout, cin, 1), bn=bn_p(cout)) if cout != cin else None),
        )]
        for _ in range(num_layer - 1):
            stage.append(dict(
                stride=1,
                conv1=conv_w(cout, cout, 3), bn1=bn_p(cout),
                conv2=conv_w(cout, cout, 3), bn2=bn_p(cout),
                downsample=None,
            ))
        params["stages"].append(stage)
    return params


if __name__ == "__main__":
    root = jax.random.PRNGKey(0)
    xkey, pkey = jax.random.split(root)
    # NCHW input, matching the PyTorch module's expected layout.
    x = jax.random.normal(xkey, (2, 3, 16, 16), jnp.float32)
    params = init_params(pkey, layers=(1, 1), channels=(3, 8, 16, 32), classes=10)

    prepared = prepare_params(params)            # one-time weight packing / BN folding
    fwd = jax.jit(lambda inp: resnet_v1_forward(prepared, inp))
    logits = fwd(x)                              # (2, 10)
    jax.block_until_ready(logits)
    assert logits.shape == (2, 10) and logits.dtype == jnp.float32
    print("KERNEL_OK")
</pallas_src>

<mosaic_0001>
module attributes {stable_mosaic.version = 11 : i64} {
  func.func @_conv_bias_kernel(%arg0: i32, %arg1: memref<64x256xbf16, #tpu.memory_space<vmem>>, %arg2: memref<256x128xbf16, #tpu.memory_space<vmem>>, %arg3: memref<1x128xf32, #tpu.memory_space<vmem>>, %arg4: memref<64x128xbf16, #tpu.memory_space<vmem>>) attributes {dimension_semantics = [#tpu.dimension_semantics<parallel>], iteration_bounds = array<i64: 2>, scalar_prefetch = 0 : i64, scratch_operands = 0 : i64, tpu.core_type = #tpu.core_type<tc>, window_params = [{transform_indices = @transform_0, window_bounds = array<i64: 64, 256>}, {pipeline_mode = #tpu.pipeline_mode<synchronous>, transform_indices = @transform_1, window_bounds = array<i64: 256, 128>}, {pipeline_mode = #tpu.pipeline_mode<synchronous>, transform_indices = @transform_2, window_bounds = array<i64: 1, 128>}, {transform_indices = @transform_3, window_bounds = array<i64: 64, 128>}]} {
    %c0 = arith.constant 0 : index
    %c0_0 = arith.constant 0 : index
    %0 = vector.load %arg1[%c0, %c0_0] : memref<64x256xbf16, #tpu.memory_space<vmem>>, vector<64x256xbf16>
    %c0_1 = arith.constant 0 : index
    %c0_2 = arith.constant 0 : index
    %1 = vector.load %arg2[%c0_1, %c0_2] : memref<256x128xbf16, #tpu.memory_space<vmem>>, vector<256x128xbf16>
    %cst = arith.constant dense<0.000000e+00> : vector<64x128xf32>
    %2 = tpu.matmul %0, %1, %cst {dimension_numbers = #tpu.dot_dimension_numbers<[1], [0], [0], [1], [0, 0, 1, 1], [], []>} : vector<64x256xbf16>, vector<256x128xbf16>, vector<64x128xf32> -> vector<64x128xf32>
    %c0_3 = arith.constant 0 : index
    %c0_4 = arith.constant 0 : index
    %3 = vector.load %arg3[%c0_3, %c0_4] : memref<1x128xf32, #tpu.memory_space<vmem>>, vector<1x128xf32>
    %4 = vector.broadcast %3 : vector<1x128xf32> to vector<64x128xf32>
    %5 = arith.addf %2, %4 : vector<64x128xf32>
    %cst_5 = arith.constant 0.000000e+00 : f32
    %6 = vector.broadcast %cst_5 : f32 to vector<64x128xf32>
    %7 = arith.maximumf %5, %6 : vector<64x128xf32>
    %8 = arith.truncf %7 : vector<64x128xf32> to vector<64x128xbf16>
    %c0_6 = arith.constant 0 : index
    %c0_7 = arith.constant 0 : index
    %9 = vector.load %arg4[%c0_6, %c0_7] : memref<64x128xbf16, #tpu.memory_space<vmem>>, vector<64x128xbf16>
    tpu.vector_store %arg4[%c0_6, %c0_7], %8 {strides = array<i32>} : memref<64x128xbf16, #tpu.memory_space<vmem>>, vector<64x128xbf16>,
    return
  }
  func.func @transform_0(%arg0: i32) -> (i32, i32) {
    %c0_i32 = arith.constant 0 : i32
    %c0_i32_0 = arith.constant 0 : i32
    return %arg0, %c0_i32 : i32, i32
  }
  func.func @transform_1(%arg0: i32) -> (i32, i32) {
    %c0_i32 = arith.constant 0 : i32
    %c0_i32_0 = arith.constant 0 : i32
    %c0_i32_1 = arith.constant 0 : i32
    return %c0_i32, %c0_i32_0 : i32, i32
  }
  func.func @transform_2(%arg0: i32) -> (i32, i32) {
    %c0_i32 = arith.constant 0 : i32
    %c0_i32_0 = arith.constant 0 : i32
    %c0_i32_1 = arith.constant 0 : i32
    return %c0_i32, %c0_i32_0 : i32, i32
  }
  func.func @transform_3(%arg0: i32) -> (i32, i32) {
    %c0_i32 = arith.constant 0 : i32
    %c0_i32_0 = arith.constant 0 : i32
    return %arg0, %c0_i32 : i32, i32
  }
}

module attributes {stable_mosaic.version = 11 : i64} {
  func.func @_maxpool_kernel(%arg0: i32, %arg1: memref<9x16x128xbf16, #tpu.memory_space<vmem>>, %arg2: memref<16x128xbf16, #tpu.memory_space<vmem>>) attributes {dimension_semantics = [#tpu.dimension_semantics<parallel>], iteration_bounds = array<i64: 2>, scalar_prefetch = 0 : i64, scratch_operands = 0 : i64, tpu.core_type = #tpu.core_type<tc>, window_params = [{transform_indices = @transform_0, window_bounds = array<i64: 9, 16, 128>}, {transform_indices = @transform_1, window_bounds = array<i64: 16, 128>}]} {
    %c0 = arith.constant 0 : index
    %c0_0 = arith.constant 0 : index
    %c0_1 = arith.constant 0 : index
    %0 = vector.load %arg1[%c0, %c0_0, %c0_1] : memref<9x16x128xbf16, #tpu.memory_space<vmem>>, vector<9x16x128xbf16>
    %cst = arith.constant dense<0xFF80> : vector<16x128xbf16>
    %1 = vector.multi_reduction <maximumf>, %0, %cst [0] : vector<9x16x128xbf16> to vector<16x128xbf16>
    %c0_2 = arith.constant 0 : index
    %c0_3 = arith.constant 0 : index
    %2 = vector.load %arg2[%c0_2, %c0_3] : memref<16x128xbf16, #tpu.memory_space<vmem>>, vector<16x128xbf16>
    tpu.vector_store %arg2[%c0_2, %c0_3], %1 {strides = array<i32>} : memref<16x128xbf16, #tpu.memory_space<vmem>>, vector<16x128xbf16>,
    return
  }
  func.func @transform_0(%arg0: i32) -> (i32, i32, i32) {
    %c0_i32 = arith.constant 0 : i32
    %c0_i32_0 = arith.constant 0 : i32
    %c0_i32_1 = arith.constant 0 : i32
    return %c0_i32, %arg0, %c0_i32_0 : i32, i32, i32
  }
  func.func @transform_1(%arg0: i32) -> (i32, i32) {
    %c0_i32 = arith.constant 0 : i32
    %c0_i32_0 = arith.constant 0 : i32
    return %arg0, %c0_i32 : i32, i32
  }
}

module attributes {stable_mosaic.version = 11 : i64} {
  func.func @_conv_bias_kernel(%arg0: i32, %arg1: memref<16x128xbf16, #tpu.memory_space<vmem>>, %arg2: memref<128x128xbf16, #tpu.memory_space<vmem>>, %arg3: memref<1x128xf32, #tpu.memory_space<vmem>>, %arg4: memref<16x128xbf16, #tpu.memory_space<vmem>>) attributes {dimension_semantics = [#tpu.dimension_semantics<parallel>], iteration_bounds = array<i64: 2>, scalar_prefetch = 0 : i64, scratch_operands = 0 : i64, tpu.core_type = #tpu.core_type<tc>, window_params = [{transform_indices = @transform_0, window_bounds = array<i64: 16, 128>}, {pipeline_mode = #tpu.pipeline_mode<synchronous>, transform_indices = @transform_1, window_bounds = array<i64: 128, 128>}, {pipeline_mode = #tpu.pipeline_mode<synchronous>, transform_indices = @transform_2, window_bounds = array<i64: 1, 128>}, {transform_indices = @transform_3, window_bounds = array<i64: 16, 128>}]} {
    %c0 = arith.constant 0 : index
    %c0_0 = arith.constant 0 : index
    %0 = vector.load %arg1[%c0, %c0_0] : memref<16x128xbf16, #tpu.memory_space<vmem>>, vector<16x128xbf16>
    %c0_1 = arith.constant 0 : index
    %c0_2 = arith.constant 0 : index
    %1 = vector.load %arg2[%c0_1, %c0_2] : memref<128x128xbf16, #tpu.memory_space<vmem>>, vector<128x128xbf16>
    %cst = arith.constant dense<0.000000e+00> : vector<16x128xf32>
    %2 = tpu.matmul %0, %1, %cst {dimension_numbers = #tpu.dot_dimension_numbers<[1], [0], [0], [1], [0, 0, 1, 1], [], []>} : vector<16x128xbf16>, vector<128x128xbf16>, vector<16x128xf32> -> vector<16x128xf32>
    %c0_3 = arith.constant 0 : index
    %c0_4 = arith.constant 0 : index
    %3 = vector.load %arg3[%c0_3, %c0_4] : memref<1x128xf32, #tpu.memory_space<vmem>>, vector<1x128xf32>
    %4 = vector.broadcast %3 : vector<1x128xf32> to vector<16x128xf32>
    %5 = arith.addf %2, %4 : vector<16x128xf32>
    %cst_5 = arith.constant 0.000000e+00 : f32
    %6 = vector.broadcast %cst_5 : f32 to vector<16x128xf32>
    %7 = arith.maximumf %5, %6 : vector<16x128xf32>
    %8 = arith.truncf %7 : vector<16x128xf32> to vector<16x128xbf16>
    %c0_6 = arith.constant 0 : index
    %c0_7 = arith.constant 0 : index
    %9 = vector.load %arg4[%c0_6, %c0_7] : memref<16x128xbf16, #tpu.memory_space<vmem>>, vector<16x128xbf16>
    tpu.vector_store %arg4[%c0_6, %c0_7], %8 {strides = array<i32>} : memref<16x128xbf16, #tpu.memory_space<vmem>>, vector<16x128xbf16>,
    return
  }
  func.func @transform_0(%arg0: i32) -> (i32, i32) {
    %c0_i32 = arith.constant 0 : i32
    %c0_i32_0 = arith.constant 0 : i32
    return %arg0, %c0_i32 : i32, i32
  }
  func.func @transform_1(%arg0: i32) -> (i32, i32) {
    %c0_i32 = arith.constant 0 : i32
    %c0_i32_0 = arith.constant 0 : i32
    %c0_i32_1 = arith.constant 0 : i32
    return %c0_i32, %c0_i32_0 : i32, i32
  }
  func.func @transform_2(%arg0: i32) -> (i32, i32) {
    %c0_i32 = arith.constant 0 : i32
    %c0_i32_0 = arith.constant 0 : i32
    %c0_i32_1 = arith.constant 0 : i32
    return %c0_i32, %c0_i32_0 : i32, i32
  }
  func.func @transform_3(%arg0: i32) -> (i32, i32) {
    %c0_i32 = arith.constant 0 : i32
    %c0_i32_0 = arith.constant 0 : i32
    return %arg0, %c0_i32 : i32, i32
  }
}

module attributes {stable_mosaic.version = 11 : i64} {
  func.func @_conv_bias_kernel(%arg0: i32, %arg1: memref<16x128xbf16, #tpu.memory_space<vmem>>, %arg2: memref<128x128xbf16, #tpu.memory_space<vmem>>, %arg3: memref<1x128xf32, #tpu.memory_space<vmem>>, %arg4: memref<16x128xbf16, #tpu.memory_space<vmem>>) attributes {dimension_semantics = [#tpu.dimension_semantics<parallel>], iteration_bounds = array<i64: 2>, scalar_prefetch = 0 : i64, scratch_operands = 0 : i64, tpu.core_type = #tpu.core_type<tc>, window_params = [{transform_indices = @transform_0, window_bounds = array<i64: 16, 128>}, {pipeline_mode = #tpu.pipeline_mode<synchronous>, transform_indices = @transform_1, window_bounds = array<i64: 128, 128>}, {pipeline_mode = #tpu.pipeline_mode<synchronous>, transform_indices = @transform_2, window_bounds = array<i64: 1, 128>}, {transform_indices = @transform_3, window_bounds = array<i64: 16, 128>}]} {
    %c0 = arith.constant 0 : index
    %c0_0 = arith.constant 0 : index
    %0 = vector.load %arg1[%c0, %c0_0] : memref<16x128xbf16, #tpu.memory_space<vmem>>, vector<16x128xbf16>
    %c0_1 = arith.constant 0 : index
    %c0_2 = arith.constant 0 : index
    %1 = vector.load %arg2[%c0_1, %c0_2] : memref<128x128xbf16, #tpu.memory_space<vmem>>, vector<128x128xbf16>
    %cst = arith.constant dense<0.000000e+00> : vector<16x128xf32>
    %2 = tpu.matmul %0, %1, %cst {dimension_numbers = #tpu.dot_dimension_numbers<[1], [0], [0], [1], [0, 0, 1, 1], [], []>} : vector<16x128xbf16>, vector<128x128xbf16>, vector<16x128xf32> -> vector<16x128xf32>
    %c0_3 = arith.constant 0 : index
    %c0_4 = arith.constant 0 : index
    %3 = vector.load %arg3[%c0_3, %c0_4] : memref<1x128xf32, #tpu.memory_space<vmem>>, vector<1x128xf32>
    %4 = vector.broadcast %3 : vector<1x128xf32> to vector<16x128xf32>
    %5 = arith.addf %2, %4 : vector<16x128xf32>
    %6 = arith.truncf %5 : vector<16x128xf32> to vector<16x128xbf16>
    %c0_5 = arith.constant 0 : index
    %c0_6 = arith.constant 0 : index
    %7 = vector.load %arg4[%c0_5, %c0_6] : memref<16x128xbf16, #tpu.memory_space<vmem>>, vector<16x128xbf16>
    tpu.vector_store %arg4[%c0_5, %c0_6], %6 {strides = array<i32>} : memref<16x128xbf16, #tpu.memory_space<vmem>>, vector<16x128xbf16>,
    return
  }
  func.func @transform_0(%arg0: i32) -> (i32, i32) {
    %c0_i32 = arith.constant 0 : i32
    %c0_i32_0 = arith.constant 0 : i32
    return %arg0, %c0_i32 : i32, i32
  }
  func.func @transform_1(%arg0: i32) -> (i32, i32) {
    %c0_i32 = arith.constant 0 : i32
    %c0_i32_0 = arith.constant 0 : i32
    %c0_i32_1 = arith.constant 0 : i32
    return %c0_i32, %c0_i32_0 : i32, i32
  }
  func.func @transform_2(%arg0: i32) -> (i32, i32) {
    %c0_i32 = arith.constant 0 : i32
    %c0_i32_0 = arith.constant 0 : i32
    %c0_i32_1 = arith.constant 0 : i32
    return %c0_i32, %c0_i32_0 : i32, i32
  }
  func.func @transform_3(%arg0: i32) -> (i32, i32) {
    %c0_i32 = arith.constant 0 : i32
    %c0_i32_0 = arith.constant 0 : i32
    return %arg0, %c0_i32 : i32, i32
  }
}

module attributes {stable_mosaic.version = 11 : i64} {
  func.func @_conv_bias_add_relu_kernel(%arg0: i32, %arg1: memref<16x256xbf16, #tpu.memory_space<vmem>>, %arg2: memref<256x128xbf16, #tpu.memory_space<vmem>>, %arg3: memref<1x128xf32, #tpu.memory_space<vmem>>, %arg4: memref<16x128xbf16, #tpu.memory_space<vmem>>, %arg5: memref<16x128xbf16, #tpu.memory_space<vmem>>) attributes {dimension_semantics = [#tpu.dimension_semantics<parallel>], iteration_bounds = array<i64: 2>, scalar_prefetch = 0 : i64, scratch_operands = 0 : i64, tpu.core_type = #tpu.core_type<tc>, window_params = [{transform_indices = @transform_0, window_bounds = array<i64: 16, 256>}, {pipeline_mode = #tpu.pipeline_mode<synchronous>, transform_indices = @transform_1, window_bounds = array<i64: 256, 128>}, {pipeline_mode = #tpu.pipeline_mode<synchronous>, transform_indices = @transform_2, window_bounds = array<i64: 1, 128>}, {transform_indices = @transform_3, window_bounds = array<i64: 16, 128>}, {transform_indices = @transform_4, window_bounds = array<i64: 16, 128>}]} {
    %c0 = arith.constant 0 : index
    %c0_0 = arith.constant 0 : index
    %0 = vector.load %arg1[%c0, %c0_0] : memref<16x256xbf16, #tpu.memory_space<vmem>>, vector<16x256xbf16>
    %c0_1 = arith.constant 0 : index
    %c0_2 = arith.constant 0 : index
    %1 = vector.load %arg2[%c0_1, %c0_2] : memref<256x128xbf16, #tpu.memory_space<vmem>>, vector<256x128xbf16>
    %cst = arith.constant dense<0.000000e+00> : vector<16x128xf32>
    %2 = tpu.matmul %0, %1, %cst {dimension_numbers = #tpu.dot_dimension_numbers<[1], [0], [0], [1], [0, 0, 1, 1], [], []>} : vector<16x256xbf16>, vector<256x128xbf16>, vector<16x128xf32> -> vector<16x128xf32>
    %c0_3 = arith.constant 0 : index
    %c0_4 = arith.constant 0 : index
    %3 = vector.load %arg3[%c0_3, %c0_4] : memref<1x128xf32, #tpu.memory_space<vmem>>, vector<1x128xf32>
    %4 = vector.broadcast %3 : vector<1x128xf32> to vector<16x128xf32>
    %5 = arith.addf %2, %4 : vector<16x128xf32>
    %c0_5 = arith.constant 0 : index
    %c0_6 = arith.constant 0 : index
    %6 = vector.load %arg4[%c0_5, %c0_6] : memref<16x128xbf16, #tpu.memory_space<vmem>>, vector<16x128xbf16>
    %7 = arith.extf %6 : vector<16x128xbf16> to vector<16x128xf32>
    %8 = arith.addf %5, %7 : vector<16x128xf32>
    %cst_7 = arith.constant 0.000000e+00 : f32
    %9 = vector.broadcast %cst_7 : f32 to vector<16x128xf32>
    %10 = arith.maximumf %8, %9 : vector<16x128xf32>
    %11 = arith.truncf %10 : vector<16x128xf32> to vector<16x128xbf16>
    %c0_8 = arith.constant 0 : index
    %c0_9 = arith.constant 0 : index
    %12 = vector.load %arg5[%c0_8, %c0_9] : memref<16x128xbf16, #tpu.memory_space<vmem>>, vector<16x128xbf16>
    tpu.vector_store %arg5[%c0_8, %c0_9], %11 {strides = array<i32>} : memref<16x128xbf16, #tpu.memory_space<vmem>>, vector<16x128xbf16>,
    return
  }
  func.func @transform_0(%arg0: i32) -> (i32, i32) {
    %c0_i32 = arith.constant 0 : i32
    %c0_i32_0 = arith.constant 0 : i32
    return %arg0, %c0_i32 : i32, i32
  }
  func.func @transform_1(%arg0: i32) -> (i32, i32) {
    %c0_i32 = arith.constant 0 : i32
    %c0_i32_0 = arith.constant 0 : i32
    %c0_i32_1 = arith.constant 0 : i32
    return %c0_i32, %c0_i32_0 : i32, i32
  }
  func.func @transform_2(%arg0: i32) -> (i32, i32) {
    %c0_i32 = arith.constant 0 : i32
    %c0_i32_0 = arith.constant 0 : i32
    %c0_i32_1 = arith.constant 0 : i32
    return %c0_i32, %c0_i32_0 : i32, i32
  }
  func.func @transform_3(%arg0: i32) -> (i32, i32) {
    %c0_i32 = arith.constant 0 : i32
    %c0_i32_0 = arith.constant 0 : i32
    return %arg0, %c0_i32 : i32, i32
  }
  func.func @transform_4(%arg0: i32) -> (i32, i32) {
    %c0_i32 = arith.constant 0 : i32
    %c0_i32_0 = arith.constant 0 : i32
    return %arg0, %c0_i32 : i32, i32
  }
}

module attributes {stable_mosaic.version = 11 : i64} {
  func.func @_conv_bias_kernel(%arg0: i32, %arg1: memref<8x256xbf16, #tpu.memory_space<vmem>>, %arg2: memref<256x128xbf16, #tpu.memory_space<vmem>>, %arg3: memref<1x128xf32, #tpu.memory_space<vmem>>, %arg4: memref<8x128xbf16, #tpu.memory_space<vmem>>) attributes {dimension_semantics = [#tpu.dimension_semantics<parallel>], iteration_bounds = array<i64: 1>, scalar_prefetch = 0 : i64, scratch_operands = 0 : i64, tpu.core_type = #tpu.core_type<tc>, window_params = [{transform_indices = @transform_0, window_bounds = array<i64: 8, 256>}, {pipeline_mode = #tpu.pipeline_mode<synchronous>, transform_indices = @transform_1, window_bounds = array<i64: 256, 128>}, {pipeline_mode = #tpu.pipeline_mode<synchronous>, transform_indices = @transform_2, window_bounds = array<i64: 1, 128>}, {transform_indices = @transform_3, window_bounds = array<i64: 8, 128>}]} {
    %c0 = arith.constant 0 : index
    %c0_0 = arith.constant 0 : index
    %0 = vector.load %arg1[%c0, %c0_0] : memref<8x256xbf16, #tpu.memory_space<vmem>>, vector<8x256xbf16>
    %c0_1 = arith.constant 0 : index
    %c0_2 = arith.constant 0 : index
    %1 = vector.load %arg2[%c0_1, %c0_2] : memref<256x128xbf16, #tpu.memory_space<vmem>>, vector<256x128xbf16>
    %cst = arith.constant dense<0.000000e+00> : vector<8x128xf32>
    %2 = tpu.matmul %0, %1, %cst {dimension_numbers = #tpu.dot_dimension_numbers<[1], [0], [0], [1], [0, 0, 1, 1], [], []>} : vector<8x256xbf16>, vector<256x128xbf16>, vector<8x128xf32> -> vector<8x128xf32>
    %c0_3 = arith.constant 0 : index
    %c0_4 = arith.constant 0 : index
    %3 = vector.load %arg3[%c0_3, %c0_4] : memref<1x128xf32, #tpu.memory_space<vmem>>, vector<1x128xf32>
    %4 = vector.broadcast %3 : vector<1x128xf32> to vector<8x128xf32>
    %5 = arith.addf %2, %4 : vector<8x128xf32>
    %cst_5 = arith.constant 0.000000e+00 : f32
    %6 = vector.broadcast %cst_5 : f32 to vector<8x128xf32>
    %7 = arith.maximumf %5, %6 : vector<8x128xf32>
    %8 = arith.truncf %7 : vector<8x128xf32> to vector<8x128xbf16>
    %c0_6 = arith.constant 0 : index
    %c0_7 = arith.constant 0 : index
    %9 = vector.load %arg4[%c0_6, %c0_7] : memref<8x128xbf16, #tpu.memory_space<vmem>>, vector<8x128xbf16>
    tpu.vector_store %arg4[%c0_6, %c0_7], %8 {strides = array<i32>} : memref<8x128xbf16, #tpu.memory_space<vmem>>, vector<8x128xbf16>,
    return
  }
  func.func @transform_0(%arg0: i32) -> (i32, i32) {
    %c0_i32 = arith.constant 0 : i32
    %c0_i32_0 = arith.constant 0 : i32
    return %arg0, %c0_i32 : i32, i32
  }
  func.func @transform_1(%arg0: i32) -> (i32, i32) {
    %c0_i32 = arith.constant 0 : i32
    %c0_i32_0 = arith.constant 0 : i32
    %c0_i32_1 = arith.constant 0 : i32
    return %c0_i32, %c0_i32_0 : i32, i32
  }
  func.func @transform_2(%arg0: i32) -> (i32, i32) {
    %c0_i32 = arith.constant 0 : i32
    %c0_i32_0 = arith.constant 0 : i32
    %c0_i32_1 = arith.constant 0 : i32
    return %c0_i32, %c0_i32_0 : i32, i32
  }
  func.func @transform_3(%arg0: i32) -> (i32, i32) {
    %c0_i32 = arith.constant 0 : i32
    %c0_i32_0 = arith.constant 0 : i32
    return %arg0, %c0_i32 : i32, i32
  }
}

module attributes {stable_mosaic.version = 11 : i64} {
  func.func @_conv_bias_add_relu_kernel(%arg0: i32, %arg1: memref<8x384xbf16, #tpu.memory_space<vmem>>, %arg2: memref<384x128xbf16, #tpu.memory_space<vmem>>, %arg3: memref<1x128xf32, #tpu.memory_space<vmem>>, %arg4: memref<8x128xbf16, #tpu.memory_space<vmem>>, %arg5: memref<8x128xbf16, #tpu.memory_space<vmem>>) attributes {dimension_semantics = [#tpu.dimension_semantics<parallel>], iteration_bounds = array<i64: 1>, scalar_prefetch = 0 : i64, scratch_operands = 0 : i64, tpu.core_type = #tpu.core_type<tc>, window_params = [{transform_indices = @transform_0, window_bounds = array<i64: 8, 384>}, {pipeline_mode = #tpu.pipeline_mode<synchronous>, transform_indices = @transform_1, window_bounds = array<i64: 384, 128>}, {pipeline_mode = #tpu.pipeline_mode<synchronous>, transform_indices = @transform_2, window_bounds = array<i64: 1, 128>}, {transform_indices = @transform_3, window_bounds = array<i64: 8, 128>}, {transform_indices = @transform_4, window_bounds = array<i64: 8, 128>}]} {
    %c0 = arith.constant 0 : index
    %c0_0 = arith.constant 0 : index
    %0 = vector.load %arg1[%c0, %c0_0] : memref<8x384xbf16, #tpu.memory_space<vmem>>, vector<8x384xbf16>
    %c0_1 = arith.constant 0 : index
    %c0_2 = arith.constant 0 : index
    %1 = vector.load %arg2[%c0_1, %c0_2] : memref<384x128xbf16, #tpu.memory_space<vmem>>, vector<384x128xbf16>
    %cst = arith.constant dense<0.000000e+00> : vector<8x128xf32>
    %2 = tpu.matmul %0, %1, %cst {dimension_numbers = #tpu.dot_dimension_numbers<[1], [0], [0], [1], [0, 0, 1, 1], [], []>} : vector<8x384xbf16>, vector<384x128xbf16>, vector<8x128xf32> -> vector<8x128xf32>
    %c0_3 = arith.constant 0 : index
    %c0_4 = arith.constant 0 : index
    %3 = vector.load %arg3[%c0_3, %c0_4] : memref<1x128xf32, #tpu.memory_space<vmem>>, vector<1x128xf32>
    %4 = vector.broadcast %3 : vector<1x128xf32> to vector<8x128xf32>
    %5 = arith.addf %2, %4 : vector<8x128xf32>
    %c0_5 = arith.constant 0 : index
    %c0_6 = arith.constant 0 : index
    %6 = vector.load %arg4[%c0_5, %c0_6] : memref<8x128xbf16, #tpu.memory_space<vmem>>, vector<8x128xbf16>
    %7 = arith.extf %6 : vector<8x128xbf16> to vector<8x128xf32>
    %8 = arith.addf %5, %7 : vector<8x128xf32>
    %cst_7 = arith.constant 0.000000e+00 : f32
    %9 = vector.broadcast %cst_7 : f32 to vector<8x128xf32>
    %10 = arith.maximumf %8, %9 : vector<8x128xf32>
    %11 = arith.truncf %10 : vector<8x128xf32> to vector<8x128xbf16>
    %c0_8 = arith.constant 0 : index
    %c0_9 = arith.constant 0 : index
    %12 = vector.load %arg5[%c0_8, %c0_9] : memref<8x128xbf16, #tpu.memory_space<vmem>>, vector<8x128xbf16>
    tpu.vector_store %arg5[%c0_8, %c0_9], %11 {strides = array<i32>} : memref<8x128xbf16, #tpu.memory_space<vmem>>, vector<8x128xbf16>,
    return
  }
  func.func @transform_0(%arg0: i32) -> (i32, i32) {
    %c0_i32 = arith.constant 0 : i32
    %c0_i32_0 = arith.constant 0 : i32
    return %arg0, %c0_i32 : i32, i32
  }
  func.func @transform_1(%arg0: i32) -> (i32, i32) {
    %c0_i32 = arith.constant 0 : i32
    %c0_i32_0 = arith.constant 0 : i32
    %c0_i32_1 = arith.constant 0 : i32
    return %c0_i32, %c0_i32_0 : i32, i32
  }
  func.func @transform_2(%arg0: i32) -> (i32, i32) {
    %c0_i32 = arith.constant 0 : i32
    %c0_i32_0 = arith.constant 0 : i32
    %c0_i32_1 = arith.constant 0 : i32
    return %c0_i32, %c0_i32_0 : i32, i32
  }
  func.func @transform_3(%arg0: i32) -> (i32, i32) {
    %c0_i32 = arith.constant 0 : i32
    %c0_i32_0 = arith.constant 0 : i32
    return %arg0, %c0_i32 : i32, i32
  }
  func.func @transform_4(%arg0: i32) -> (i32, i32) {
    %c0_i32 = arith.constant 0 : i32
    %c0_i32_0 = arith.constant 0 : i32
    return %arg0, %c0_i32 : i32, i32
  }
}

module attributes {stable_mosaic.version = 11 : i64} {
  func.func @_head_kernel(%arg0: i32, %arg1: memref<2x4x128xbf16, #tpu.memory_space<vmem>>, %arg2: memref<128x128xbf16, #tpu.memory_space<vmem>>, %arg3: memref<1x128xf32, #tpu.memory_space<vmem>>, %arg4: memref<2x128xf32, #tpu.memory_space<vmem>>) attributes {dimension_semantics = [#tpu.dimension_semantics<arbitrary>], iteration_bounds = array<i64: 1>, scalar_prefetch = 0 : i64, scratch_operands = 0 : i64, tpu.core_type = #tpu.core_type<tc>, window_params = [{pipeline_mode = #tpu.pipeline_mode<synchronous>, transform_indices = @transform_0, window_bounds = array<i64: 2, 4, 128>}, {pipeline_mode = #tpu.pipeline_mode<synchronous>, transform_indices = @transform_1, window_bounds = array<i64: 128, 128>}, {pipeline_mode = #tpu.pipeline_mode<synchronous>, transform_indices = @transform_2, window_bounds = array<i64: 1, 128>}, {pipeline_mode = #tpu.pipeline_mode<synchronous>, transform_indices = @transform_3, window_bounds = array<i64: 2, 128>}]} {
    %c0 = arith.constant 0 : index
    %c0_0 = arith.constant 0 : index
    %c0_1 = arith.constant 0 : index
    %0 = vector.load %arg1[%c0, %c0_0, %c0_1] : memref<2x4x128xbf16, #tpu.memory_space<vmem>>, vector<2x4x128xbf16>
    %1 = arith.extf %0 : vector<2x4x128xbf16> to vector<2x4x128xf32>
    %cst = arith.constant dense<0.000000e+00> : vector<2x128xf32>
    %2 = vector.multi_reduction <add>, %1, %cst [1] : vector<2x4x128xf32> to vector<2x128xf32>
    %cst_2 = arith.constant 2.500000e-01 : f32
    %3 = vector.broadcast %cst_2 : f32 to vector<2x128xf32>
    %4 = arith.mulf %2, %3 : vector<2x128xf32>
    %5 = arith.truncf %4 : vector<2x128xf32> to vector<2x128xbf16>
    %c0_3 = arith.constant 0 : index
    %c0_4 = arith.constant 0 : index
    %6 = vector.load %arg2[%c0_3, %c0_4] : memref<128x128xbf16, #tpu.memory_space<vmem>>, vector<128x128xbf16>
    %cst_5 = arith.constant dense<0.000000e+00> : vector<2x128xf32>
    %7 = tpu.matmul %5, %6, %cst_5 {dimension_numbers = #tpu.dot_dimension_numbers<[1], [0], [0], [1], [0, 0, 1, 1], [], []>} : vector<2x128xbf16>, vector<128x128xbf16>, vector<2x128xf32> -> vector<2x128xf32>
    %c0_6 = arith.constant 0 : index
    %c0_7 = arith.constant 0 : index
    %8 = vector.load %arg3[%c0_6, %c0_7] : memref<1x128xf32, #tpu.memory_space<vmem>>, vector<1x128xf32>
    %9 = vector.broadcast %8 : vector<1x128xf32> to vector<2x128xf32>
    %10 = arith.addf %7, %9 : vector<2x128xf32>
    %c0_8 = arith.constant 0 : index
    %c0_9 = arith.constant 0 : index
    %11 = vector.load %arg4[%c0_8, %c0_9] : memref<2x128xf32, #tpu.memory_space<vmem>>, vector<2x128xf32>
    tpu.vector_store %arg4[%c0_8, %c0_9], %10 {strides = array<i32>} : memref<2x128xf32, #tpu.memory_space<vmem>>, vector<2x128xf32>,
    return
  }
  func.func @transform_0(%arg0: i32) -> (i32, i32, i32) {
    %c0_i32 = arith.constant 0 : i32
    %c0_i32_0 = arith.constant 0 : i32
    %c0_i32_1 = arith.constant 0 : i32
    %c0_i32_2 = arith.constant 0 : i32
    return %c0_i32, %c0_i32_0, %c0_i32_1 : i32, i32, i32
  }
  func.func @transform_1(%arg0: i32) -> (i32, i32) {
    %c0_i32 = arith.constant 0 : i32
    %c0_i32_0 = arith.constant 0 : i32
    %c0_i32_1 = arith.constant 0 : i32
    return %c0_i32, %c0_i32_0 : i32, i32
  }
  func.func @transform_2(%arg0: i32) -> (i32, i32) {
    %c0_i32 = arith.constant 0 : i32
    %c0_i32_0 = arith.constant 0 : i32
    %c0_i32_1 = arith.constant 0 : i32
    return %c0_i32, %c0_i32_0 : i32, i32
  }
  func.func @transform_3(%arg0: i32) -> (i32, i32) {
    %c0_i32 = arith.constant 0 : i32
    %c0_i32_0 = arith.constant 0 : i32
    %c0_i32_1 = arith.constant 0 : i32
    return %c0_i32, %c0_i32_0 : i32, i32
  }
}

module attributes {stable_mosaic.version = 11 : i64} {
  func.func @_conv_bias_kernel(%arg0: i32, %arg1: memref<8x128xbf16, #tpu.memory_space<vmem>>, %arg2: memref<128x128xbf16, #tpu.memory_space<vmem>>, %arg3: memref<1x128xf32, #tpu.memory_space<vmem>>, %arg4: memref<8x128xbf16, #tpu.memory_space<vmem>>) attributes {dimension_semantics = [#tpu.dimension_semantics<parallel>], iteration_bounds = array<i64: 1>, scalar_prefetch = 0 : i64, scratch_operands = 0 : i64, tpu.core_type = #tpu.core_type<tc>, window_params = [{transform_indices = @transform_0, window_bounds = array<i64: 8, 128>}, {pipeline_mode = #tpu.pipeline_mode<synchronous>, transform_indices = @transform_1, window_bounds = array<i64: 128, 128>}, {pipeline_mode = #tpu.pipeline_mode<synchronous>, transform_indices = @transform_2, window_bounds = array<i64: 1, 128>}, {transform_indices = @transform_3, window_bounds = array<i64: 8, 128>}]} {
    %c0 = arith.constant 0 : index
    %c0_0 = arith.constant 0 : index
    %0 = vector.load %arg1[%c0, %c0_0] : memref<8x128xbf16, #tpu.memory_space<vmem>>, vector<8x128xbf16>
    %c0_1 = arith.constant 0 : index
    %c0_2 = arith.constant 0 : index
    %1 = vector.load %arg2[%c0_1, %c0_2] : memref<128x128xbf16, #tpu.memory_space<vmem>>, vector<128x128xbf16>
    %cst = arith.constant dense<0.000000e+00> : vector<8x128xf32>
    %2 = tpu.matmul %0, %1, %cst {dimension_numbers = #tpu.dot_dimension_numbers<[1], [0], [0], [1], [0, 0, 1, 1], [], []>} : vector<8x128xbf16>, vector<128x128xbf16>, vector<8x128xf32> -> vector<8x128xf32>
    %c0_3 = arith.constant 0 : index
    %c0_4 = arith.constant 0 : index
    %3 = vector.load %arg3[%c0_3, %c0_4] : memref<1x128xf32, #tpu.memory_space<vmem>>, vector<1x128xf32>
    %4 = vector.broadcast %3 : vector<1x128xf32> to vector<8x128xf32>
    %5 = arith.addf %2, %4 : vector<8x128xf32>
    %6 = arith.truncf %5 : vector<8x128xf32> to vector<8x128xbf16>
    %c0_5 = arith.constant 0 : index
    %c0_6 = arith.constant 0 : index
    %7 = vector.load %arg4[%c0_5, %c0_6] : memref<8x128xbf16, #tpu.memory_space<vmem>>, vector<8x128xbf16>
    tpu.vector_store %arg4[%c0_5, %c0_6], %6 {strides = array<i32>} : memref<8x128xbf16, #tpu.memory_space<vmem>>, vector<8x128xbf16>,
    return
  }
  func.func @transform_0(%arg0: i32) -> (i32, i32) {
    %c0_i32 = arith.constant 0 : i32
    %c0_i32_0 = arith.constant 0 : i32
    return %arg0, %c0_i32 : i32, i32
  }
  func.func @transform_1(%arg0: i32) -> (i32, i32) {
    %c0_i32 = arith.constant 0 : i32
    %c0_i32_0 = arith.constant 0 : i32
    %c0_i32_1 = arith.constant 0 : i32
    return %c0_i32, %c0_i32_0 : i32, i32
  }
  func.func @transform_2(%arg0: i32) -> (i32, i32) {
    %c0_i32 = arith.constant 0 : i32
    %c0_i32_0 = arith.constant 0 : i32
    %c0_i32_1 = arith.constant 0 : i32
    return %c0_i32, %c0_i32_0 : i32, i32
  }
  func.func @transform_3(%arg0: i32) -> (i32, i32) {
    %c0_i32 = arith.constant 0 : i32
    %c0_i32_0 = arith.constant 0 : i32
    return %arg0, %c0_i32 : i32, i32
  }
}

</mosaic_0001>

<llo_original>
// kernel: _lambda_.10
$region0: #{_lambda_.10}
  #allocation0 [shape = 'u32[]', space=smem, size = 0x4, offset = 0x4, fixed_abs, tag = 'smem constant byte address 0x4 - core index']
  #allocation1 [shape = 'u32[144,128]{1,0:T(1,128)}', space=vmem, size = 0x12000, scoped, tag = 'internal scratch']
  %s0 = inlined_call_operand.vmem [shape: bf16[9,32,128], index: 0, kind: input, shape index: {}]
  %s1 = inlined_call_operand.vmem [shape: bf16[32,128], index: 1, kind: output, shape index: {}]
  %s2 = sld [smem:[#allocation0]]
  $region78: #{_lambda_.10} parent=0
    _
  %s4 = ssub.s32 1, %s2
  %s5 = scalar_select 0, %s4, %s2
  $region1: #{_lambda_.10} parent=0
    #allocation2 [shape = 'u8[73728]{0}', space=vmem, size = 0x12000, scoped, tag = 'input window, operand 0']
    loop: start=0, step=1, limit=4
    $region2: #{_lambda_.10} parent=1 // loop_pre_header
      _
    $region3: #{_lambda_.10} parent=1 // loop_header
      %s7 = sphi 0, %s11
      %p8 = scmp.ge.s32.totalorder %s7, 4
      %s17 = sphi 0, %s19
      %s20 = sphi 0, %s17
      %s21 = sphi 0, %s20
      %s37 = sphi 0, %s21
      %s43 = sphi 0, %s45
      %s46 = sphi 0, %s43
      %s47 = sphi 0, %s46
      %s63 = sphi 0, %s47
    $region4: #{_lambda_.10} parent=1 // loop_header_branch
      %10 = sbr.rel (%p8) target = $region8
    $region5: #{_lambda_.10} parent=1 // loop_body
      %s12 = ssub.s32 %s7, 1
      %s13 = ssub.s32 %s7, 2
      %s14 = sadd.s32 %s7, 1
      %s15 = ssub.s32 %s7, %s14
      %p16 = scmp.eq.s32.totalorder %s15, 0
      %s18 = sadd.s32 %s17, 1
      %s19 = scalar_select %p16, %s17, %s18
      %p22 = pneg %p16
      %p23 = scmp.eq.s32.totalorder %s7, 1
      %p24 = por %p22, %p23
      %p25 = scmp.ne.s32.totalorder %s17, %s20
      %p26 = scmp.eq.s32.totalorder %s7, 0
      %p27 = por %p25, %p26
      %p28 = scmp.ne.s32.totalorder %s17, %s20
      %p29 = scmp.eq.s32.totalorder %s12, 1
      %p30 = por %p28, %p29
      %p31 = scmp.ne.s32.totalorder %s20, %s21
      %p32 = scmp.eq.s32.totalorder %s12, 0
      %p33 = por %p31, %p32
      %p34 = scmp.ne.s32.totalorder %s20, %s21
      %p35 = scmp.eq.s32.totalorder %s13, 1
      %p36 = por %p34, %p35
      %p38 = scmp.ne.s32.totalorder %s21, %s37
      %p39 = scmp.eq.s32.totalorder %s13, 0
      %p40 = por %p38, %p39
      %s41 = ssub.s32 %s7, %s14
      %p42 = scmp.eq.s32.totalorder %s41, 0
      %s44 = sadd.s32 %s43, 1
      %s45 = scalar_select %p42, %s43, %s44
      %p48 = pneg %p42
      %p49 = scmp.eq.s32.totalorder %s7, 1
      %p50 = por %p48, %p49
      %p51 = scmp.ne.s32.totalorder %s43, %s46
      %p52 = scmp.eq.s32.totalorder %s7, 0
      %p53 = por %p51, %p52
      %p54 = scmp.ne.s32.totalorder %s43, %s46
      %p55 = scmp.eq.s32.totalorder %s12, 1
      %p56 = por %p54, %p55
      %p57 = scmp.ne.s32.totalorder %s46, %s47
      %p58 = scmp.eq.s32.totalorder %s12, 0
      %p59 = por %p57, %p58
      %p60 = scmp.ne.s32.totalorder %s46, %s47
      %p61 = scmp.eq.s32.totalorder %s13, 1
      %p62 = por %p60, %p61
      %p64 = scmp.ne.s32.totalorder %s47, %s63
      %p65 = scmp.eq.s32.totalorder %s13, 0
      %p66 = por %p64, %p65
      %p67 = scmp.le.s32.totalorder 1, %s7
      %p68 = scmp.lt.s32.totalorder %s7, 3
      %p69 = pnand %p67, %p68
      %p70 = pneg %p69
      // Predicated region
      $region9: #{_lambda_.10} parent=5 // pred_check
        _
      $region10: #{_lambda_.10} parent=5 // pred_check_branch
        %72 = sbr.rel (%p69) target = $region12
      $region11: #{_lambda_.10} parent=5 // pred_region
        %s73 = ssub.s32 %s7, 1
      $region12: #{_lambda_.10} parent=5 // pred_fallthru
        _
      %p74 = scmp.lt.s32.totalorder %s7, 2
      // Predicated region
      $region13: #{_lambda_.10} parent=5 // pred_check
        %p75 = pneg %p74
      $region14: #{_lambda_.10} parent=5 // pred_check_branch
        %77 = sbr.rel (%p75) target = $region16
      $region15: #{_lambda_.10} parent=5 // pred_region
        // Predicated region
        $region17: #{_lambda_.10} parent=15 // pred_check
          %p78 = pneg %p27
        $region18: #{_lambda_.10} parent=15 // pred_check_branch
          %80 = sbr.rel (%p78) target = $region20
        $region19: #{_lambda_.10} parent=15 // pred_region
          %s81 = sand.u32 %s17, 1
          %s82 = sand.u32 %s17, 1
          %s83 = smul.addr %s82, 72
          %s84 = scalar_lea.vmem [#allocation2], %s83
          %s85 = smul.u32 2, %s7
          %s86 = smul.addr %s85, 4
          %s87 = scalar_lea.vmem %s0, %s86
          // Predicated region
          $region21: #{_lambda_.10} parent=19 // pred_check
            _
          $region22: #{_lambda_.10} parent=19 // pred_check_branch
            %89 = sbr.rel (0) target = $region24
          $region23: #{_lambda_.10} parent=19 // pred_region
            // Predicated region
            $region25: #{_lambda_.10} parent=23 // pred_check
              _
            $region26: #{_lambda_.10} parent=23 // pred_check_branch
              %91 = sbr.rel target = $region28
            $region27: #{_lambda_.10} parent=23 // pred_region
              // Predicated region
              $region40: #{_lambda_.10} parent=27 // pred_check
                _
              $region41: #{_lambda_.10} parent=27 // pred_check_branch
                %140 = sbr.rel (0) target = $region43
              $region42: #{_lambda_.10} parent=27 // pred_region
                loop: start=0, step=1, limit=1
                $region44: #{_lambda_.10} parent=42 // loop_pre_header
                  _
                $region45: #{_lambda_.10} parent=42 // loop_header
                  %s142 = sphi 0, %s146
                  %p143 = scmp.ge.s32.totalorder %s142, 1
                  %s147 = sphi %s87, %s87
                  %s148 = sphi %s84, %s84
                $region46: #{_lambda_.10} parent=42 // loop_header_branch
                  %145 = sbr.rel (%p143) target = $region50
                $region47: #{_lambda_.10} parent=42 // loop_body
                  _
                $region48: #{_lambda_.10} parent=42 // loop_footer
                  %s146 = sadd.s32 1, %s142
                $region49: #{_lambda_.10} parent=42 // loop_footer_branch
                  %141 = sbr.rel target = $region45
                $region50: #{_lambda_.10} parent=42 // loop_exit
                  _
                loop: start=0, step=1, limit=1
                $region51: #{_lambda_.10} parent=42 // loop_pre_header
                  _
                $region52: #{_lambda_.10} parent=42 // loop_header
                  %s151 = sphi 0, %s155
                  %p152 = scmp.ge.s32.totalorder %s151, 1
                  %s156 = sphi %s87, %s87
                  %s157 = sphi %s84, %s84
                $region53: #{_lambda_.10} parent=42 // loop_header_branch
                  %154 = sbr.rel (%p152) target = $region57
                $region54: #{_lambda_.10} parent=42 // loop_body
                  %v158 = vld [vmem:[%s156] sm:$0xf]
                  %159 = vst [vmem:[%s157] sm:$0xf] %v158
                  %v160 = vld [vmem:[%s156 + $0x4] sm:$0xf]
                  %161 = vst [vmem:[%s157 + $0x4] sm:$0xf] %v160
                  %v162 = vld [vmem:[%s156 + $0x10] sm:$0xf]
                  %163 = vst [vmem:[%s157 + $0x8] sm:$0xf] %v162
                  %v164 = vld [vmem:[%s156 + $0x14] sm:$0xf]
                  %165 = vst [vmem:[%s157 + $0xc] sm:$0xf] %v164
                  %v166 = vld [vmem:[%s156 + $0x20] sm:$0xf]
                  %167 = vst [vmem:[%s157 + $0x10] sm:$0xf] %v166
                  %v168 = vld [vmem:[%s156 + $0x24] sm:$0xf]
                  %169 = vst [vmem:[%s157 + $0x14] sm:$0xf] %v168
                  %v170 = vld [vmem:[%s156 + $0x30] sm:$0xf]
                  %171 = vst [vmem:[%s157 + $0x18] sm:$0xf] %v170
                  %v172 = vld [vmem:[%s156 + $0x34] sm:$0xf]
                  %173 = vst [vmem:[%s157 + $0x1c] sm:$0xf] %v172
                  %v174 = vld [vmem:[%s156 + $0x40] sm:$0xf]
                  %175 = vst [vmem:[%s157 + $0x20] sm:$0xf] %v174
                  %v176 = vld [vmem:[%s156 + $0x44] sm:$0xf]
                  %177 = vst [vmem:[%s157 + $0x24] sm:$0xf] %v176
                  %v178 = vld [vmem:[%s156 + $0x50] sm:$0xf]
                  %179 = vst [vmem:[%s157 + $0x28] sm:$0xf] %v178
                  %v180 = vld [vmem:[%s156 + $0x54] sm:$0xf]
                  %181 = vst [vmem:[%s157 + $0x2c] sm:$0xf] %v180
                  %v182 = vld [vmem:[%s156 + $0x60] sm:$0xf]
                  %183 = vst [vmem:[%s157 + $0x30] sm:$0xf] %v182
                  %v184 = vld [vmem:[%s156 + $0x64] sm:$0xf]
                  %185 = vst [vmem:[%s157 + $0x34] sm:$0xf] %v184
                  %v186 = vld [vmem:[%s156 + $0x70] sm:$0xf]
                  %187 = vst [vmem:[%s157 + $0x38] sm:$0xf] %v186
                  %v188 = vld [vmem:[%s156 + $0x74] sm:$0xf]
                  %189 = vst [vmem:[%s157 + $0x3c] sm:$0xf] %v188
                  %v190 = vld [vmem:[%s156 + $0x80] sm:$0xf]
                  %191 = vst [vmem:[%s157 + $0x40] sm:$0xf] %v190
                  %v192 = vld [vmem:[%s156 + $0x84] sm:$0xf]
                  %193 = vst [vmem:[%s157 + $0x44] sm:$0xf] %v192
                $region55: #{_lambda_.10} parent=42 // loop_footer
                  %s155 = sadd.s32 1, %s151
                $region56: #{_lambda_.10} parent=42 // loop_footer_branch
                  %150 = sbr.rel target = $region52
                $region57: #{_lambda_.10} parent=42 // loop_exit
                  _
              $region43: #{_lambda_.10} parent=27 // pred_fallthru
                _
            $region28: #{_lambda_.10} parent=23 // pred_fallthru
              _
            // Predicated region
            $region29: #{_lambda_.10} parent=23 // pred_check
              _
            $region30: #{_lambda_.10} parent=23 // pred_check_branch
              %93 = sbr.rel (0) target = $region32
            $region31: #{_lambda_.10} parent=23 // pred_region
              loop: start=0, step=1, limit=1
              $region33: #{_lambda_.10} parent=31 // loop_pre_header
                _
              $region34: #{_lambda_.10} parent=31 // loop_header
                %s96 = sphi 0, %s100
                %p97 = scmp.ge.s32.totalorder %s96, 1
                %s101 = sphi %s87, %s87
                %s102 = sphi %s84, %s84
              $region35: #{_lambda_.10} parent=31 // loop_header_branch
                %99 = sbr.rel (%p97) target = $region39
              $region36: #{_lambda_.10} parent=31 // loop_body
                %v103 = vld [vmem:[%s101] sm:$0xf]
                %104 = vst [vmem:[%s102] sm:$0xf] %v103
                %v105 = vld [vmem:[%s101 + $0x4] sm:$0xf]
                %106 = vst [vmem:[%s102 + $0x4] sm:$0xf] %v105
                %v107 = vld [vmem:[%s101 + $0x10] sm:$0xf]
                %108 = vst [vmem:[%s102 + $0x8] sm:$0xf] %v107
                %v109 = vld [vmem:[%s101 + $0x14] sm:$0xf]
                %110 = vst [vmem:[%s102 + $0xc] sm:$0xf] %v109
                %v111 = vld [vmem:[%s101 + $0x20] sm:$0xf]
                %112 = vst [vmem:[%s102 + $0x10] sm:$0xf] %v111
                %v113 = vld [vmem:[%s101 + $0x24] sm:$0xf]
                %114 = vst [vmem:[%s102 + $0x14] sm:$0xf] %v113
                %v115 = vld [vmem:[%s101 + $0x30] sm:$0xf]
                %116 = vst [vmem:[%s102 + $0x18] sm:$0xf] %v115
                %v117 = vld [vmem:[%s101 + $0x34] sm:$0xf]
                %118 = vst [vmem:[%s102 + $0x1c] sm:$0xf] %v117
                %v119 = vld [vmem:[%s101 + $0x40] sm:$0xf]
                %120 = vst [vmem:[%s102 + $0x20] sm:$0xf] %v119
                %v121 = vld [vmem:[%s101 + $0x44] sm:$0xf]
                %122 = vst [vmem:[%s102 + $0x24] sm:$0xf] %v121
                %v123 = vld [vmem:[%s101 + $0x50] sm:$0xf]
                %124 = vst [vmem:[%s102 + $0x28] sm:$0xf] %v123
                %v125 = vld [vmem:[%s101 + $0x54] sm:$0xf]
                %126 = vst [vmem:[%s102 + $0x2c] sm:$0xf] %v125
                %v127 = vld [vmem:[%s101 + $0x60] sm:$0xf]
                %128 = vst [vmem:[%s102 + $0x30] sm:$0xf] %v127
                %v129 = vld [vmem:[%s101 + $0x64] sm:$0xf]
                %130 = vst [vmem:[%s102 + $0x34] sm:$0xf] %v129
                %v131 = vld [vmem:[%s101 + $0x70] sm:$0xf]
                %132 = vst [vmem:[%s102 + $0x38] sm:$0xf] %v131
                %v133 = vld [vmem:[%s101 + $0x74] sm:$0xf]
                %134 = vst [vmem:[%s102 + $0x3c] sm:$0xf] %v133
                %v135 = vld [vmem:[%s101 + $0x80] sm:$0xf]
                %136 = vst [vmem:[%s102 + $0x40] sm:$0xf] %v135
                %v137 = vld [vmem:[%s101 + $0x84] sm:$0xf]
                %138 = vst [vmem:[%s102 + $0x44] sm:$0xf] %v137
              $region37: #{_lambda_.10} parent=31 // loop_footer
                %s100 = sadd.s32 1, %s96
              $region38: #{_lambda_.10} parent=31 // loop_footer_branch
                %95 = sbr.rel target = $region34
              $region39: #{_lambda_.10} parent=31 // loop_exit
                _
            $region32: #{_lambda_.10} parent=23 // pred_fallthru
              _
          $region24: #{_lambda_.10} parent=19 // pred_fallthru
            _
          %194 = vnop
        $region20: #{_lambda_.10} parent=15 // pred_fallthru
          _
      $region16: #{_lambda_.10} parent=5 // pred_fallthru
        _
      %p195 = scmp.le.s32.totalorder 1, %s7
      %p196 = scmp.lt.s32.totalorder %s7, 3
      %p197 = pnand %p195, %p196
      %p198 = pneg %p197
      // Predicated region
      $region58: #{_lambda_.10} parent=5 // pred_check
        _
      $region59: #{_lambda_.10} parent=5 // pred_check_branch
        %200 = sbr.rel (%p197) target = $region61
      $region60: #{_lambda_.10} parent=5 // pred_region
        %s201 = ssub.s32 %s7, 1
        %s202 = sand.u32 %s20, 1
        %s203 = sand.u32 %s20, 1
        %s204 = smul.addr %s203, 72
        %s205 = scalar_lea.vmem [#allocation2], %s204
        // Predicated region
        $region62: #{_lambda_.10} parent=60 // pred_check
          %p206 = pneg %p33
        $region63: #{_lambda_.10} parent=60 // pred_check_branch
          %208 = sbr.rel (%p206) target = $region65
        $region64: #{_lambda_.10} parent=60 // pred_region
          _
        $region65: #{_lambda_.10} parent=60 // pred_fallthru
          _
        %s209 = sand.u32 %s20, 1
        %s210 = sand.u32 %s20, 1
        %s211 = smul.addr %s210, 72
        %s212 = scalar_lea.vmem [#allocation2], %s211
        %p213 = pneg %p33
        %p214 = pneg %p30
        %p215 = pneg %p59
        %p216 = pneg %p56
        %s217 = smul.u32 2, %s12
        %p218 = scmp.lt.s32.totalorder %s217, 3
        %s219 = scalar_select %p218, %s217, 3
        %s220 = smul.addr %s219, 4
        %s221 = scalar_lea.vmem %s1, %s220
        %s222 = smul.u32 2, %s12
        %s223 = smul.u32 2, %s12
        %p224 = scmp.lt.s32.totalorder %s223, 3
        %s225 = scalar_select %p224, %s223, 3
        %s226 = smul.addr %s225, 4
        %s227 = scalar_lea.vmem %s1, %s226
        %s228 = smul.u32 2, %s12
        %v230 = vld [vmem:[%s205] sm:$0xf]
        %v231 = vld [vmem:[%s205 + $0x4] sm:$0xf]
        %v232 = vld [vmem:[%s205 + $0x8] sm:$0xf]
        %v233 = vld [vmem:[%s205 + $0xc] sm:$0xf]
        %v234 = vld [vmem:[%s205 + $0x10] sm:$0xf]
        %v235 = vld [vmem:[%s205 + $0x14] sm:$0xf]
        %v236 = vld [vmem:[%s205 + $0x18] sm:$0xf]
        %v237 = vld [vmem:[%s205 + $0x1c] sm:$0xf]
        %v238 = vld [vmem:[%s205 + $0x20] sm:$0xf]
        %v239 = vld [vmem:[%s205 + $0x24] sm:$0xf]
        %v240 = vld [vmem:[%s205 + $0x28] sm:$0xf]
        %v241 = vld [vmem:[%s205 + $0x2c] sm:$0xf]
        %v242 = vld [vmem:[%s205 + $0x30] sm:$0xf]
        %v243 = vld [vmem:[%s205 + $0x34] sm:$0xf]
        %v244 = vld [vmem:[%s205 + $0x38] sm:$0xf]
        %v245 = vld [vmem:[%s205 + $0x3c] sm:$0xf]
        %v246 = vld [vmem:[%s205 + $0x40] sm:$0xf]
        %v247 = vld [vmem:[%s205 + $0x44] sm:$0xf]
        %vm248 = vcmask 1043456
        %v251 = vsel %vm248, %v230, 4286644096
        %v254 = vsel %vm248, %v232, 4286644096
        %v257 = vsel %vm248, %v234, 4286644096
        %v259 = vmax.bf16 %v251, %v257
        %v261 = vsel %vm248, %v236, 4286644096
        %v263 = vmax.bf16 %v254, %v261
        %v265 = vsel %vm248, %v238, 4286644096
        %v267 = vmax.bf16 %v259, %v265
        %v269 = vsel %vm248, %v240, 4286644096
        %v271 = vmax.bf16 %v263, %v269
        %v273 = vsel %vm248, %v242, 4286644096
        %v275 = vmax.bf16 %v267, %v273
        %v277 = vsel %vm248, %v244, 4286644096
        %v279 = vmax.bf16 %v271, %v277
        %v281 = vsel %vm248, %v246, 4286644096
        %v283 = vmax.bf16 %v275, %v281
        %v284 = vmax.bf16 %v283, %v279
        %v286 = vsel %vm248, %v231, 4286644096
        %v289 = vsel %vm248, %v233, 4286644096
        %v292 = vsel %vm248, %v235, 4286644096
        %v294 = vmax.bf16 %v286, %v292
        %v296 = vsel %vm248, %v237, 4286644096
        %v298 = vmax.bf16 %v289, %v296
        %v300 = vsel %vm248, %v239, 4286644096
        %v302 = vmax.bf16 %v294, %v300
        %v304 = vsel %vm248, %v241, 4286644096
        %v306 = vmax.bf16 %v298, %v304
        %v308 = vsel %vm248, %v243, 4286644096
        %v310 = vmax.bf16 %v302, %v308
        %v312 = vsel %vm248, %v245, 4286644096
        %v314 = vmax.bf16 %v306, %v312
        %v316 = vsel %vm248, %v247, 4286644096
        %v318 = vmax.bf16 %v310, %v316
        %v319 = vmax.bf16 %v318, %v314
        %320 = vst [vmem:[%s227] sm:$0xf] %v284
        %321 = vst [vmem:[%s227 + $0x4] sm:$0xf] %v319
        %s322 = smul.u32 2, %s12
        %p323 = scmp.lt.s32.totalorder %s322, 3
        %s324 = scalar_select %p323, %s322, 3
        %s325 = smul.addr %s324, 4
        %s326 = scalar_lea.vmem %s1, %s325
        // Predicated region
        $region66: #{_lambda_.10} parent=60 // pred_check
          %p327 = pneg %p56
        $region67: #{_lambda_.10} parent=60 // pred_check_branch
          %329 = sbr.rel (%p327) target = $region69
        $region68: #{_lambda_.10} parent=60 // pred_region
          %s330 = smul.u32 2, %s12
        $region69: #{_lambda_.10} parent=60 // pred_fallthru
          _
      $region61: #{_lambda_.10} parent=5 // pred_fallthru
        _
      %p331 = scmp.le.s32.totalorder 2, %s7
      // Predicated region
      $region70: #{_lambda_.10} parent=5 // pred_check
        %p332 = pneg %p331
      $region71: #{_lambda_.10} parent=5 // pred_check_branch
        %334 = sbr.rel (%p332) target = $region73
      $region72: #{_lambda_.10} parent=5 // pred_region
        %s335 = ssub.s32 %s7, 2
        // Predicated region
        $region74: #{_lambda_.10} parent=72 // pred_check
          %p336 = pneg %p62
        $region75: #{_lambda_.10} parent=72 // pred_check_branch
          %338 = sbr.rel (%p336) target = $region77
        $region76: #{_lambda_.10} parent=72 // pred_region
          %s339 = smul.u32 2, %s13
          %p340 = scmp.lt.s32.totalorder %s339, 3
          %s341 = scalar_select %p340, %s339, 3
          %s342 = smul.addr %s341, 4
          %s343 = scalar_lea.vmem %s1, %s342
        $region77: #{_lambda_.10} parent=72 // pred_fallthru
          _
      $region73: #{_lambda_.10} parent=5 // pred_fallthru
        _
    $region6: #{_lambda_.10} parent=1 // loop_footer
      %s11 = sadd.s32 1, %s7
    $region7: #{_lambda_.10} parent=1 // loop_footer_branch
      %6 = sbr.rel target = $region3
    $region8: #{_lambda_.10} parent=1 // loop_exit
      _

// kernel: _lambda_.9
$region0: #{_lambda_.9}
  #allocation0 [shape = 'u32[]', space=smem, size = 0x4, offset = 0x4, fixed_abs, tag = 'smem constant byte address 0x4 - core index']
  #allocation1 [shape = 'u32[144,128]{1,0:T(1,128)}', space=vmem, size = 0x12000, scoped, tag = 'internal scratch']
  %s0 = inlined_call_operand.vmem [shape: bf16[128,256], index: 0, kind: input, shape index: {}]
  %s1 = inlined_call_operand.vmem [shape: bf16[256,128], index: 1, kind: input, shape index: {}]
  %s2 = inlined_call_operand.vmem [shape: f32[1,128], index: 2, kind: input, shape index: {}]
  %s3 = inlined_call_operand.vmem [shape: bf16[128,128], index: 3, kind: output, shape index: {}]
  %s4 = sld [smem:[#allocation0]]
  $region45: #{_lambda_.9} parent=0
    _
  %s6 = ssub.s32 1, %s4
  %s7 = scalar_select 0, %s6, %s4
  loop: start=0, step=1, limit=4
  $region2: #{_lambda_.9} parent=0 // loop_pre_header
    _
  $region3: #{_lambda_.9} parent=0 // loop_header
    %s9 = sphi 0, %s13
    %p10 = scmp.ge.s32.totalorder %s9, 4
    %s19 = sphi 0, %s21
    %s22 = sphi 0, %s19
    %s23 = sphi 0, %s22
    %s39 = sphi 0, %s23
    %s43 = sphi 0, %s43
    %s45 = sphi 0, %s43
    %s46 = sphi 0, %s45
    %s60 = sphi 0, %s46
    %s64 = sphi 0, %s64
    %s66 = sphi 0, %s64
    %s67 = sphi 0, %s66
    %s81 = sphi 0, %s67
    %s87 = sphi 0, %s89
    %s90 = sphi 0, %s87
    %s91 = sphi 0, %s90
    %s107 = sphi 0, %s91
  $region4: #{_lambda_.9} parent=0 // loop_header_branch
    %12 = sbr.rel (%p10) target = $region8
  $region5: #{_lambda_.9} parent=0 // loop_body
    %s14 = ssub.s32 %s9, 1
    %s15 = ssub.s32 %s9, 2
    %s16 = sadd.s32 %s9, 1
    %s17 = ssub.s32 %s9, %s16
    %p18 = scmp.eq.s32.totalorder %s17, 0
    %s20 = sadd.s32 %s19, 1
    %s21 = scalar_select %p18, %s19, %s20
    %p24 = pneg %p18
    %p25 = scmp.eq.s32.totalorder %s9, 1
    %p26 = por %p24, %p25
    %p27 = scmp.ne.s32.totalorder %s19, %s22
    %p28 = scmp.eq.s32.totalorder %s9, 0
    %p29 = por %p27, %p28
    %p30 = scmp.ne.s32.totalorder %s19, %s22
    %p31 = scmp.eq.s32.totalorder %s14, 1
    %p32 = por %p30, %p31
    %p33 = scmp.ne.s32.totalorder %s22, %s23
    %p34 = scmp.eq.s32.totalorder %s14, 0
    %p35 = por %p33, %p34
    %p36 = scmp.ne.s32.totalorder %s22, %s23
    %p37 = scmp.eq.s32.totalorder %s15, 1
    %p38 = por %p36, %p37
    %p40 = scmp.ne.s32.totalorder %s23, %s39
    %p41 = scmp.eq.s32.totalorder %s15, 0
    %p42 = por %p40, %p41
    %s44 = sadd.s32 %s43, 1
    %p47 = scmp.eq.s32.totalorder %s9, 1
    %p48 = scmp.ne.s32.totalorder %s43, %s45
    %p49 = scmp.eq.s32.totalorder %s9, 0
    %p50 = por %p48, %p49
    %p51 = scmp.ne.s32.totalorder %s43, %s45
    %p52 = scmp.eq.s32.totalorder %s14, 1
    %p53 = por %p51, %p52
    %p54 = scmp.ne.s32.totalorder %s45, %s46
    %p55 = scmp.eq.s32.totalorder %s14, 0
    %p56 = por %p54, %p55
    %p57 = scmp.ne.s32.totalorder %s45, %s46
    %p58 = scmp.eq.s32.totalorder %s15, 1
    %p59 = por %p57, %p58
    %p61 = scmp.ne.s32.totalorder %s46, %s60
    %p62 = scmp.eq.s32.totalorder %s15, 0
    %p63 = por %p61, %p62
    %s65 = sadd.s32 %s64, 1
    %p68 = scmp.eq.s32.totalorder %s9, 1
    %p69 = scmp.ne.s32.totalorder %s64, %s66
    %p70 = scmp.eq.s32.totalorder %s9, 0
    %p71 = por %p69, %p70
    %p72 = scmp.ne.s32.totalorder %s64, %s66
    %p73 = scmp.eq.s32.totalorder %s14, 1
    %p74 = por %p72, %p73
    %p75 = scmp.ne.s32.totalorder %s66, %s67
    %p76 = scmp.eq.s32.totalorder %s14, 0
    %p77 = por %p75, %p76
    %p78 = scmp.ne.s32.totalorder %s66, %s67
    %p79 = scmp.eq.s32.totalorder %s15, 1
    %p80 = por %p78, %p79
    %p82 = scmp.ne.s32.totalorder %s67, %s81
    %p83 = scmp.eq.s32.totalorder %s15, 0
    %p84 = por %p82, %p83
    %s85 = ssub.s32 %s9, %s16
    %p86 = scmp.eq.s32.totalorder %s85, 0
    %s88 = sadd.s32 %s87, 1
    %s89 = scalar_select %p86, %s87, %s88
    %p92 = pneg %p86
    %p93 = scmp.eq.s32.totalorder %s9, 1
    %p94 = por %p92, %p93
    %p95 = scmp.ne.s32.totalorder %s87, %s90
    %p96 = scmp.eq.s32.totalorder %s9, 0
    %p97 = por %p95, %p96
    %p98 = scmp.ne.s32.totalorder %s87, %s90
    %p99 = scmp.eq.s32.totalorder %s14, 1
    %p100 = por %p98, %p99
    %p101 = scmp.ne.s32.totalorder %s90, %s91
    %p102 = scmp.eq.s32.totalorder %s14, 0
    %p103 = por %p101, %p102
    %p104 = scmp.ne.s32.totalorder %s90, %s91
    %p105 = scmp.eq.s32.totalorder %s15, 1
    %p106 = por %p104, %p105
    %p108 = scmp.ne.s32.totalorder %s91, %s107
    %p109 = scmp.eq.s32.totalorder %s15, 0
    %p110 = por %p108, %p109
    %p111 = scmp.le.s32.totalorder 1, %s9
    %p112 = scmp.lt.s32.totalorder %s9, 3
    %p113 = pnand %p111, %p112
    %p114 = pneg %p113
    // Predicated region
    $region9: #{_lambda_.9} parent=5 // pred_check
      _
    $region10: #{_lambda_.9} parent=5 // pred_check_branch
      %116 = sbr.rel (%p113) target = $region12
    $region11: #{_lambda_.9} parent=5 // pred_region
      %s117 = ssub.s32 %s9, 1
      // Predicated region
      $region13: #{_lambda_.9} parent=11 // pred_check
        %p118 = pneg %p56
      $region14: #{_lambda_.9} parent=11 // pred_check_branch
        %120 = sbr.rel (%p118) target = $region16
      $region15: #{_lambda_.9} parent=11 // pred_region
        _
      $region16: #{_lambda_.9} parent=11 // pred_fallthru
        _
      // Predicated region
      $region17: #{_lambda_.9} parent=11 // pred_check
        %p121 = pneg %p77
      $region18: #{_lambda_.9} parent=11 // pred_check_branch
        %123 = sbr.rel (%p121) target = $region20
      $region19: #{_lambda_.9} parent=11 // pred_region
        _
      $region20: #{_lambda_.9} parent=11 // pred_fallthru
        _
    $region12: #{_lambda_.9} parent=5 // pred_fallthru
      _
    %p124 = scmp.lt.s32.totalorder %s9, 2
    // Predicated region
    $region21: #{_lambda_.9} parent=5 // pred_check
      %p125 = pneg %p124
    $region22: #{_lambda_.9} parent=5 // pred_check_branch
      %127 = sbr.rel (%p125) target = $region24
    $region23: #{_lambda_.9} parent=5 // pred_region
      // Predicated region
      $region25: #{_lambda_.9} parent=23 // pred_check
        %p128 = pneg %p29
      $region26: #{_lambda_.9} parent=23 // pred_check_branch
        %130 = sbr.rel (%p128) target = $region28
      $region27: #{_lambda_.9} parent=23 // pred_region
        %s131 = smul.u32 8, %s9
        %p132 = scmp.lt.s32.totalorder %s131, 15
        %s133 = scalar_select %p132, %s131, 15
        %s134 = smul.addr %s133, 2
        %s135 = smul.addr %s134, 4
        %s136 = scalar_lea.vmem %s0, %s135
        %s137 = smul.u32 8, %s9
      $region28: #{_lambda_.9} parent=23 // pred_fallthru
        _
    $region24: #{_lambda_.9} parent=5 // pred_fallthru
      _
    %p138 = scmp.le.s32.totalorder 1, %s9
    %p139 = scmp.lt.s32.totalorder %s9, 3
    %p140 = pnand %p138, %p139
    %p141 = pneg %p140
    // Predicated region
    $region29: #{_lambda_.9} parent=5 // pred_check
      _
    $region30: #{_lambda_.9} parent=5 // pred_check_branch
      %143 = sbr.rel (%p140) target = $region32
    $region31: #{_lambda_.9} parent=5 // pred_region
      %s144 = ssub.s32 %s9, 1
      %s145 = smul.u32 8, %s14
      %p146 = scmp.lt.s32.totalorder %s145, 15
      %s147 = scalar_select %p146, %s145, 15
      %s148 = smul.addr %s147, 2
      %s149 = smul.addr %s148, 4
      %s150 = scalar_lea.vmem %s0, %s149
      %p151 = pneg %p35
      %p152 = pneg %p32
      %p153 = pneg %p56
      %p154 = pneg %p53
      %p155 = pneg %p77
      %p156 = pneg %p74
      %p157 = pneg %p103
      %p158 = pneg %p100
      %s159 = smul.u32 8, %s14
      %p160 = scmp.lt.s32.totalorder %s159, 15
      %s161 = scalar_select %p160, %s159, 15
      %s162 = smul.addr %s161, 4
      %s163 = scalar_lea.vmem %s3, %s162
      %s164 = smul.u32 8, %s14
      %p165 = scmp.lt.s32.totalorder %s164, 15
      %s166 = scalar_select %p165, %s164, 15
      %s167 = smul.addr %s166, 2
      %s168 = smul.addr %s167, 4
      %s169 = scalar_lea.vmem %s0, %s168
      %s170 = smul.u32 8, %s14
      %s171 = smul.u32 8, %s14
      %p172 = scmp.lt.s32.totalorder %s171, 15
      %s173 = scalar_select %p172, %s171, 15
      %s174 = smul.addr %s173, 4
      %s175 = scalar_lea.vmem %s3, %s174
      %s176 = smul.u32 8, %s14
      %v178 = vld [vmem:[%s169] sm:$0xff]
      %v179 = vld [vmem:[%s169 + $0x8] sm:$0xff]
      %v180 = vld [vmem:[%s169 + $0x10] sm:$0xff]
      %v181 = vld [vmem:[%s169 + $0x18] sm:$0xff]
      %v182 = vld [vmem:[%s169 + $0x20] sm:$0xff]
      %v183 = vld [vmem:[%s169 + $0x28] sm:$0xff]
      %v184 = vld [vmem:[%s169 + $0x30] sm:$0xff]
      %v185 = vld [vmem:[%s169 + $0x38] sm:$0xff]
      %v186 = vld [vmem:[%s1] sm:$0xf]
      %v187 = vld [vmem:[%s1 + $0x4] sm:$0xf]
      %v188 = vld [vmem:[%s1 + $0x8] sm:$0xf]
      %v189 = vld [vmem:[%s1 + $0xc] sm:$0xf]
      %v190 = vld [vmem:[%s1 + $0x10] sm:$0xf]
      %v191 = vld [vmem:[%s1 + $0x14] sm:$0xf]
      %v192 = vld [vmem:[%s1 + $0x18] sm:$0xf]
      %v193 = vld [vmem:[%s1 + $0x1c] sm:$0xf]
      %v194 = vld [vmem:[%s1 + $0x20] sm:$0xf]
      %v195 = vld [vmem:[%s1 + $0x24] sm:$0xf]
      %v196 = vld [vmem:[%s1 + $0x28] sm:$0xf]
      %v197 = vld [vmem:[%s1 + $0x2c] sm:$0xf]
      %v198 = vld [vmem:[%s1 + $0x30] sm:$0xf]
      %v199 = vld [vmem:[%s1 + $0x34] sm:$0xf]
      %v200 = vld [vmem:[%s1 + $0x38] sm:$0xf]
      %v201 = vld [vmem:[%s1 + $0x3c] sm:$0xf]
      %v202 = vld [vmem:[%s1 + $0x40] sm:$0xf]
      %v203 = vld [vmem:[%s1 + $0x44] sm:$0xf]
      %v204 = vld [vmem:[%s1 + $0x48] sm:$0xf]
      %v205 = vld [vmem:[%s1 + $0x4c] sm:$0xf]
      %v206 = vld [vmem:[%s1 + $0x50] sm:$0xf]
      %v207 = vld [vmem:[%s1 + $0x54] sm:$0xf]
      %v208 = vld [vmem:[%s1 + $0x58] sm:$0xf]
      %v209 = vld [vmem:[%s1 + $0x5c] sm:$0xf]
      %v210 = vld [vmem:[%s1 + $0x60] sm:$0xf]
      %v211 = vld [vmem:[%s1 + $0x64] sm:$0xf]
      %v212 = vld [vmem:[%s1 + $0x68] sm:$0xf]
      %v213 = vld [vmem:[%s1 + $0x6c] sm:$0xf]
      %v214 = vld [vmem:[%s1 + $0x70] sm:$0xf]
      %v215 = vld [vmem:[%s1 + $0x74] sm:$0xf]
      %v216 = vld [vmem:[%s1 + $0x78] sm:$0xf]
      %v217 = vld [vmem:[%s1 + $0x7c] sm:$0xf]
      %v218 = vld [vmem:[%s2] sm:$0x1]
      %v220 = vlaneseq
      %v221 = vshrl.u32 %v220, 7
      %v222 = vsub.s32 0, %v221
      %v223 = vrot.slane %v218, %v222
      %v233 = vunpack.c.l.b16 %v178
      %v234 = vunpack.c.h.b16 %v178
      %v235 = vunpack.c.l.b16 %v179
      %v236 = vunpack.c.h.b16 %v179
      %v237 = vunpack.c.l.b16 %v180
      %v238 = vunpack.c.h.b16 %v180
      %v239 = vunpack.c.l.b16 %v181
      %v240 = vunpack.c.h.b16 %v181
      %v241 = vunpack.c.l.b16 %v182
      %v242 = vunpack.c.h.b16 %v182
      %v243 = vunpack.c.l.b16 %v183
      %v244 = vunpack.c.h.b16 %v183
      %v245 = vunpack.c.l.b16 %v184
      %v246 = vunpack.c.h.b16 %v184
      %v247 = vunpack.c.l.b16 %v185
      %v248 = vunpack.c.h.b16 %v185
      %v249 = vpack.c.b16 %v235, %v233
      %v250 = vpack.c.b16 %v236, %v234
      %v251 = vpack.c.b16 %v239, %v237
      %v252 = vpack.c.b16 %v240, %v238
      %v253 = vpack.c.b16 %v243, %v241
      %v254 = vpack.c.b16 %v244, %v242
      %v255 = vpack.c.b16 %v247, %v245
      %v256 = vpack.c.b16 %v248, %v246
      %v297 = vunpack.c.l.b16 %v186
      %v298 = vunpack.c.l.b16 %v187
      %v299 = vunpack.c.l.b16 %v188
      %v300 = vunpack.c.l.b16 %v189
      %v301 = vunpack.c.l.b16 %v190
      %v302 = vunpack.c.l.b16 %v191
      %v303 = vunpack.c.l.b16 %v192
      %v304 = vunpack.c.l.b16 %v193
      %v305 = vunpack.c.l.b16 %v194
      %v306 = vunpack.c.l.b16 %v195
      %v307 = vunpack.c.l.b16 %v196
      %v308 = vunpack.c.l.b16 %v197
      %v309 = vunpack.c.l.b16 %v198
      %v310 = vunpack.c.l.b16 %v199
      %v311 = vunpack.c.l.b16 %v200
      %v312 = vunpack.c.l.b16 %v201
      %v313 = vunpack.c.l.b16 %v202
      %v314 = vunpack.c.l.b16 %v203
      %v315 = vunpack.c.l.b16 %v204
      %v316 = vunpack.c.l.b16 %v205
      %v317 = vunpack.c.l.b16 %v206
      %v318 = vunpack.c.l.b16 %v207
      %v319 = vunpack.c.l.b16 %v208
      %v320 = vunpack.c.l.b16 %v209
      %v321 = vunpack.c.l.b16 %v210
      %v322 = vunpack.c.l.b16 %v211
      %v323 = vunpack.c.l.b16 %v212
      %v324 = vunpack.c.l.b16 %v213
      %v325 = vunpack.c.l.b16 %v214
      %v326 = vunpack.c.l.b16 %v215
      %v327 = vunpack.c.l.b16 %v216
      %v328 = vunpack.c.l.b16 %v217
      %v329 = vpack.c.b16 %v298, %v297
      %v330 = vpack.c.b16 %v300, %v299
      %v331 = vpack.c.b16 %v302, %v301
      %v332 = vpack.c.b16 %v304, %v303
      %v333 = vpack.c.b16 %v306, %v305
      %v334 = vpack.c.b16 %v308, %v307
      %v335 = vpack.c.b16 %v310, %v309
      %v336 = vpack.c.b16 %v312, %v311
      %v337 = vpack.c.b16 %v314, %v313
      %v338 = vpack.c.b16 %v316, %v315
      %v339 = vpack.c.b16 %v318, %v317
      %v340 = vpack.c.b16 %v320, %v319
      %v341 = vpack.c.b16 %v322, %v321
      %v342 = vpack.c.b16 %v324, %v323
      %v343 = vpack.c.b16 %v326, %v325
      %v344 = vpack.c.b16 %v328, %v327
      %361 = vmatprep.subr.bf16.mxu0 0
      %362 = vmatpush1.bf16.msra.mxu0 %v329
      %363 = vmatprep.subr.bf16.mxu0 0
      %364 = vmatpush1.bf16.msra.mxu0 %v330
      %365 = vmatprep.subr.bf16.mxu0 0
      %366 = vmatpush1.bf16.msra.mxu0 %v331
      %367 = vmatprep.subr.bf16.mxu0 0
      %368 = vmatpush1.bf16.msra.mxu0 %v332
      %369 = vmatprep.subr.bf16.mxu0 0
      %370 = vmatpush1.bf16.msra.mxu0 %v333
      %371 = vmatprep.subr.bf16.mxu0 0
      %372 = vmatpush1.bf16.msra.mxu0 %v334
      %373 = vmatprep.subr.bf16.mxu0 0
      %374 = vmatpush1.bf16.msra.mxu0 %v335
      %375 = vmatprep.subr.bf16.mxu0 0
      %376 = vmatpush1.bf16.msra.mxu0 %v336
      %377 = vmatprep.subr.bf16.mxu0 0
      %378 = vmatpush1.bf16.msra.mxu0 %v337
      %379 = vmatprep.subr.bf16.mxu0 0
      %380 = vmatpush1.bf16.msra.mxu0 %v338
      %381 = vmatprep.subr.bf16.mxu0 0
      %382 = vmatpush1.bf16.msra.mxu0 %v339
      %383 = vmatprep.subr.bf16.mxu0 0
      %384 = vmatpush1.bf16.msra.mxu0 %v340
      %385 = vmatprep.subr.bf16.mxu0 0
      %386 = vmatpush1.bf16.msra.mxu0 %v341
      %387 = vmatprep.subr.bf16.mxu0 0
      %388 = vmatpush1.bf16.msra.mxu0 %v342
      %389 = vmatprep.subr.bf16.mxu0 0
      %390 = vmatpush1.bf16.msra.mxu0 %v343
      %391 = vmatprep.subr.bf16.mxu0 0
      %392 = vmatpush1.bf16.msra.mxu0 %v344
      %393 = vmatprep.mubr.bf16.mxu0 %v250
      %394 = vmatmul.mubr.bf16.gmra.mrb[0].mxu0 %v249
      %v395 = vpop.f32.mrb[0].mxu0
      %v396 = vadd.f32 %v223, %v395
      %v397 = vpop.f32.mrb[0].mxu0
      %v398 = vpop.f32.mrb[0].mxu0
      %v399 = vadd.f32 %v223, %v398
      %v400 = vpop.f32.mrb[0].mxu0
      %401 = vmatprep.mubr.bf16.mxu0 %v252
      %402 = vmatmul.mubr.bf16.gmra.mrb[0].mxu0 %v251
      %v403 = vpop.f32.mrb[0].mxu0
      %v404 = vadd.f32 %v223, %v403
      %v405 = vpop.f32.mrb[0].mxu0
      %v406 = vpop.f32.mrb[0].mxu0
      %v407 = vadd.f32 %v223, %v406
      %v408 = vpop.f32.mrb[0].mxu0
      %409 = vmatprep.mubr.bf16.mxu0 %v254
      %410 = vmatmul.mubr.bf16.gmra.mrb[0].mxu0 %v253
      %v411 = vpop.f32.mrb[0].mxu0
      %v412 = vadd.f32 %v223, %v411
      %v413 = vpop.f32.mrb[0].mxu0
      %v414 = vpop.f32.mrb[0].mxu0
      %v415 = vadd.f32 %v223, %v414
      %v416 = vpop.f32.mrb[0].mxu0
      %417 = vmatprep.mubr.bf16.mxu0 %v256
      %418 = vmatmul.mubr.bf16.gmra.mrb[0].mxu0 %v255
      %v419 = vpop.f32.mrb[0].mxu0
      %v420 = vadd.f32 %v223, %v419
      %v421 = vpop.f32.mrb[0].mxu0
      %v422 = vpop.f32.mrb[0].mxu0
      %v423 = vadd.f32 %v223, %v422
      %v424 = vpop.f32.mrb[0].mxu0
      %425 = vdwg.mxu0
      %v426 = vmax.f32 %v396, 0.0
      %v427 = vmax.f32 %v399, 0.0
      %v428 = vmax.f32 %v404, 0.0
      %v429 = vmax.f32 %v407, 0.0
      %v430 = vmax.f32 %v412, 0.0
      %v431 = vmax.f32 %v415, 0.0
      %v432 = vmax.f32 %v420, 0.0
      %v433 = vmax.f32 %v423, 0.0
      %v434 = vpack.c.bf16 %v427, %v426
      %v435 = vpack.c.bf16 %v429, %v428
      %v436 = vpack.c.bf16 %v431, %v430
      %v437 = vpack.c.bf16 %v433, %v432
      %v442 = vunpack.c.l.b16 %v434
      %v443 = vunpack.c.h.b16 %v434
      %v444 = vunpack.c.l.b16 %v435
      %v445 = vunpack.c.h.b16 %v435
      %v446 = vunpack.c.l.b16 %v436
      %v447 = vunpack.c.h.b16 %v436
      %v448 = vunpack.c.l.b16 %v437
      %v449 = vunpack.c.h.b16 %v437
      %v450 = vpack.c.b16 %v442, %v442
      %v451 = vpack.c.b16 %v443, %v443
      %v452 = vpack.c.b16 %v444, %v444
      %v453 = vpack.c.b16 %v445, %v445
      %v454 = vpack.c.b16 %v446, %v446
      %v455 = vpack.c.b16 %v447, %v447
      %v456 = vpack.c.b16 %v448, %v448
      %v457 = vpack.c.b16 %v449, %v449
      %466 = vst [vmem:[%s175] sm:$0xf] %v450
      %467 = vst [vmem:[%s175 + $0x4] sm:$0xf] %v451
      %468 = vst [vmem:[%s175 + $0x8] sm:$0xf] %v452
      %469 = vst [vmem:[%s175 + $0xc] sm:$0xf] %v453
      %470 = vst [vmem:[%s175 + $0x10] sm:$0xf] %v454
      %471 = vst [vmem:[%s175 + $0x14] sm:$0xf] %v455
      %472 = vst [vmem:[%s175 + $0x18] sm:$0xf] %v456
      %473 = vst [vmem:[%s175 + $0x1c] sm:$0xf] %v457
      %s474 = smul.u32 8, %s14
      %p475 = scmp.lt.s32.totalorder %s474, 15
      %s476 = scalar_select %p475, %s474, 15
      %s477 = smul.addr %s476, 4
      %s478 = scalar_lea.vmem %s3, %s477
      // Predicated region
      $region33: #{_lambda_.9} parent=31 // pred_check
        %p479 = pneg %p100
      $region34: #{_lambda_.9} parent=31 // pred_check_branch
        %481 = sbr.rel (%p479) target = $region36
      $region35: #{_lambda_.9} parent=31 // pred_region
        %s482 = smul.u32 8, %s14
      $region36: #{_lambda_.9} parent=31 // pred_fallthru
        _
    $region32: #{_lambda_.9} parent=5 // pred_fallthru
      _
    %p483 = scmp.le.s32.totalorder 2, %s9
    // Predicated region
    $region37: #{_lambda_.9} parent=5 // pred_check
      %p484 = pneg %p483
    $region38: #{_lambda_.9} parent=5 // pred_check_branch
      %486 = sbr.rel (%p484) target = $region40
    $region39: #{_lambda_.9} parent=5 // pred_region
      %s487 = ssub.s32 %s9, 2
      // Predicated region
      $region41: #{_lambda_.9} parent=39 // pred_check
        %p488 = pneg %p106
      $region42: #{_lambda_.9} parent=39 // pred_check_branch
        %490 = sbr.rel (%p488) target = $region44
      $region43: #{_lambda_.9} parent=39 // pred_region
        %s491 = smul.u32 8, %s15
        %p492 = scmp.lt.s32.totalorder %s491, 15
        %s493 = scalar_select %p492, %s491, 15
        %s494 = smul.addr %s493, 4
        %s495 = scalar_lea.vmem %s3, %s494
      $region44: #{_lambda_.9} parent=39 // pred_fallthru
        _
    $region40: #{_lambda_.9} parent=5 // pred_fallthru
      _
  $region6: #{_lambda_.9} parent=0 // loop_footer
    %s13 = sadd.s32 1, %s9
  $region7: #{_lambda_.9} parent=0 // loop_footer_branch
    %8 = sbr.rel target = $region3
  $region8: #{_lambda_.9} parent=0 // loop_exit
    _

// kernel: _lambda_.11
$region0: #{_lambda_.11}
  #allocation0 [shape = 'u32[]', space=smem, size = 0x4, offset = 0x4, fixed_abs, tag = 'smem constant byte address 0x4 - core index']
  #allocation1 [shape = 'u32[144,128]{1,0:T(1,128)}', space=vmem, size = 0x12000, scoped, tag = 'internal scratch']
  %s0 = inlined_call_operand.vmem [shape: bf16[32,128], index: 0, kind: input, shape index: {}]
  %s1 = inlined_call_operand.vmem [shape: bf16[128,128], index: 1, kind: input, shape index: {}]
  %s2 = inlined_call_operand.vmem [shape: f32[1,128], index: 2, kind: input, shape index: {}]
  %s3 = inlined_call_operand.vmem [shape: bf16[32,128], index: 3, kind: output, shape index: {}]
  %s4 = sld [smem:[#allocation0]]
  $region45: #{_lambda_.11} parent=0
    _
  %s6 = ssub.s32 1, %s4
  %s7 = scalar_select 0, %s6, %s4
  loop: start=0, step=1, limit=4
  $region2: #{_lambda_.11} parent=0 // loop_pre_header
    _
  $region3: #{_lambda_.11} parent=0 // loop_header
    %s9 = sphi 0, %s13
    %p10 = scmp.ge.s32.totalorder %s9, 4
    %s19 = sphi 0, %s21
    %s22 = sphi 0, %s19
    %s23 = sphi 0, %s22
    %s39 = sphi 0, %s23
    %s43 = sphi 0, %s43
    %s45 = sphi 0, %s43
    %s46 = sphi 0, %s45
    %s60 = sphi 0, %s46
    %s64 = sphi 0, %s64
    %s66 = sphi 0, %s64
    %s67 = sphi 0, %s66
    %s81 = sphi 0, %s67
    %s87 = sphi 0, %s89
    %s90 = sphi 0, %s87
    %s91 = sphi 0, %s90
    %s107 = sphi 0, %s91
  $region4: #{_lambda_.11} parent=0 // loop_header_branch
    %12 = sbr.rel (%p10) target = $region8
  $region5: #{_lambda_.11} parent=0 // loop_body
    %s14 = ssub.s32 %s9, 1
    %s15 = ssub.s32 %s9, 2
    %s16 = sadd.s32 %s9, 1
    %s17 = ssub.s32 %s9, %s16
    %p18 = scmp.eq.s32.totalorder %s17, 0
    %s20 = sadd.s32 %s19, 1
    %s21 = scalar_select %p18, %s19, %s20
    %p24 = pneg %p18
    %p25 = scmp.eq.s32.totalorder %s9, 1
    %p26 = por %p24, %p25
    %p27 = scmp.ne.s32.totalorder %s19, %s22
    %p28 = scmp.eq.s32.totalorder %s9, 0
    %p29 = por %p27, %p28
    %p30 = scmp.ne.s32.totalorder %s19, %s22
    %p31 = scmp.eq.s32.totalorder %s14, 1
    %p32 = por %p30, %p31
    %p33 = scmp.ne.s32.totalorder %s22, %s23
    %p34 = scmp.eq.s32.totalorder %s14, 0
    %p35 = por %p33, %p34
    %p36 = scmp.ne.s32.totalorder %s22, %s23
    %p37 = scmp.eq.s32.totalorder %s15, 1
    %p38 = por %p36, %p37
    %p40 = scmp.ne.s32.totalorder %s23, %s39
    %p41 = scmp.eq.s32.totalorder %s15, 0
    %p42 = por %p40, %p41
    %s44 = sadd.s32 %s43, 1
    %p47 = scmp.eq.s32.totalorder %s9, 1
    %p48 = scmp.ne.s32.totalorder %s43, %s45
    %p49 = scmp.eq.s32.totalorder %s9, 0
    %p50 = por %p48, %p49
    %p51 = scmp.ne.s32.totalorder %s43, %s45
    %p52 = scmp.eq.s32.totalorder %s14, 1
    %p53 = por %p51, %p52
    %p54 = scmp.ne.s32.totalorder %s45, %s46
    %p55 = scmp.eq.s32.totalorder %s14, 0
    %p56 = por %p54, %p55
    %p57 = scmp.ne.s32.totalorder %s45, %s46
    %p58 = scmp.eq.s32.totalorder %s15, 1
    %p59 = por %p57, %p58
    %p61 = scmp.ne.s32.totalorder %s46, %s60
    %p62 = scmp.eq.s32.totalorder %s15, 0
    %p63 = por %p61, %p62
    %s65 = sadd.s32 %s64, 1
    %p68 = scmp.eq.s32.totalorder %s9, 1
    %p69 = scmp.ne.s32.totalorder %s64, %s66
    %p70 = scmp.eq.s32.totalorder %s9, 0
    %p71 = por %p69, %p70
    %p72 = scmp.ne.s32.totalorder %s64, %s66
    %p73 = scmp.eq.s32.totalorder %s14, 1
    %p74 = por %p72, %p73
    %p75 = scmp.ne.s32.totalorder %s66, %s67
    %p76 = scmp.eq.s32.totalorder %s14, 0
    %p77 = por %p75, %p76
    %p78 = scmp.ne.s32.totalorder %s66, %s67
    %p79 = scmp.eq.s32.totalorder %s15, 1
    %p80 = por %p78, %p79
    %p82 = scmp.ne.s32.totalorder %s67, %s81
    %p83 = scmp.eq.s32.totalorder %s15, 0
    %p84 = por %p82, %p83
    %s85 = ssub.s32 %s9, %s16
    %p86 = scmp.eq.s32.totalorder %s85, 0
    %s88 = sadd.s32 %s87, 1
    %s89 = scalar_select %p86, %s87, %s88
    %p92 = pneg %p86
    %p93 = scmp.eq.s32.totalorder %s9, 1
    %p94 = por %p92, %p93
    %p95 = scmp.ne.s32.totalorder %s87, %s90
    %p96 = scmp.eq.s32.totalorder %s9, 0
    %p97 = por %p95, %p96
    %p98 = scmp.ne.s32.totalorder %s87, %s90
    %p99 = scmp.eq.s32.totalorder %s14, 1
    %p100 = por %p98, %p99
    %p101 = scmp.ne.s32.totalorder %s90, %s91
    %p102 = scmp.eq.s32.totalorder %s14, 0
    %p103 = por %p101, %p102
    %p104 = scmp.ne.s32.totalorder %s90, %s91
    %p105 = scmp.eq.s32.totalorder %s15, 1
    %p106 = por %p104, %p105
    %p108 = scmp.ne.s32.totalorder %s91, %s107
    %p109 = scmp.eq.s32.totalorder %s15, 0
    %p110 = por %p108, %p109
    %p111 = scmp.le.s32.totalorder 1, %s9
    %p112 = scmp.lt.s32.totalorder %s9, 3
    %p113 = pnand %p111, %p112
    %p114 = pneg %p113
    // Predicated region
    $region9: #{_lambda_.11} parent=5 // pred_check
      _
    $region10: #{_lambda_.11} parent=5 // pred_check_branch
      %116 = sbr.rel (%p113) target = $region12
    $region11: #{_lambda_.11} parent=5 // pred_region
      %s117 = ssub.s32 %s9, 1
      // Predicated region
      $region13: #{_lambda_.11} parent=11 // pred_check
        %p118 = pneg %p56
      $region14: #{_lambda_.11} parent=11 // pred_check_branch
        %120 = sbr.rel (%p118) target = $region16
      $region15: #{_lambda_.11} parent=11 // pred_region
        _
      $region16: #{_lambda_.11} parent=11 // pred_fallthru
        _
      // Predicated region
      $region17: #{_lambda_.11} parent=11 // pred_check
        %p121 = pneg %p77
      $region18: #{_lambda_.11} parent=11 // pred_check_branch
        %123 = sbr.rel (%p121) target = $region20
      $region19: #{_lambda_.11} parent=11 // pred_region
        _
      $region20: #{_lambda_.11} parent=11 // pred_fallthru
        _
    $region12: #{_lambda_.11} parent=5 // pred_fallthru
      _
    %p124 = scmp.lt.s32.totalorder %s9, 2
    // Predicated region
    $region21: #{_lambda_.11} parent=5 // pred_check
      %p125 = pneg %p124
    $region22: #{_lambda_.11} parent=5 // pred_check_branch
      %127 = sbr.rel (%p125) target = $region24
    $region23: #{_lambda_.11} parent=5 // pred_region
      // Predicated region
      $region25: #{_lambda_.11} parent=23 // pred_check
        %p128 = pneg %p29
      $region26: #{_lambda_.11} parent=23 // pred_check_branch
        %130 = sbr.rel (%p128) target = $region28
      $region27: #{_lambda_.11} parent=23 // pred_region
        %s131 = smul.u32 2, %s9
        %p132 = scmp.lt.s32.totalorder %s131, 3
        %s133 = scalar_select %p132, %s131, 3
        %s134 = smul.addr %s133, 4
        %s135 = scalar_lea.vmem %s0, %s134
        %s136 = smul.u32 2, %s9
      $region28: #{_lambda_.11} parent=23 // pred_fallthru
        _
    $region24: #{_lambda_.11} parent=5 // pred_fallthru
      _
    %p137 = scmp.le.s32.totalorder 1, %s9
    %p138 = scmp.lt.s32.totalorder %s9, 3
    %p139 = pnand %p137, %p138
    %p140 = pneg %p139
    // Predicated region
    $region29: #{_lambda_.11} parent=5 // pred_check
      _
    $region30: #{_lambda_.11} parent=5 // pred_check_branch
      %142 = sbr.rel (%p139) target = $region32
    $region31: #{_lambda_.11} parent=5 // pred_region
      %s143 = ssub.s32 %s9, 1
      %s144 = smul.u32 2, %s14
      %p145 = scmp.lt.s32.totalorder %s144, 3
      %s146 = scalar_select %p145, %s144, 3
      %s147 = smul.addr %s146, 4
      %s148 = scalar_lea.vmem %s0, %s147
      %p149 = pneg %p35
      %p150 = pneg %p32
      %p151 = pneg %p56
      %p152 = pneg %p53
      %p153 = pneg %p77
      %p154 = pneg %p74
      %p155 = pneg %p103
      %p156 = pneg %p100
      %s157 = smul.u32 2, %s14
      %p158 = scmp.lt.s32.totalorder %s157, 3
      %s159 = scalar_select %p158, %s157, 3
      %s160 = smul.addr %s159, 4
      %s161 = scalar_lea.vmem %s3, %s160
      %s162 = smul.u32 2, %s14
      %p163 = scmp.lt.s32.totalorder %s162, 3
      %s164 = scalar_select %p163, %s162, 3
      %s165 = smul.addr %s164, 4
      %s166 = scalar_lea.vmem %s0, %s165
      %s167 = smul.u32 2, %s14
      %s168 = smul.u32 2, %s14
      %p169 = scmp.lt.s32.totalorder %s168, 3
      %s170 = scalar_select %p169, %s168, 3
      %s171 = smul.addr %s170, 4
      %s172 = scalar_lea.vmem %s3, %s171
      %s173 = smul.u32 2, %s14
      %v175 = vld [vmem:[%s166] sm:$0xf]
      %v176 = vld [vmem:[%s166 + $0x4] sm:$0xf]
      %v177 = vld [vmem:[%s1] sm:$0xf]
      %v178 = vld [vmem:[%s1 + $0x4] sm:$0xf]
      %v179 = vld [vmem:[%s1 + $0x8] sm:$0xf]
      %v180 = vld [vmem:[%s1 + $0xc] sm:$0xf]
      %v181 = vld [vmem:[%s1 + $0x10] sm:$0xf]
      %v182 = vld [vmem:[%s1 + $0x14] sm:$0xf]
      %v183 = vld [vmem:[%s1 + $0x18] sm:$0xf]
      %v184 = vld [vmem:[%s1 + $0x1c] sm:$0xf]
      %v185 = vld [vmem:[%s1 + $0x20] sm:$0xf]
      %v186 = vld [vmem:[%s1 + $0x24] sm:$0xf]
      %v187 = vld [vmem:[%s1 + $0x28] sm:$0xf]
      %v188 = vld [vmem:[%s1 + $0x2c] sm:$0xf]
      %v189 = vld [vmem:[%s1 + $0x30] sm:$0xf]
      %v190 = vld [vmem:[%s1 + $0x34] sm:$0xf]
      %v191 = vld [vmem:[%s1 + $0x38] sm:$0xf]
      %v192 = vld [vmem:[%s1 + $0x3c] sm:$0xf]
      %v193 = vld [vmem:[%s2] sm:$0x1]
      %v195 = vlaneseq
      %v196 = vshrl.u32 %v195, 7
      %v197 = vsub.s32 0, %v196
      %v198 = vrot.slane %v193, %v197
      %v202 = vunpack.c.l.b16 %v175
      %v203 = vunpack.c.l.b16 %v176
      %v204 = vpack.c.b16 %v203, %v202
      %v222 = vunpack.c.l.b16 %v177
      %v223 = vunpack.c.l.b16 %v178
      %v224 = vunpack.c.l.b16 %v179
      %v225 = vunpack.c.l.b16 %v180
      %v226 = vunpack.c.l.b16 %v181
      %v227 = vunpack.c.l.b16 %v182
      %v228 = vunpack.c.l.b16 %v183
      %v229 = vunpack.c.l.b16 %v184
      %v230 = vunpack.c.l.b16 %v185
      %v231 = vunpack.c.l.b16 %v186
      %v232 = vunpack.c.l.b16 %v187
      %v233 = vunpack.c.l.b16 %v188
      %v234 = vunpack.c.l.b16 %v189
      %v235 = vunpack.c.l.b16 %v190
      %v236 = vunpack.c.l.b16 %v191
      %v237 = vunpack.c.l.b16 %v192
      %v238 = vpack.c.b16 %v223, %v222
      %v239 = vpack.c.b16 %v225, %v224
      %v240 = vpack.c.b16 %v227, %v226
      %v241 = vpack.c.b16 %v229, %v228
      %v242 = vpack.c.b16 %v231, %v230
      %v243 = vpack.c.b16 %v233, %v232
      %v244 = vpack.c.b16 %v235, %v234
      %v245 = vpack.c.b16 %v237, %v236
      %254 = vmatprep.subr.bf16.mxu0 0
      %255 = vmatpush1.bf16.msra.mxu0 %v238
      %256 = vmatprep.subr.bf16.mxu0 0
      %257 = vmatpush1.bf16.msra.mxu0 %v239
      %258 = vmatprep.subr.bf16.mxu0 0
      %259 = vmatpush1.bf16.msra.mxu0 %v240
      %260 = vmatprep.subr.bf16.mxu0 0
      %261 = vmatpush1.bf16.msra.mxu0 %v241
      %262 = vmatprep.subr.bf16.mxu0 0
      %263 = vmatpush1.bf16.msra.mxu0 %v242
      %264 = vmatprep.subr.bf16.mxu0 0
      %265 = vmatpush1.bf16.msra.mxu0 %v243
      %266 = vmatprep.subr.bf16.mxu0 0
      %267 = vmatpush1.bf16.msra.mxu0 %v244
      %268 = vmatprep.subr.bf16.mxu0 0
      %269 = vmatpush1.bf16.msra.mxu0 %v245
      %270 = vmatprep.subr.bf16.mxu0 0
      %271 = vmatpush1.bf16.msra.mxu0 0
      %272 = vmatprep.subr.bf16.mxu0 0
      %273 = vmatpush1.bf16.msra.mxu0 0
      %274 = vmatprep.subr.bf16.mxu0 0
      %275 = vmatpush1.bf16.msra.mxu0 0
      %276 = vmatprep.subr.bf16.mxu0 0
      %277 = vmatpush1.bf16.msra.mxu0 0
      %278 = vmatprep.subr.bf16.mxu0 0
      %279 = vmatpush1.bf16.msra.mxu0 0
      %280 = vmatprep.subr.bf16.mxu0 0
      %281 = vmatpush1.bf16.msra.mxu0 0
      %282 = vmatprep.subr.bf16.mxu0 0
      %283 = vmatpush1.bf16.msra.mxu0 0
      %284 = vmatprep.subr.bf16.mxu0 0
      %285 = vmatpush1.bf16.msra.mxu0 0
      %286 = vmatprep.mubr.bf16.mxu0 0
      %287 = vmatmul.mubr.bf16.gmra.mrb[0].mxu0 %v204
      %v288 = vpop.f32.mrb[0].mxu0
      %v289 = vadd.f32 %v198, %v288
      %v290 = vpop.f32.mrb[0].mxu0
      %v291 = vpop.f32.mrb[0].mxu0
      %v292 = vadd.f32 %v198, %v291
      %v293 = vpop.f32.mrb[0].mxu0
      %294 = vdwg.mxu0
      %v295 = vmax.f32 %v289, 0.0
      %v296 = vmax.f32 %v292, 0.0
      %v297 = vpack.c.bf16 %v296, %v295
      %v299 = vunpack.c.l.b16 %v297
      %v300 = vunpack.c.h.b16 %v297
      %v301 = vpack.c.b16 %v299, %v299
      %v302 = vpack.c.b16 %v300, %v300
      %305 = vst [vmem:[%s172] sm:$0xf] %v301
      %306 = vst [vmem:[%s172 + $0x4] sm:$0xf] %v302
      %s307 = smul.u32 2, %s14
      %p308 = scmp.lt.s32.totalorder %s307, 3
      %s309 = scalar_select %p308, %s307, 3
      %s310 = smul.addr %s309, 4
      %s311 = scalar_lea.vmem %s3, %s310
      // Predicated region
      $region33: #{_lambda_.11} parent=31 // pred_check
        %p312 = pneg %p100
      $region34: #{_lambda_.11} parent=31 // pred_check_branch
        %314 = sbr.rel (%p312) target = $region36
      $region35: #{_lambda_.11} parent=31 // pred_region
        %s315 = smul.u32 2, %s14
      $region36: #{_lambda_.11} parent=31 // pred_fallthru
        _
    $region32: #{_lambda_.11} parent=5 // pred_fallthru
      _
    %p316 = scmp.le.s32.totalorder 2, %s9
    // Predicated region
    $region37: #{_lambda_.11} parent=5 // pred_check
      %p317 = pneg %p316
    $region38: #{_lambda_.11} parent=5 // pred_check_branch
      %319 = sbr.rel (%p317) target = $region40
    $region39: #{_lambda_.11} parent=5 // pred_region
      %s320 = ssub.s32 %s9, 2
      // Predicated region
      $region41: #{_lambda_.11} parent=39 // pred_check
        %p321 = pneg %p106
      $region42: #{_lambda_.11} parent=39 // pred_check_branch
        %323 = sbr.rel (%p321) target = $region44
      $region43: #{_lambda_.11} parent=39 // pred_region
        %s324 = smul.u32 2, %s15
        %p325 = scmp.lt.s32.totalorder %s324, 3
        %s326 = scalar_select %p325, %s324, 3
        %s327 = smul.addr %s326, 4
        %s328 = scalar_lea.vmem %s3, %s327
      $region44: #{_lambda_.11} parent=39 // pred_fallthru
        _
    $region40: #{_lambda_.11} parent=5 // pred_fallthru
      _
  $region6: #{_lambda_.11} parent=0 // loop_footer
    %s13 = sadd.s32 1, %s9
  $region7: #{_lambda_.11} parent=0 // loop_footer_branch
    %8 = sbr.rel target = $region3
  $region8: #{_lambda_.11} parent=0 // loop_exit
    _

// kernel: _lambda_.12
$region0: #{_lambda_.12}
  #allocation0 [shape = 'u32[]', space=smem, size = 0x4, offset = 0x4, fixed_abs, tag = 'smem constant byte address 0x4 - core index']
  #allocation1 [shape = 'u32[144,128]{1,0:T(1,128)}', space=vmem, size = 0x12000, scoped, tag = 'internal scratch']
  %s0 = inlined_call_operand.vmem [shape: bf16[32,128], index: 0, kind: input, shape index: {}]
  %s1 = inlined_call_operand.vmem [shape: bf16[128,128], index: 1, kind: input, shape index: {}]
  %s2 = inlined_call_operand.vmem [shape: f32[1,128], index: 2, kind: input, shape index: {}]
  %s3 = inlined_call_operand.vmem [shape: bf16[32,128], index: 3, kind: output, shape index: {}]
  %s4 = sld [smem:[#allocation0]]
  $region45: #{_lambda_.12} parent=0
    _
  %s6 = ssub.s32 1, %s4
  %s7 = scalar_select 0, %s6, %s4
  loop: start=0, step=1, limit=4
  $region2: #{_lambda_.12} parent=0 // loop_pre_header
    _
  $region3: #{_lambda_.12} parent=0 // loop_header
    %s9 = sphi 0, %s13
    %p10 = scmp.ge.s32.totalorder %s9, 4
    %s19 = sphi 0, %s21
    %s22 = sphi 0, %s19
    %s23 = sphi 0, %s22
    %s39 = sphi 0, %s23
    %s43 = sphi 0, %s43
    %s45 = sphi 0, %s43
    %s46 = sphi 0, %s45
    %s60 = sphi 0, %s46
    %s64 = sphi 0, %s64
    %s66 = sphi 0, %s64
    %s67 = sphi 0, %s66
    %s81 = sphi 0, %s67
    %s87 = sphi 0, %s89
    %s90 = sphi 0, %s87
    %s91 = sphi 0, %s90
    %s107 = sphi 0, %s91
  $region4: #{_lambda_.12} parent=0 // loop_header_branch
    %12 = sbr.rel (%p10) target = $region8
  $region5: #{_lambda_.12} parent=0 // loop_body
    %s14 = ssub.s32 %s9, 1
    %s15 = ssub.s32 %s9, 2
    %s16 = sadd.s32 %s9, 1
    %s17 = ssub.s32 %s9, %s16
    %p18 = scmp.eq.s32.totalorder %s17, 0
    %s20 = sadd.s32 %s19, 1
    %s21 = scalar_select %p18, %s19, %s20
    %p24 = pneg %p18
    %p25 = scmp.eq.s32.totalorder %s9, 1
    %p26 = por %p24, %p25
    %p27 = scmp.ne.s32.totalorder %s19, %s22
    %p28 = scmp.eq.s32.totalorder %s9, 0
    %p29 = por %p27, %p28
    %p30 = scmp.ne.s32.totalorder %s19, %s22
    %p31 = scmp.eq.s32.totalorder %s14, 1
    %p32 = por %p30, %p31
    %p33 = scmp.ne.s32.totalorder %s22, %s23
    %p34 = scmp.eq.s32.totalorder %s14, 0
    %p35 = por %p33, %p34
    %p36 = scmp.ne.s32.totalorder %s22, %s23
    %p37 = scmp.eq.s32.totalorder %s15, 1
    %p38 = por %p36, %p37
    %p40 = scmp.ne.s32.totalorder %s23, %s39
    %p41 = scmp.eq.s32.totalorder %s15, 0
    %p42 = por %p40, %p41
    %s44 = sadd.s32 %s43, 1
    %p47 = scmp.eq.s32.totalorder %s9, 1
    %p48 = scmp.ne.s32.totalorder %s43, %s45
    %p49 = scmp.eq.s32.totalorder %s9, 0
    %p50 = por %p48, %p49
    %p51 = scmp.ne.s32.totalorder %s43, %s45
    %p52 = scmp.eq.s32.totalorder %s14, 1
    %p53 = por %p51, %p52
    %p54 = scmp.ne.s32.totalorder %s45, %s46
    %p55 = scmp.eq.s32.totalorder %s14, 0
    %p56 = por %p54, %p55
    %p57 = scmp.ne.s32.totalorder %s45, %s46
    %p58 = scmp.eq.s32.totalorder %s15, 1
    %p59 = por %p57, %p58
    %p61 = scmp.ne.s32.totalorder %s46, %s60
    %p62 = scmp.eq.s32.totalorder %s15, 0
    %p63 = por %p61, %p62
    %s65 = sadd.s32 %s64, 1
    %p68 = scmp.eq.s32.totalorder %s9, 1
    %p69 = scmp.ne.s32.totalorder %s64, %s66
    %p70 = scmp.eq.s32.totalorder %s9, 0
    %p71 = por %p69, %p70
    %p72 = scmp.ne.s32.totalorder %s64, %s66
    %p73 = scmp.eq.s32.totalorder %s14, 1
    %p74 = por %p72, %p73
    %p75 = scmp.ne.s32.totalorder %s66, %s67
    %p76 = scmp.eq.s32.totalorder %s14, 0
    %p77 = por %p75, %p76
    %p78 = scmp.ne.s32.totalorder %s66, %s67
    %p79 = scmp.eq.s32.totalorder %s15, 1
    %p80 = por %p78, %p79
    %p82 = scmp.ne.s32.totalorder %s67, %s81
    %p83 = scmp.eq.s32.totalorder %s15, 0
    %p84 = por %p82, %p83
    %s85 = ssub.s32 %s9, %s16
    %p86 = scmp.eq.s32.totalorder %s85, 0
    %s88 = sadd.s32 %s87, 1
    %s89 = scalar_select %p86, %s87, %s88
    %p92 = pneg %p86
    %p93 = scmp.eq.s32.totalorder %s9, 1
    %p94 = por %p92, %p93
    %p95 = scmp.ne.s32.totalorder %s87, %s90
    %p96 = scmp.eq.s32.totalorder %s9, 0
    %p97 = por %p95, %p96
    %p98 = scmp.ne.s32.totalorder %s87, %s90
    %p99 = scmp.eq.s32.totalorder %s14, 1
    %p100 = por %p98, %p99
    %p101 = scmp.ne.s32.totalorder %s90, %s91
    %p102 = scmp.eq.s32.totalorder %s14, 0
    %p103 = por %p101, %p102
    %p104 = scmp.ne.s32.totalorder %s90, %s91
    %p105 = scmp.eq.s32.totalorder %s15, 1
    %p106 = por %p104, %p105
    %p108 = scmp.ne.s32.totalorder %s91, %s107
    %p109 = scmp.eq.s32.totalorder %s15, 0
    %p110 = por %p108, %p109
    %p111 = scmp.le.s32.totalorder 1, %s9
    %p112 = scmp.lt.s32.totalorder %s9, 3
    %p113 = pnand %p111, %p112
    %p114 = pneg %p113
    // Predicated region
    $region9: #{_lambda_.12} parent=5 // pred_check
      _
    $region10: #{_lambda_.12} parent=5 // pred_check_branch
      %116 = sbr.rel (%p113) target = $region12
    $region11: #{_lambda_.12} parent=5 // pred_region
      %s117 = ssub.s32 %s9, 1
      // Predicated region
      $region13: #{_lambda_.12} parent=11 // pred_check
        %p118 = pneg %p56
      $region14: #{_lambda_.12} parent=11 // pred_check_branch
        %120 = sbr.rel (%p118) target = $region16
      $region15: #{_lambda_.12} parent=11 // pred_region
        _
      $region16: #{_lambda_.12} parent=11 // pred_fallthru
        _
      // Predicated region
      $region17: #{_lambda_.12} parent=11 // pred_check
        %p121 = pneg %p77
      $region18: #{_lambda_.12} parent=11 // pred_check_branch
        %123 = sbr.rel (%p121) target = $region20
      $region19: #{_lambda_.12} parent=11 // pred_region
        _
      $region20: #{_lambda_.12} parent=11 // pred_fallthru
        _
    $region12: #{_lambda_.12} parent=5 // pred_fallthru
      _
    %p124 = scmp.lt.s32.totalorder %s9, 2
    // Predicated region
    $region21: #{_lambda_.12} parent=5 // pred_check
      %p125 = pneg %p124
    $region22: #{_lambda_.12} parent=5 // pred_check_branch
      %127 = sbr.rel (%p125) target = $region24
    $region23: #{_lambda_.12} parent=5 // pred_region
      // Predicated region
      $region25: #{_lambda_.12} parent=23 // pred_check
        %p128 = pneg %p29
      $region26: #{_lambda_.12} parent=23 // pred_check_branch
        %130 = sbr.rel (%p128) target = $region28
      $region27: #{_lambda_.12} parent=23 // pred_region
        %s131 = smul.u32 2, %s9
        %p132 = scmp.lt.s32.totalorder %s131, 3
        %s133 = scalar_select %p132, %s131, 3
        %s134 = smul.addr %s133, 4
        %s135 = scalar_lea.vmem %s0, %s134
        %s136 = smul.u32 2, %s9
      $region28: #{_lambda_.12} parent=23 // pred_fallthru
        _
    $region24: #{_lambda_.12} parent=5 // pred_fallthru
      _
    %p137 = scmp.le.s32.totalorder 1, %s9
    %p138 = scmp.lt.s32.totalorder %s9, 3
    %p139 = pnand %p137, %p138
    %p140 = pneg %p139
    // Predicated region
    $region29: #{_lambda_.12} parent=5 // pred_check
      _
    $region30: #{_lambda_.12} parent=5 // pred_check_branch
      %142 = sbr.rel (%p139) target = $region32
    $region31: #{_lambda_.12} parent=5 // pred_region
      %s143 = ssub.s32 %s9, 1
      %s144 = smul.u32 2, %s14
      %p145 = scmp.lt.s32.totalorder %s144, 3
      %s146 = scalar_select %p145, %s144, 3
      %s147 = smul.addr %s146, 4
      %s148 = scalar_lea.vmem %s0, %s147
      %p149 = pneg %p35
      %p150 = pneg %p32
      %p151 = pneg %p56
      %p152 = pneg %p53
      %p153 = pneg %p77
      %p154 = pneg %p74
      %p155 = pneg %p103
      %p156 = pneg %p100
      %s157 = smul.u32 2, %s14
      %p158 = scmp.lt.s32.totalorder %s157, 3
      %s159 = scalar_select %p158, %s157, 3
      %s160 = smul.addr %s159, 4
      %s161 = scalar_lea.vmem %s3, %s160
      %s162 = smul.u32 2, %s14
      %p163 = scmp.lt.s32.totalorder %s162, 3
      %s164 = scalar_select %p163, %s162, 3
      %s165 = smul.addr %s164, 4
      %s166 = scalar_lea.vmem %s0, %s165
      %s167 = smul.u32 2, %s14
      %s168 = smul.u32 2, %s14
      %p169 = scmp.lt.s32.totalorder %s168, 3
      %s170 = scalar_select %p169, %s168, 3
      %s171 = smul.addr %s170, 4
      %s172 = scalar_lea.vmem %s3, %s171
      %s173 = smul.u32 2, %s14
      %v175 = vld [vmem:[%s166] sm:$0xf]
      %v176 = vld [vmem:[%s166 + $0x4] sm:$0xf]
      %v177 = vld [vmem:[%s1] sm:$0xf]
      %v178 = vld [vmem:[%s1 + $0x4] sm:$0xf]
      %v179 = vld [vmem:[%s1 + $0x8] sm:$0xf]
      %v180 = vld [vmem:[%s1 + $0xc] sm:$0xf]
      %v181 = vld [vmem:[%s1 + $0x10] sm:$0xf]
      %v182 = vld [vmem:[%s1 + $0x14] sm:$0xf]
      %v183 = vld [vmem:[%s1 + $0x18] sm:$0xf]
      %v184 = vld [vmem:[%s1 + $0x1c] sm:$0xf]
      %v185 = vld [vmem:[%s1 + $0x20] sm:$0xf]
      %v186 = vld [vmem:[%s1 + $0x24] sm:$0xf]
      %v187 = vld [vmem:[%s1 + $0x28] sm:$0xf]
      %v188 = vld [vmem:[%s1 + $0x2c] sm:$0xf]
      %v189 = vld [vmem:[%s1 + $0x30] sm:$0xf]
      %v190 = vld [vmem:[%s1 + $0x34] sm:$0xf]
      %v191 = vld [vmem:[%s1 + $0x38] sm:$0xf]
      %v192 = vld [vmem:[%s1 + $0x3c] sm:$0xf]
      %v193 = vld [vmem:[%s2] sm:$0x1]
      %v195 = vlaneseq
      %v196 = vshrl.u32 %v195, 7
      %v197 = vsub.s32 0, %v196
      %v198 = vrot.slane %v193, %v197
      %v202 = vunpack.c.l.b16 %v175
      %v203 = vunpack.c.l.b16 %v176
      %v204 = vpack.c.b16 %v203, %v202
      %v222 = vunpack.c.l.b16 %v177
      %v223 = vunpack.c.l.b16 %v178
      %v224 = vunpack.c.l.b16 %v179
      %v225 = vunpack.c.l.b16 %v180
      %v226 = vunpack.c.l.b16 %v181
      %v227 = vunpack.c.l.b16 %v182
      %v228 = vunpack.c.l.b16 %v183
      %v229 = vunpack.c.l.b16 %v184
      %v230 = vunpack.c.l.b16 %v185
      %v231 = vunpack.c.l.b16 %v186
      %v232 = vunpack.c.l.b16 %v187
      %v233 = vunpack.c.l.b16 %v188
      %v234 = vunpack.c.l.b16 %v189
      %v235 = vunpack.c.l.b16 %v190
      %v236 = vunpack.c.l.b16 %v191
      %v237 = vunpack.c.l.b16 %v192
      %v238 = vpack.c.b16 %v223, %v222
      %v239 = vpack.c.b16 %v225, %v224
      %v240 = vpack.c.b16 %v227, %v226
      %v241 = vpack.c.b16 %v229, %v228
      %v242 = vpack.c.b16 %v231, %v230
      %v243 = vpack.c.b16 %v233, %v232
      %v244 = vpack.c.b16 %v235, %v234
      %v245 = vpack.c.b16 %v237, %v236
      %254 = vmatprep.subr.bf16.mxu0 0
      %255 = vmatpush1.bf16.msra.mxu0 %v238
      %256 = vmatprep.subr.bf16.mxu0 0
      %257 = vmatpush1.bf16.msra.mxu0 %v239
      %258 = vmatprep.subr.bf16.mxu0 0
      %259 = vmatpush1.bf16.msra.mxu0 %v240
      %260 = vmatprep.subr.bf16.mxu0 0
      %261 = vmatpush1.bf16.msra.mxu0 %v241
      %262 = vmatprep.subr.bf16.mxu0 0
      %263 = vmatpush1.bf16.msra.mxu0 %v242
      %264 = vmatprep.subr.bf16.mxu0 0
      %265 = vmatpush1.bf16.msra.mxu0 %v243
      %266 = vmatprep.subr.bf16.mxu0 0
      %267 = vmatpush1.bf16.msra.mxu0 %v244
      %268 = vmatprep.subr.bf16.mxu0 0
      %269 = vmatpush1.bf16.msra.mxu0 %v245
      %270 = vmatprep.subr.bf16.mxu0 0
      %271 = vmatpush1.bf16.msra.mxu0 0
      %272 = vmatprep.subr.bf16.mxu0 0
      %273 = vmatpush1.bf16.msra.mxu0 0
      %274 = vmatprep.subr.bf16.mxu0 0
      %275 = vmatpush1.bf16.msra.mxu0 0
      %276 = vmatprep.subr.bf16.mxu0 0
      %277 = vmatpush1.bf16.msra.mxu0 0
      %278 = vmatprep.subr.bf16.mxu0 0
      %279 = vmatpush1.bf16.msra.mxu0 0
      %280 = vmatprep.subr.bf16.mxu0 0
      %281 = vmatpush1.bf16.msra.mxu0 0
      %282 = vmatprep.subr.bf16.mxu0 0
      %283 = vmatpush1.bf16.msra.mxu0 0
      %284 = vmatprep.subr.bf16.mxu0 0
      %285 = vmatpush1.bf16.msra.mxu0 0
      %286 = vmatprep.mubr.bf16.mxu0 0
      %287 = vmatmul.mubr.bf16.gmra.mrb[0].mxu0 %v204
      %v288 = vpop.f32.mrb[0].mxu0
      %v289 = vadd.f32 %v198, %v288
      %v290 = vpop.f32.mrb[0].mxu0
      %v291 = vpop.f32.mrb[0].mxu0
      %v292 = vadd.f32 %v198, %v291
      %v293 = vpop.f32.mrb[0].mxu0
      %294 = vdwg.mxu0
      %v295 = vpack.c.bf16 %v292, %v289
      %v297 = vunpack.c.l.b16 %v295
      %v298 = vunpack.c.h.b16 %v295
      %v299 = vpack.c.b16 %v297, %v297
      %v300 = vpack.c.b16 %v298, %v298
      %303 = vst [vmem:[%s172] sm:$0xf] %v299
      %304 = vst [vmem:[%s172 + $0x4] sm:$0xf] %v300
      %s305 = smul.u32 2, %s14
      %p306 = scmp.lt.s32.totalorder %s305, 3
      %s307 = scalar_select %p306, %s305, 3
      %s308 = smul.addr %s307, 4
      %s309 = scalar_lea.vmem %s3, %s308
      // Predicated region
      $region33: #{_lambda_.12} parent=31 // pred_check
        %p310 = pneg %p100
      $region34: #{_lambda_.12} parent=31 // pred_check_branch
        %312 = sbr.rel (%p310) target = $region36
      $region35: #{_lambda_.12} parent=31 // pred_region
        %s313 = smul.u32 2, %s14
      $region36: #{_lambda_.12} parent=31 // pred_fallthru
        _
    $region32: #{_lambda_.12} parent=5 // pred_fallthru
      _
    %p314 = scmp.le.s32.totalorder 2, %s9
    // Predicated region
    $region37: #{_lambda_.12} parent=5 // pred_check
      %p315 = pneg %p314
    $region38: #{_lambda_.12} parent=5 // pred_check_branch
      %317 = sbr.rel (%p315) target = $region40
    $region39: #{_lambda_.12} parent=5 // pred_region
      %s318 = ssub.s32 %s9, 2
      // Predicated region
      $region41: #{_lambda_.12} parent=39 // pred_check
        %p319 = pneg %p106
      $region42: #{_lambda_.12} parent=39 // pred_check_branch
        %321 = sbr.rel (%p319) target = $region44
      $region43: #{_lambda_.12} parent=39 // pred_region
        %s322 = smul.u32 2, %s15
        %p323 = scmp.lt.s32.totalorder %s322, 3
        %s324 = scalar_select %p323, %s322, 3
        %s325 = smul.addr %s324, 4
        %s326 = scalar_lea.vmem %s3, %s325
      $region44: #{_lambda_.12} parent=39 // pred_fallthru
        _
    $region40: #{_lambda_.12} parent=5 // pred_fallthru
      _
  $region6: #{_lambda_.12} parent=0 // loop_footer
    %s13 = sadd.s32 1, %s9
  $region7: #{_lambda_.12} parent=0 // loop_footer_branch
    %8 = sbr.rel target = $region3
  $region8: #{_lambda_.12} parent=0 // loop_exit
    _

// kernel: _lambda_.13
$region0: #{_lambda_.13}
  #allocation0 [shape = 'u32[]', space=smem, size = 0x4, offset = 0x4, fixed_abs, tag = 'smem constant byte address 0x4 - core index']
  #allocation1 [shape = 'u32[144,128]{1,0:T(1,128)}', space=vmem, size = 0x12000, scoped, tag = 'internal scratch']
  %s0 = inlined_call_operand.vmem [shape: bf16[32,256], index: 0, kind: input, shape index: {}]
  %s1 = inlined_call_operand.vmem [shape: bf16[256,128], index: 1, kind: input, shape index: {}]
  %s2 = inlined_call_operand.vmem [shape: f32[1,128], index: 2, kind: input, shape index: {}]
  %s3 = inlined_call_operand.vmem [shape: bf16[32,128], index: 3, kind: input, shape index: {}]
  %s4 = inlined_call_operand.vmem [shape: bf16[32,128], index: 4, kind: output, shape index: {}]
  %s5 = sld [smem:[#allocation0]]
  $region49: #{_lambda_.13} parent=0
    _
  %s7 = ssub.s32 1, %s5
  %s8 = scalar_select 0, %s7, %s5
  loop: start=0, step=1, limit=4
  $region2: #{_lambda_.13} parent=0 // loop_pre_header
    _
  $region3: #{_lambda_.13} parent=0 // loop_header
    %s10 = sphi 0, %s14
    %p11 = scmp.ge.s32.totalorder %s10, 4
    %s20 = sphi 0, %s22
    %s23 = sphi 0, %s20
    %s24 = sphi 0, %s23
    %s40 = sphi 0, %s24
    %s44 = sphi 0, %s44
    %s46 = sphi 0, %s44
    %s47 = sphi 0, %s46
    %s61 = sphi 0, %s47
    %s65 = sphi 0, %s65
    %s67 = sphi 0, %s65
    %s68 = sphi 0, %s67
    %s82 = sphi 0, %s68
    %s88 = sphi 0, %s90
    %s91 = sphi 0, %s88
    %s92 = sphi 0, %s91
    %s108 = sphi 0, %s92
    %s114 = sphi 0, %s116
    %s117 = sphi 0, %s114
    %s118 = sphi 0, %s117
    %s134 = sphi 0, %s118
  $region4: #{_lambda_.13} parent=0 // loop_header_branch
    %13 = sbr.rel (%p11) target = $region8
  $region5: #{_lambda_.13} parent=0 // loop_body
    %s15 = ssub.s32 %s10, 1
    %s16 = ssub.s32 %s10, 2
    %s17 = sadd.s32 %s10, 1
    %s18 = ssub.s32 %s10, %s17
    %p19 = scmp.eq.s32.totalorder %s18, 0
    %s21 = sadd.s32 %s20, 1
    %s22 = scalar_select %p19, %s20, %s21
    %p25 = pneg %p19
    %p26 = scmp.eq.s32.totalorder %s10, 1
    %p27 = por %p25, %p26
    %p28 = scmp.ne.s32.totalorder %s20, %s23
    %p29 = scmp.eq.s32.totalorder %s10, 0
    %p30 = por %p28, %p29
    %p31 = scmp.ne.s32.totalorder %s20, %s23
    %p32 = scmp.eq.s32.totalorder %s15, 1
    %p33 = por %p31, %p32
    %p34 = scmp.ne.s32.totalorder %s23, %s24
    %p35 = scmp.eq.s32.totalorder %s15, 0
    %p36 = por %p34, %p35
    %p37 = scmp.ne.s32.totalorder %s23, %s24
    %p38 = scmp.eq.s32.totalorder %s16, 1
    %p39 = por %p37, %p38
    %p41 = scmp.ne.s32.totalorder %s24, %s40
    %p42 = scmp.eq.s32.totalorder %s16, 0
    %p43 = por %p41, %p42
    %s45 = sadd.s32 %s44, 1
    %p48 = scmp.eq.s32.totalorder %s10, 1
    %p49 = scmp.ne.s32.totalorder %s44, %s46
    %p50 = scmp.eq.s32.totalorder %s10, 0
    %p51 = por %p49, %p50
    %p52 = scmp.ne.s32.totalorder %s44, %s46
    %p53 = scmp.eq.s32.totalorder %s15, 1
    %p54 = por %p52, %p53
    %p55 = scmp.ne.s32.totalorder %s46, %s47
    %p56 = scmp.eq.s32.totalorder %s15, 0
    %p57 = por %p55, %p56
    %p58 = scmp.ne.s32.totalorder %s46, %s47
    %p59 = scmp.eq.s32.totalorder %s16, 1
    %p60 = por %p58, %p59
    %p62 = scmp.ne.s32.totalorder %s47, %s61
    %p63 = scmp.eq.s32.totalorder %s16, 0
    %p64 = por %p62, %p63
    %s66 = sadd.s32 %s65, 1
    %p69 = scmp.eq.s32.totalorder %s10, 1
    %p70 = scmp.ne.s32.totalorder %s65, %s67
    %p71 = scmp.eq.s32.totalorder %s10, 0
    %p72 = por %p70, %p71
    %p73 = scmp.ne.s32.totalorder %s65, %s67
    %p74 = scmp.eq.s32.totalorder %s15, 1
    %p75 = por %p73, %p74
    %p76 = scmp.ne.s32.totalorder %s67, %s68
    %p77 = scmp.eq.s32.totalorder %s15, 0
    %p78 = por %p76, %p77
    %p79 = scmp.ne.s32.totalorder %s67, %s68
    %p80 = scmp.eq.s32.totalorder %s16, 1
    %p81 = por %p79, %p80
    %p83 = scmp.ne.s32.totalorder %s68, %s82
    %p84 = scmp.eq.s32.totalorder %s16, 0
    %p85 = por %p83, %p84
    %s86 = ssub.s32 %s10, %s17
    %p87 = scmp.eq.s32.totalorder %s86, 0
    %s89 = sadd.s32 %s88, 1
    %s90 = scalar_select %p87, %s88, %s89
    %p93 = pneg %p87
    %p94 = scmp.eq.s32.totalorder %s10, 1
    %p95 = por %p93, %p94
    %p96 = scmp.ne.s32.totalorder %s88, %s91
    %p97 = scmp.eq.s32.totalorder %s10, 0
    %p98 = por %p96, %p97
    %p99 = scmp.ne.s32.totalorder %s88, %s91
    %p100 = scmp.eq.s32.totalorder %s15, 1
    %p101 = por %p99, %p100
    %p102 = scmp.ne.s32.totalorder %s91, %s92
    %p103 = scmp.eq.s32.totalorder %s15, 0
    %p104 = por %p102, %p103
    %p105 = scmp.ne.s32.totalorder %s91, %s92
    %p106 = scmp.eq.s32.totalorder %s16, 1
    %p107 = por %p105, %p106
    %p109 = scmp.ne.s32.totalorder %s92, %s108
    %p110 = scmp.eq.s32.totalorder %s16, 0
    %p111 = por %p109, %p110
    %s112 = ssub.s32 %s10, %s17
    %p113 = scmp.eq.s32.totalorder %s112, 0
    %s115 = sadd.s32 %s114, 1
    %s116 = scalar_select %p113, %s114, %s115
    %p119 = pneg %p113
    %p120 = scmp.eq.s32.totalorder %s10, 1
    %p121 = por %p119, %p120
    %p122 = scmp.ne.s32.totalorder %s114, %s117
    %p123 = scmp.eq.s32.totalorder %s10, 0
    %p124 = por %p122, %p123
    %p125 = scmp.ne.s32.totalorder %s114, %s117
    %p126 = scmp.eq.s32.totalorder %s15, 1
    %p127 = por %p125, %p126
    %p128 = scmp.ne.s32.totalorder %s117, %s118
    %p129 = scmp.eq.s32.totalorder %s15, 0
    %p130 = por %p128, %p129
    %p131 = scmp.ne.s32.totalorder %s117, %s118
    %p132 = scmp.eq.s32.totalorder %s16, 1
    %p133 = por %p131, %p132
    %p135 = scmp.ne.s32.totalorder %s118, %s134
    %p136 = scmp.eq.s32.totalorder %s16, 0
    %p137 = por %p135, %p136
    %p138 = scmp.le.s32.totalorder 1, %s10
    %p139 = scmp.lt.s32.totalorder %s10, 3
    %p140 = pnand %p138, %p139
    %p141 = pneg %p140
    // Predicated region
    $region9: #{_lambda_.13} parent=5 // pred_check
      _
    $region10: #{_lambda_.13} parent=5 // pred_check_branch
      %143 = sbr.rel (%p140) target = $region12
    $region11: #{_lambda_.13} parent=5 // pred_region
      %s144 = ssub.s32 %s10, 1
      // Predicated region
      $region13: #{_lambda_.13} parent=11 // pred_check
        %p145 = pneg %p57
      $region14: #{_lambda_.13} parent=11 // pred_check_branch
        %147 = sbr.rel (%p145) target = $region16
      $region15: #{_lambda_.13} parent=11 // pred_region
        _
      $region16: #{_lambda_.13} parent=11 // pred_fallthru
        _
      // Predicated region
      $region17: #{_lambda_.13} parent=11 // pred_check
        %p148 = pneg %p78
      $region18: #{_lambda_.13} parent=11 // pred_check_branch
        %150 = sbr.rel (%p148) target = $region20
      $region19: #{_lambda_.13} parent=11 // pred_region
        _
      $region20: #{_lambda_.13} parent=11 // pred_fallthru
        _
    $region12: #{_lambda_.13} parent=5 // pred_fallthru
      _
    %p151 = scmp.lt.s32.totalorder %s10, 2
    // Predicated region
    $region21: #{_lambda_.13} parent=5 // pred_check
      %p152 = pneg %p151
    $region22: #{_lambda_.13} parent=5 // pred_check_branch
      %154 = sbr.rel (%p152) target = $region24
    $region23: #{_lambda_.13} parent=5 // pred_region
      // Predicated region
      $region25: #{_lambda_.13} parent=23 // pred_check
        %p155 = pneg %p30
      $region26: #{_lambda_.13} parent=23 // pred_check_branch
        %157 = sbr.rel (%p155) target = $region28
      $region27: #{_lambda_.13} parent=23 // pred_region
        %s158 = smul.u32 2, %s10
        %p159 = scmp.lt.s32.totalorder %s158, 3
        %s160 = scalar_select %p159, %s158, 3
        %s161 = smul.addr %s160, 2
        %s162 = smul.addr %s161, 4
        %s163 = scalar_lea.vmem %s0, %s162
        %s164 = smul.u32 2, %s10
      $region28: #{_lambda_.13} parent=23 // pred_fallthru
        _
      // Predicated region
      $region29: #{_lambda_.13} parent=23 // pred_check
        %p165 = pneg %p98
      $region30: #{_lambda_.13} parent=23 // pred_check_branch
        %167 = sbr.rel (%p165) target = $region32
      $region31: #{_lambda_.13} parent=23 // pred_region
        %s168 = smul.u32 2, %s10
        %p169 = scmp.lt.s32.totalorder %s168, 3
        %s170 = scalar_select %p169, %s168, 3
        %s171 = smul.addr %s170, 4
        %s172 = scalar_lea.vmem %s3, %s171
        %s173 = smul.u32 2, %s10
      $region32: #{_lambda_.13} parent=23 // pred_fallthru
        _
    $region24: #{_lambda_.13} parent=5 // pred_fallthru
      _
    %p174 = scmp.le.s32.totalorder 1, %s10
    %p175 = scmp.lt.s32.totalorder %s10, 3
    %p176 = pnand %p174, %p175
    %p177 = pneg %p176
    // Predicated region
    $region33: #{_lambda_.13} parent=5 // pred_check
      _
    $region34: #{_lambda_.13} parent=5 // pred_check_branch
      %179 = sbr.rel (%p176) target = $region36
    $region35: #{_lambda_.13} parent=5 // pred_region
      %s180 = ssub.s32 %s10, 1
      %s181 = smul.u32 2, %s15
      %p182 = scmp.lt.s32.totalorder %s181, 3
      %s183 = scalar_select %p182, %s181, 3
      %s184 = smul.addr %s183, 2
      %s185 = smul.addr %s184, 4
      %s186 = scalar_lea.vmem %s0, %s185
      %p187 = pneg %p36
      %p188 = pneg %p33
      %p189 = pneg %p57
      %p190 = pneg %p54
      %p191 = pneg %p78
      %p192 = pneg %p75
      %s193 = smul.u32 2, %s15
      %p194 = scmp.lt.s32.totalorder %s193, 3
      %s195 = scalar_select %p194, %s193, 3
      %s196 = smul.addr %s195, 4
      %s197 = scalar_lea.vmem %s3, %s196
      %p198 = pneg %p104
      %p199 = pneg %p101
      %p200 = pneg %p130
      %p201 = pneg %p127
      %s202 = smul.u32 2, %s15
      %p203 = scmp.lt.s32.totalorder %s202, 3
      %s204 = scalar_select %p203, %s202, 3
      %s205 = smul.addr %s204, 4
      %s206 = scalar_lea.vmem %s4, %s205
      %s207 = smul.u32 2, %s15
      %p208 = scmp.lt.s32.totalorder %s207, 3
      %s209 = scalar_select %p208, %s207, 3
      %s210 = smul.addr %s209, 2
      %s211 = smul.addr %s210, 4
      %s212 = scalar_lea.vmem %s0, %s211
      %s213 = smul.u32 2, %s15
      %s214 = smul.u32 2, %s15
      %p215 = scmp.lt.s32.totalorder %s214, 3
      %s216 = scalar_select %p215, %s214, 3
      %s217 = smul.addr %s216, 4
      %s218 = scalar_lea.vmem %s3, %s217
      %s219 = smul.u32 2, %s15
      %s220 = smul.u32 2, %s15
      %p221 = scmp.lt.s32.totalorder %s220, 3
      %s222 = scalar_select %p221, %s220, 3
      %s223 = smul.addr %s222, 4
      %s224 = scalar_lea.vmem %s4, %s223
      %s225 = smul.u32 2, %s15
      %v227 = vld [vmem:[%s212] sm:$0xff]
      %v228 = vld [vmem:[%s212 + $0x8] sm:$0xff]
      %v229 = vld [vmem:[%s1] sm:$0xf]
      %v230 = vld [vmem:[%s1 + $0x4] sm:$0xf]
      %v231 = vld [vmem:[%s1 + $0x8] sm:$0xf]
      %v232 = vld [vmem:[%s1 + $0xc] sm:$0xf]
      %v233 = vld [vmem:[%s1 + $0x10] sm:$0xf]
      %v234 = vld [vmem:[%s1 + $0x14] sm:$0xf]
      %v235 = vld [vmem:[%s1 + $0x18] sm:$0xf]
      %v236 = vld [vmem:[%s1 + $0x1c] sm:$0xf]
      %v237 = vld [vmem:[%s1 + $0x20] sm:$0xf]
      %v238 = vld [vmem:[%s1 + $0x24] sm:$0xf]
      %v239 = vld [vmem:[%s1 + $0x28] sm:$0xf]
      %v240 = vld [vmem:[%s1 + $0x2c] sm:$0xf]
      %v241 = vld [vmem:[%s1 + $0x30] sm:$0xf]
      %v242 = vld [vmem:[%s1 + $0x34] sm:$0xf]
      %v243 = vld [vmem:[%s1 + $0x38] sm:$0xf]
      %v244 = vld [vmem:[%s1 + $0x3c] sm:$0xf]
      %v245 = vld [vmem:[%s1 + $0x40] sm:$0xf]
      %v246 = vld [vmem:[%s1 + $0x44] sm:$0xf]
      %v247 = vld [vmem:[%s1 + $0x48] sm:$0xf]
      %v248 = vld [vmem:[%s1 + $0x4c] sm:$0xf]
      %v249 = vld [vmem:[%s1 + $0x50] sm:$0xf]
      %v250 = vld [vmem:[%s1 + $0x54] sm:$0xf]
      %v251 = vld [vmem:[%s1 + $0x58] sm:$0xf]
      %v252 = vld [vmem:[%s1 + $0x5c] sm:$0xf]
      %v253 = vld [vmem:[%s1 + $0x60] sm:$0xf]
      %v254 = vld [vmem:[%s1 + $0x64] sm:$0xf]
      %v255 = vld [vmem:[%s1 + $0x68] sm:$0xf]
      %v256 = vld [vmem:[%s1 + $0x6c] sm:$0xf]
      %v257 = vld [vmem:[%s1 + $0x70] sm:$0xf]
      %v258 = vld [vmem:[%s1 + $0x74] sm:$0xf]
      %v259 = vld [vmem:[%s1 + $0x78] sm:$0xf]
      %v260 = vld [vmem:[%s1 + $0x7c] sm:$0xf]
      %v261 = vld [vmem:[%s2] sm:$0x1]
      %v263 = vlaneseq
      %v264 = vshrl.u32 %v263, 7
      %v265 = vsub.s32 0, %v264
      %v266 = vrot.slane %v261, %v265
      %v270 = vunpack.c.l.b16 %v227
      %v271 = vunpack.c.h.b16 %v227
      %v272 = vunpack.c.l.b16 %v228
      %v273 = vunpack.c.h.b16 %v228
      %v274 = vpack.c.b16 %v272, %v270
      %v275 = vpack.c.b16 %v273, %v271
      %v310 = vunpack.c.l.b16 %v229
      %v311 = vunpack.c.l.b16 %v230
      %v312 = vunpack.c.l.b16 %v231
      %v313 = vunpack.c.l.b16 %v232
      %v314 = vunpack.c.l.b16 %v233
      %v315 = vunpack.c.l.b16 %v234
      %v316 = vunpack.c.l.b16 %v235
      %v317 = vunpack.c.l.b16 %v236
      %v318 = vunpack.c.l.b16 %v237
      %v319 = vunpack.c.l.b16 %v238
      %v320 = vunpack.c.l.b16 %v239
      %v321 = vunpack.c.l.b16 %v240
      %v322 = vunpack.c.l.b16 %v241
      %v323 = vunpack.c.l.b16 %v242
      %v324 = vunpack.c.l.b16 %v243
      %v325 = vunpack.c.l.b16 %v244
      %v326 = vunpack.c.l.b16 %v245
      %v327 = vunpack.c.l.b16 %v246
      %v328 = vunpack.c.l.b16 %v247
      %v329 = vunpack.c.l.b16 %v248
      %v330 = vunpack.c.l.b16 %v249
      %v331 = vunpack.c.l.b16 %v250
      %v332 = vunpack.c.l.b16 %v251
      %v333 = vunpack.c.l.b16 %v252
      %v334 = vunpack.c.l.b16 %v253
      %v335 = vunpack.c.l.b16 %v254
      %v336 = vunpack.c.l.b16 %v255
      %v337 = vunpack.c.l.b16 %v256
      %v338 = vunpack.c.l.b16 %v257
      %v339 = vunpack.c.l.b16 %v258
      %v340 = vunpack.c.l.b16 %v259
      %v341 = vunpack.c.l.b16 %v260
      %v342 = vpack.c.b16 %v311, %v310
      %v343 = vpack.c.b16 %v313, %v312
      %v344 = vpack.c.b16 %v315, %v314
      %v345 = vpack.c.b16 %v317, %v316
      %v346 = vpack.c.b16 %v319, %v318
      %v347 = vpack.c.b16 %v321, %v320
      %v348 = vpack.c.b16 %v323, %v322
      %v349 = vpack.c.b16 %v325, %v324
      %v350 = vpack.c.b16 %v327, %v326
      %v351 = vpack.c.b16 %v329, %v328
      %v352 = vpack.c.b16 %v331, %v330
      %v353 = vpack.c.b16 %v333, %v332
      %v354 = vpack.c.b16 %v335, %v334
      %v355 = vpack.c.b16 %v337, %v336
      %v356 = vpack.c.b16 %v339, %v338
      %v357 = vpack.c.b16 %v341, %v340
      %374 = vmatprep.subr.bf16.mxu0 0
      %375 = vmatpush1.bf16.msra.mxu0 %v342
      %376 = vmatprep.subr.bf16.mxu0 0
      %377 = vmatpush1.bf16.msra.mxu0 %v343
      %378 = vmatprep.subr.bf16.mxu0 0
      %379 = vmatpush1.bf16.msra.mxu0 %v344
      %380 = vmatprep.subr.bf16.mxu0 0
      %381 = vmatpush1.bf16.msra.mxu0 %v345
      %382 = vmatprep.subr.bf16.mxu0 0
      %383 = vmatpush1.bf16.msra.mxu0 %v346
      %384 = vmatprep.subr.bf16.mxu0 0
      %385 = vmatpush1.bf16.msra.mxu0 %v347
      %386 = vmatprep.subr.bf16.mxu0 0
      %387 = vmatpush1.bf16.msra.mxu0 %v348
      %388 = vmatprep.subr.bf16.mxu0 0
      %389 = vmatpush1.bf16.msra.mxu0 %v349
      %390 = vmatprep.subr.bf16.mxu0 0
      %391 = vmatpush1.bf16.msra.mxu0 %v350
      %392 = vmatprep.subr.bf16.mxu0 0
      %393 = vmatpush1.bf16.msra.mxu0 %v351
      %394 = vmatprep.subr.bf16.mxu0 0
      %395 = vmatpush1.bf16.msra.mxu0 %v352
      %396 = vmatprep.subr.bf16.mxu0 0
      %397 = vmatpush1.bf16.msra.mxu0 %v353
      %398 = vmatprep.subr.bf16.mxu0 0
      %399 = vmatpush1.bf16.msra.mxu0 %v354
      %400 = vmatprep.subr.bf16.mxu0 0
      %401 = vmatpush1.bf16.msra.mxu0 %v355
      %402 = vmatprep.subr.bf16.mxu0 0
      %403 = vmatpush1.bf16.msra.mxu0 %v356
      %404 = vmatprep.subr.bf16.mxu0 0
      %405 = vmatpush1.bf16.msra.mxu0 %v357
      %406 = vmatprep.mubr.bf16.mxu0 %v275
      %407 = vmatmul.mubr.bf16.gmra.mrb[0].mxu0 %v274
      %v408 = vpop.f32.mrb[0].mxu0
      %v409 = vadd.f32 %v266, %v408
      %v410 = vpop.f32.mrb[0].mxu0
      %v411 = vpop.f32.mrb[0].mxu0
      %v412 = vadd.f32 %v266, %v411
      %v413 = vpop.f32.mrb[0].mxu0
      %414 = vdwg.mxu0
      %v415 = vld [vmem:[%s218] sm:$0xf]
      %v416 = vld [vmem:[%s218 + $0x4] sm:$0xf]
      %v417 = vunpack.c.l.bf16 %v415
      %v418 = vunpack.c.l.bf16 %v416
      %v419 = vadd.f32 %v409, %v417
      %v420 = vadd.f32 %v412, %v418
      %v421 = vmax.f32 %v419, 0.0
      %v422 = vmax.f32 %v420, 0.0
      %v423 = vpack.c.bf16 %v422, %v421
      %v425 = vunpack.c.l.b16 %v423
      %v426 = vunpack.c.h.b16 %v423
      %v427 = vpack.c.b16 %v425, %v425
      %v428 = vpack.c.b16 %v426, %v426
      %431 = vst [vmem:[%s224] sm:$0xf] %v427
      %432 = vst [vmem:[%s224 + $0x4] sm:$0xf] %v428
      %s433 = smul.u32 2, %s15
      %p434 = scmp.lt.s32.totalorder %s433, 3
      %s435 = scalar_select %p434, %s433, 3
      %s436 = smul.addr %s435, 4
      %s437 = scalar_lea.vmem %s4, %s436
      // Predicated region
      $region37: #{_lambda_.13} parent=35 // pred_check
        %p438 = pneg %p127
      $region38: #{_lambda_.13} parent=35 // pred_check_branch
        %440 = sbr.rel (%p438) target = $region40
      $region39: #{_lambda_.13} parent=35 // pred_region
        %s441 = smul.u32 2, %s15
      $region40: #{_lambda_.13} parent=35 // pred_fallthru
        _
    $region36: #{_lambda_.13} parent=5 // pred_fallthru
      _
    %p442 = scmp.le.s32.totalorder 2, %s10
    // Predicated region
    $region41: #{_lambda_.13} parent=5 // pred_check
      %p443 = pneg %p442
    $region42: #{_lambda_.13} parent=5 // pred_check_branch
      %445 = sbr.rel (%p443) target = $region44
    $region43: #{_lambda_.13} parent=5 // pred_region
      %s446 = ssub.s32 %s10, 2
      // Predicated region
      $region45: #{_lambda_.13} parent=43 // pred_check
        %p447 = pneg %p133
      $region46: #{_lambda_.13} parent=43 // pred_check_branch
        %449 = sbr.rel (%p447) target = $region48
      $region47: #{_lambda_.13} parent=43 // pred_region
        %s450 = smul.u32 2, %s16
        %p451 = scmp.lt.s32.totalorder %s450, 3
        %s452 = scalar_select %p451, %s450, 3
        %s453 = smul.addr %s452, 4
        %s454 = scalar_lea.vmem %s4, %s453
      $region48: #{_lambda_.13} parent=43 // pred_fallthru
        _
    $region44: #{_lambda_.13} parent=5 // pred_fallthru
      _
  $region6: #{_lambda_.13} parent=0 // loop_footer
    %s14 = sadd.s32 1, %s10
  $region7: #{_lambda_.13} parent=0 // loop_footer_branch
    %9 = sbr.rel target = $region3
  $region8: #{_lambda_.13} parent=0 // loop_exit
    _

// kernel: _lambda_.14
$region0: #{_lambda_.14}
  #allocation0 [shape = 'u32[]', space=smem, size = 0x4, offset = 0x4, fixed_abs, tag = 'smem constant byte address 0x4 - core index']
  #allocation1 [shape = 'u32[144,128]{1,0:T(1,128)}', space=vmem, size = 0x12000, scoped, tag = 'internal scratch']
  %s0 = inlined_call_operand.vmem [shape: bf16[8,256], index: 0, kind: input, shape index: {}]
  %s1 = inlined_call_operand.vmem [shape: bf16[256,128], index: 1, kind: input, shape index: {}]
  %s2 = inlined_call_operand.vmem [shape: f32[1,128], index: 2, kind: input, shape index: {}]
  %s3 = inlined_call_operand.vmem [shape: bf16[8,128], index: 3, kind: output, shape index: {}]
  %s4 = sld [smem:[#allocation0]]
  $region22: #{_lambda_.14} parent=0
    _
  %s6 = ssub.s32 1, %s4
  %s7 = scalar_select 0, %s6, %s4
  // Predicated region
  $region2: #{_lambda_.14} parent=0 // pred_check
    _
  $region3: #{_lambda_.14} parent=0 // pred_check_branch
    %9 = sbr.rel (0) target = $region5
  $region4: #{_lambda_.14} parent=0 // pred_region
    _
  $region5: #{_lambda_.14} parent=0 // pred_fallthru
    _
  // Predicated region
  $region6: #{_lambda_.14} parent=0 // pred_check
    _
  $region7: #{_lambda_.14} parent=0 // pred_check_branch
    %11 = sbr.rel (0) target = $region9
  $region8: #{_lambda_.14} parent=0 // pred_region
    _
  $region9: #{_lambda_.14} parent=0 // pred_fallthru
    _
  // Predicated region
  $region10: #{_lambda_.14} parent=0 // pred_check
    _
  $region11: #{_lambda_.14} parent=0 // pred_check_branch
    %13 = sbr.rel (0) target = $region13
  $region12: #{_lambda_.14} parent=0 // pred_region
    _
  $region13: #{_lambda_.14} parent=0 // pred_fallthru
    _
  %v15 = vld [vmem:[%s0] sm:$0xff]
  %v16 = vld [vmem:[%s1] sm:$0xf]
  %v17 = vld [vmem:[%s1 + $0x4] sm:$0xf]
  %v18 = vld [vmem:[%s1 + $0x8] sm:$0xf]
  %v19 = vld [vmem:[%s1 + $0xc] sm:$0xf]
  %v20 = vld [vmem:[%s1 + $0x10] sm:$0xf]
  %v21 = vld [vmem:[%s1 + $0x14] sm:$0xf]
  %v22 = vld [vmem:[%s1 + $0x18] sm:$0xf]
  %v23 = vld [vmem:[%s1 + $0x1c] sm:$0xf]
  %v24 = vld [vmem:[%s1 + $0x20] sm:$0xf]
  %v25 = vld [vmem:[%s1 + $0x24] sm:$0xf]
  %v26 = vld [vmem:[%s1 + $0x28] sm:$0xf]
  %v27 = vld [vmem:[%s1 + $0x2c] sm:$0xf]
  %v28 = vld [vmem:[%s1 + $0x30] sm:$0xf]
  %v29 = vld [vmem:[%s1 + $0x34] sm:$0xf]
  %v30 = vld [vmem:[%s1 + $0x38] sm:$0xf]
  %v31 = vld [vmem:[%s1 + $0x3c] sm:$0xf]
  %v32 = vld [vmem:[%s1 + $0x40] sm:$0xf]
  %v33 = vld [vmem:[%s1 + $0x44] sm:$0xf]
  %v34 = vld [vmem:[%s1 + $0x48] sm:$0xf]
  %v35 = vld [vmem:[%s1 + $0x4c] sm:$0xf]
  %v36 = vld [vmem:[%s1 + $0x50] sm:$0xf]
  %v37 = vld [vmem:[%s1 + $0x54] sm:$0xf]
  %v38 = vld [vmem:[%s1 + $0x58] sm:$0xf]
  %v39 = vld [vmem:[%s1 + $0x5c] sm:$0xf]
  %v40 = vld [vmem:[%s1 + $0x60] sm:$0xf]
  %v41 = vld [vmem:[%s1 + $0x64] sm:$0xf]
  %v42 = vld [vmem:[%s1 + $0x68] sm:$0xf]
  %v43 = vld [vmem:[%s1 + $0x6c] sm:$0xf]
  %v44 = vld [vmem:[%s1 + $0x70] sm:$0xf]
  %v45 = vld [vmem:[%s1 + $0x74] sm:$0xf]
  %v46 = vld [vmem:[%s1 + $0x78] sm:$0xf]
  %v47 = vld [vmem:[%s1 + $0x7c] sm:$0xf]
  %v48 = vld [vmem:[%s2] sm:$0x1]
  %v50 = vlaneseq
  %v51 = vshrl.u32 %v50, 7
  %v52 = vsub.s32 0, %v51
  %v53 = vrot.slane %v48, %v52
  %v56 = vunpack.c.l.b16 %v15
  %v57 = vunpack.c.h.b16 %v15
  %v58 = vpack.c.b16 %v56, %v56
  %v59 = vpack.c.b16 %v57, %v57
  %v94 = vunpack.c.l.b16 %v16
  %v95 = vunpack.c.l.b16 %v17
  %v96 = vunpack.c.l.b16 %v18
  %v97 = vunpack.c.l.b16 %v19
  %v98 = vunpack.c.l.b16 %v20
  %v99 = vunpack.c.l.b16 %v21
  %v100 = vunpack.c.l.b16 %v22
  %v101 = vunpack.c.l.b16 %v23
  %v102 = vunpack.c.l.b16 %v24
  %v103 = vunpack.c.l.b16 %v25
  %v104 = vunpack.c.l.b16 %v26
  %v105 = vunpack.c.l.b16 %v27
  %v106 = vunpack.c.l.b16 %v28
  %v107 = vunpack.c.l.b16 %v29
  %v108 = vunpack.c.l.b16 %v30
  %v109 = vunpack.c.l.b16 %v31
  %v110 = vunpack.c.l.b16 %v32
  %v111 = vunpack.c.l.b16 %v33
  %v112 = vunpack.c.l.b16 %v34
  %v113 = vunpack.c.l.b16 %v35
  %v114 = vunpack.c.l.b16 %v36
  %v115 = vunpack.c.l.b16 %v37
  %v116 = vunpack.c.l.b16 %v38
  %v117 = vunpack.c.l.b16 %v39
  %v118 = vunpack.c.l.b16 %v40
  %v119 = vunpack.c.l.b16 %v41
  %v120 = vunpack.c.l.b16 %v42
  %v121 = vunpack.c.l.b16 %v43
  %v122 = vunpack.c.l.b16 %v44
  %v123 = vunpack.c.l.b16 %v45
  %v124 = vunpack.c.l.b16 %v46
  %v125 = vunpack.c.l.b16 %v47
  %v126 = vpack.c.b16 %v95, %v94
  %v127 = vpack.c.b16 %v97, %v96
  %v128 = vpack.c.b16 %v99, %v98
  %v129 = vpack.c.b16 %v101, %v100
  %v130 = vpack.c.b16 %v103, %v102
  %v131 = vpack.c.b16 %v105, %v104
  %v132 = vpack.c.b16 %v107, %v106
  %v133 = vpack.c.b16 %v109, %v108
  %v134 = vpack.c.b16 %v111, %v110
  %v135 = vpack.c.b16 %v113, %v112
  %v136 = vpack.c.b16 %v115, %v114
  %v137 = vpack.c.b16 %v117, %v116
  %v138 = vpack.c.b16 %v119, %v118
  %v139 = vpack.c.b16 %v121, %v120
  %v140 = vpack.c.b16 %v123, %v122
  %v141 = vpack.c.b16 %v125, %v124
  %158 = vmatprep.subr.bf16.mxu0 0
  %159 = vmatpush1.bf16.msra.mxu0 %v126
  %160 = vmatprep.subr.bf16.mxu0 0
  %161 = vmatpush1.bf16.msra.mxu0 %v127
  %162 = vmatprep.subr.bf16.mxu0 0
  %163 = vmatpush1.bf16.msra.mxu0 %v128
  %164 = vmatprep.subr.bf16.mxu0 0
  %165 = vmatpush1.bf16.msra.mxu0 %v129
  %166 = vmatprep.subr.bf16.mxu0 0
  %167 = vmatpush1.bf16.msra.mxu0 %v130
  %168 = vmatprep.subr.bf16.mxu0 0
  %169 = vmatpush1.bf16.msra.mxu0 %v131
  %170 = vmatprep.subr.bf16.mxu0 0
  %171 = vmatpush1.bf16.msra.mxu0 %v132
  %172 = vmatprep.subr.bf16.mxu0 0
  %173 = vmatpush1.bf16.msra.mxu0 %v133
  %174 = vmatprep.subr.bf16.mxu0 0
  %175 = vmatpush1.bf16.msra.mxu0 %v134
  %176 = vmatprep.subr.bf16.mxu0 0
  %177 = vmatpush1.bf16.msra.mxu0 %v135
  %178 = vmatprep.subr.bf16.mxu0 0
  %179 = vmatpush1.bf16.msra.mxu0 %v136
  %180 = vmatprep.subr.bf16.mxu0 0
  %181 = vmatpush1.bf16.msra.mxu0 %v137
  %182 = vmatprep.subr.bf16.mxu0 0
  %183 = vmatpush1.bf16.msra.mxu0 %v138
  %184 = vmatprep.subr.bf16.mxu0 0
  %185 = vmatpush1.bf16.msra.mxu0 %v139
  %186 = vmatprep.subr.bf16.mxu0 0
  %187 = vmatpush1.bf16.msra.mxu0 %v140
  %188 = vmatprep.subr.bf16.mxu0 0
  %189 = vmatpush1.bf16.msra.mxu0 %v141
  %190 = vmatprep.mubr.bf16.mxu0 %v59
  %191 = vmatmul.mubr.bf16.gmra.mrb[0].mxu0 %v58
  %v192 = vpop.f32.mrb[0].mxu0
  %v193 = vadd.f32 %v53, %v192
  %v194 = vpop.f32.mrb[0].mxu0
  %v195 = vpop.f32.mrb[0].mxu0
  %v196 = vpop.f32.mrb[0].mxu0
  %197 = vdwg.mxu0
  %v198 = vmax.f32 %v193, 0.0
  %v199 = vpack.c.bf16 %v198, %v198
  %200 = vst [vmem:[%s3] sm:$0xf] %v199
  // Predicated region
  $region14: #{_lambda_.14} parent=0 // pred_check
    _
  $region15: #{_lambda_.14} parent=0 // pred_check_branch
    %202 = sbr.rel (0) target = $region17
  $region16: #{_lambda_.14} parent=0 // pred_region
    _
  $region17: #{_lambda_.14} parent=0 // pred_fallthru
    _
  // Predicated region
  $region18: #{_lambda_.14} parent=0 // pred_check
    _
  $region19: #{_lambda_.14} parent=0 // pred_check_branch
    %204 = sbr.rel (0) target = $region21
  $region20: #{_lambda_.14} parent=0 // pred_region
    _
  $region21: #{_lambda_.14} parent=0 // pred_fallthru
    _

// kernel: _lambda_.16
$region0: #{_lambda_.16}
  #allocation0 [shape = 'u32[]', space=smem, size = 0x4, offset = 0x4, fixed_abs, tag = 'smem constant byte address 0x4 - core index']
  #allocation1 [shape = 'u32[144,128]{1,0:T(1,128)}', space=vmem, size = 0x12000, scoped, tag = 'internal scratch']
  %s0 = inlined_call_operand.vmem [shape: bf16[8,384], index: 0, kind: input, shape index: {}]
  %s1 = inlined_call_operand.vmem [shape: bf16[384,128], index: 1, kind: input, shape index: {}]
  %s2 = inlined_call_operand.vmem [shape: f32[1,128], index: 2, kind: input, shape index: {}]
  %s3 = inlined_call_operand.vmem [shape: bf16[8,128], index: 3, kind: input, shape index: {}]
  %s4 = inlined_call_operand.vmem [shape: bf16[8,128], index: 4, kind: output, shape index: {}]
  %s5 = sld [smem:[#allocation0]]
  $region26: #{_lambda_.16} parent=0
    _
  %s7 = ssub.s32 1, %s5
  %s8 = scalar_select 0, %s7, %s5
  // Predicated region
  $region2: #{_lambda_.16} parent=0 // pred_check
    _
  $region3: #{_lambda_.16} parent=0 // pred_check_branch
    %10 = sbr.rel (0) target = $region5
  $region4: #{_lambda_.16} parent=0 // pred_region
    _
  $region5: #{_lambda_.16} parent=0 // pred_fallthru
    _
  // Predicated region
  $region6: #{_lambda_.16} parent=0 // pred_check
    _
  $region7: #{_lambda_.16} parent=0 // pred_check_branch
    %12 = sbr.rel (0) target = $region9
  $region8: #{_lambda_.16} parent=0 // pred_region
    _
  $region9: #{_lambda_.16} parent=0 // pred_fallthru
    _
  // Predicated region
  $region10: #{_lambda_.16} parent=0 // pred_check
    _
  $region11: #{_lambda_.16} parent=0 // pred_check_branch
    %14 = sbr.rel (0) target = $region13
  $region12: #{_lambda_.16} parent=0 // pred_region
    _
  $region13: #{_lambda_.16} parent=0 // pred_fallthru
    _
  // Predicated region
  $region14: #{_lambda_.16} parent=0 // pred_check
    _
  $region15: #{_lambda_.16} parent=0 // pred_check_branch
    %16 = sbr.rel (0) target = $region17
  $region16: #{_lambda_.16} parent=0 // pred_region
    _
  $region17: #{_lambda_.16} parent=0 // pred_fallthru
    _
  %v18 = vld [vmem:[%s0] sm:$0xff]
  %v19 = vld [vmem:[%s0 + $0x8] sm:$0xf]
  %v20 = vld [vmem:[%s1] sm:$0xf]
  %v21 = vld [vmem:[%s1 + $0x4] sm:$0xf]
  %v22 = vld [vmem:[%s1 + $0x8] sm:$0xf]
  %v23 = vld [vmem:[%s1 + $0xc] sm:$0xf]
  %v24 = vld [vmem:[%s1 + $0x10] sm:$0xf]
  %v25 = vld [vmem:[%s1 + $0x14] sm:$0xf]
  %v26 = vld [vmem:[%s1 + $0x18] sm:$0xf]
  %v27 = vld [vmem:[%s1 + $0x1c] sm:$0xf]
  %v28 = vld [vmem:[%s1 + $0x20] sm:$0xf]
  %v29 = vld [vmem:[%s1 + $0x24] sm:$0xf]
  %v30 = vld [vmem:[%s1 + $0x28] sm:$0xf]
  %v31 = vld [vmem:[%s1 + $0x2c] sm:$0xf]
  %v32 = vld [vmem:[%s1 + $0x30] sm:$0xf]
  %v33 = vld [vmem:[%s1 + $0x34] sm:$0xf]
  %v34 = vld [vmem:[%s1 + $0x38] sm:$0xf]
  %v35 = vld [vmem:[%s1 + $0x3c] sm:$0xf]
  %v36 = vld [vmem:[%s1 + $0x40] sm:$0xf]
  %v37 = vld [vmem:[%s1 + $0x44] sm:$0xf]
  %v38 = vld [vmem:[%s1 + $0x48] sm:$0xf]
  %v39 = vld [vmem:[%s1 + $0x4c] sm:$0xf]
  %v40 = vld [vmem:[%s1 + $0x50] sm:$0xf]
  %v41 = vld [vmem:[%s1 + $0x54] sm:$0xf]
  %v42 = vld [vmem:[%s1 + $0x58] sm:$0xf]
  %v43 = vld [vmem:[%s1 + $0x5c] sm:$0xf]
  %v44 = vld [vmem:[%s1 + $0x60] sm:$0xf]
  %v45 = vld [vmem:[%s1 + $0x64] sm:$0xf]
  %v46 = vld [vmem:[%s1 + $0x68] sm:$0xf]
  %v47 = vld [vmem:[%s1 + $0x6c] sm:$0xf]
  %v48 = vld [vmem:[%s1 + $0x70] sm:$0xf]
  %v49 = vld [vmem:[%s1 + $0x74] sm:$0xf]
  %v50 = vld [vmem:[%s1 + $0x78] sm:$0xf]
  %v51 = vld [vmem:[%s1 + $0x7c] sm:$0xf]
  %v52 = vld [vmem:[%s1 + $0x80] sm:$0xf]
  %v53 = vld [vmem:[%s1 + $0x84] sm:$0xf]
  %v54 = vld [vmem:[%s1 + $0x88] sm:$0xf]
  %v55 = vld [vmem:[%s1 + $0x8c] sm:$0xf]
  %v56 = vld [vmem:[%s1 + $0x90] sm:$0xf]
  %v57 = vld [vmem:[%s1 + $0x94] sm:$0xf]
  %v58 = vld [vmem:[%s1 + $0x98] sm:$0xf]
  %v59 = vld [vmem:[%s1 + $0x9c] sm:$0xf]
  %v60 = vld [vmem:[%s1 + $0xa0] sm:$0xf]
  %v61 = vld [vmem:[%s1 + $0xa4] sm:$0xf]
  %v62 = vld [vmem:[%s1 + $0xa8] sm:$0xf]
  %v63 = vld [vmem:[%s1 + $0xac] sm:$0xf]
  %v64 = vld [vmem:[%s1 + $0xb0] sm:$0xf]
  %v65 = vld [vmem:[%s1 + $0xb4] sm:$0xf]
  %v66 = vld [vmem:[%s1 + $0xb8] sm:$0xf]
  %v67 = vld [vmem:[%s1 + $0xbc] sm:$0xf]
  %v68 = vld [vmem:[%s2] sm:$0x1]
  %v70 = vlaneseq
  %v71 = vshrl.u32 %v70, 7
  %v72 = vsub.s32 0, %v71
  %v73 = vrot.slane %v68, %v72
  %v77 = vunpack.c.l.b16 %v18
  %v78 = vunpack.c.h.b16 %v18
  %v79 = vunpack.c.l.b16 %v19
  %v80 = vpack.c.b16 %v77, %v77
  %v81 = vpack.c.b16 %v78, %v78
  %v82 = vpack.c.b16 %v79, %v79
  %v134 = vunpack.c.l.b16 %v20
  %v135 = vunpack.c.l.b16 %v21
  %v136 = vunpack.c.l.b16 %v22
  %v137 = vunpack.c.l.b16 %v23
  %v138 = vunpack.c.l.b16 %v24
  %v139 = vunpack.c.l.b16 %v25
  %v140 = vunpack.c.l.b16 %v26
  %v141 = vunpack.c.l.b16 %v27
  %v142 = vunpack.c.l.b16 %v28
  %v143 = vunpack.c.l.b16 %v29
  %v144 = vunpack.c.l.b16 %v30
  %v145 = vunpack.c.l.b16 %v31
  %v146 = vunpack.c.l.b16 %v32
  %v147 = vunpack.c.l.b16 %v33
  %v148 = vunpack.c.l.b16 %v34
  %v149 = vunpack.c.l.b16 %v35
  %v150 = vunpack.c.l.b16 %v36
  %v151 = vunpack.c.l.b16 %v37
  %v152 = vunpack.c.l.b16 %v38
  %v153 = vunpack.c.l.b16 %v39
  %v154 = vunpack.c.l.b16 %v40
  %v155 = vunpack.c.l.b16 %v41
  %v156 = vunpack.c.l.b16 %v42
  %v157 = vunpack.c.l.b16 %v43
  %v158 = vunpack.c.l.b16 %v44
  %v159 = vunpack.c.l.b16 %v45
  %v160 = vunpack.c.l.b16 %v46
  %v161 = vunpack.c.l.b16 %v47
  %v162 = vunpack.c.l.b16 %v48
  %v163 = vunpack.c.l.b16 %v49
  %v164 = vunpack.c.l.b16 %v50
  %v165 = vunpack.c.l.b16 %v51
  %v166 = vunpack.c.l.b16 %v52
  %v167 = vunpack.c.l.b16 %v53
  %v168 = vunpack.c.l.b16 %v54
  %v169 = vunpack.c.l.b16 %v55
  %v170 = vunpack.c.l.b16 %v56
  %v171 = vunpack.c.l.b16 %v57
  %v172 = vunpack.c.l.b16 %v58
  %v173 = vunpack.c.l.b16 %v59
  %v174 = vunpack.c.l.b16 %v60
  %v175 = vunpack.c.l.b16 %v61
  %v176 = vunpack.c.l.b16 %v62
  %v177 = vunpack.c.l.b16 %v63
  %v178 = vunpack.c.l.b16 %v64
  %v179 = vunpack.c.l.b16 %v65
  %v180 = vunpack.c.l.b16 %v66
  %v181 = vunpack.c.l.b16 %v67
  %v182 = vpack.c.b16 %v135, %v134
  %v183 = vpack.c.b16 %v137, %v136
  %v184 = vpack.c.b16 %v139, %v138
  %v185 = vpack.c.b16 %v141, %v140
  %v186 = vpack.c.b16 %v143, %v142
  %v187 = vpack.c.b16 %v145, %v144
  %v188 = vpack.c.b16 %v147, %v146
  %v189 = vpack.c.b16 %v149, %v148
  %v190 = vpack.c.b16 %v151, %v150
  %v191 = vpack.c.b16 %v153, %v152
  %v192 = vpack.c.b16 %v155, %v154
  %v193 = vpack.c.b16 %v157, %v156
  %v194 = vpack.c.b16 %v159, %v158
  %v195 = vpack.c.b16 %v161, %v160
  %v196 = vpack.c.b16 %v163, %v162
  %v197 = vpack.c.b16 %v165, %v164
  %v198 = vpack.c.b16 %v167, %v166
  %v199 = vpack.c.b16 %v169, %v168
  %v200 = vpack.c.b16 %v171, %v170
  %v201 = vpack.c.b16 %v173, %v172
  %v202 = vpack.c.b16 %v175, %v174
  %v203 = vpack.c.b16 %v177, %v176
  %v204 = vpack.c.b16 %v179, %v178
  %v205 = vpack.c.b16 %v181, %v180
  %230 = vmatprep.subr.bf16.mxu0 0
  %231 = vmatpush1.bf16.msra.mxu0 %v182
  %232 = vmatprep.subr.bf16.mxu0 0
  %233 = vmatpush1.bf16.msra.mxu0 %v183
  %234 = vmatprep.subr.bf16.mxu0 0
  %235 = vmatpush1.bf16.msra.mxu0 %v184
  %236 = vmatprep.subr.bf16.mxu0 0
  %237 = vmatpush1.bf16.msra.mxu0 %v185
  %238 = vmatprep.subr.bf16.mxu0 0
  %239 = vmatpush1.bf16.msra.mxu0 %v186
  %240 = vmatprep.subr.bf16.mxu0 0
  %241 = vmatpush1.bf16.msra.mxu0 %v187
  %242 = vmatprep.subr.bf16.mxu0 0
  %243 = vmatpush1.bf16.msra.mxu0 %v188
  %244 = vmatprep.subr.bf16.mxu0 0
  %245 = vmatpush1.bf16.msra.mxu0 %v189
  %246 = vmatprep.subr.bf16.mxu0 0
  %247 = vmatpush1.bf16.msra.mxu0 %v190
  %248 = vmatprep.subr.bf16.mxu0 0
  %249 = vmatpush1.bf16.msra.mxu0 %v191
  %250 = vmatprep.subr.bf16.mxu0 0
  %251 = vmatpush1.bf16.msra.mxu0 %v192
  %252 = vmatprep.subr.bf16.mxu0 0
  %253 = vmatpush1.bf16.msra.mxu0 %v193
  %254 = vmatprep.subr.bf16.mxu0 0
  %255 = vmatpush1.bf16.msra.mxu0 %v194
  %256 = vmatprep.subr.bf16.mxu0 0
  %257 = vmatpush1.bf16.msra.mxu0 %v195
  %258 = vmatprep.subr.bf16.mxu0 0
  %259 = vmatpush1.bf16.msra.mxu0 %v196
  %260 = vmatprep.subr.bf16.mxu0 0
  %261 = vmatpush1.bf16.msra.mxu0 %v197
  %262 = vmatprep.mubr.bf16.mxu0 %v81
  %263 = vmatmul.mubr.bf16.gmra.mrb[0].mxu0 %v80
  %v264 = vpop.f32.mrb[0].mxu0
  %v265 = vadd.f32 %v73, %v264
  %v266 = vpop.f32.mrb[0].mxu0
  %v267 = vpop.f32.mrb[0].mxu0
  %v268 = vpop.f32.mrb[0].mxu0
  %269 = vdwg.mxu0
  %270 = vmatprep.subr.bf16.mxu0 0
  %271 = vmatpush1.bf16.msra.mxu0 %v198
  %272 = vmatprep.subr.bf16.mxu0 0
  %273 = vmatpush1.bf16.msra.mxu0 %v199
  %274 = vmatprep.subr.bf16.mxu0 0
  %275 = vmatpush1.bf16.msra.mxu0 %v200
  %276 = vmatprep.subr.bf16.mxu0 0
  %277 = vmatpush1.bf16.msra.mxu0 %v201
  %278 = vmatprep.subr.bf16.mxu0 0
  %279 = vmatpush1.bf16.msra.mxu0 %v202
  %280 = vmatprep.subr.bf16.mxu0 0
  %281 = vmatpush1.bf16.msra.mxu0 %v203
  %282 = vmatprep.subr.bf16.mxu0 0
  %283 = vmatpush1.bf16.msra.mxu0 %v204
  %284 = vmatprep.subr.bf16.mxu0 0
  %285 = vmatpush1.bf16.msra.mxu0 %v205
  %286 = vmatprep.subr.bf16.mxu0 0
  %287 = vmatpush1.bf16.msra.mxu0 0
  %288 = vmatprep.subr.bf16.mxu0 0
  %289 = vmatpush1.bf16.msra.mxu0 0
  %290 = vmatprep.subr.bf16.mxu0 0
  %291 = vmatpush1.bf16.msra.mxu0 0
  %292 = vmatprep.subr.bf16.mxu0 0
  %293 = vmatpush1.bf16.msra.mxu0 0
  %294 = vmatprep.subr.bf16.mxu0 0
  %295 = vmatpush1.bf16.msra.mxu0 0
  %296 = vmatprep.subr.bf16.mxu0 0
  %297 = vmatpush1.bf16.msra.mxu0 0
  %298 = vmatprep.subr.bf16.mxu0 0
  %299 = vmatpush1.bf16.msra.mxu0 0
  %300 = vmatprep.subr.bf16.mxu0 0
  %301 = vmatpush1.bf16.msra.mxu0 0
  %302 = vmatprep.mubr.bf16.mxu0 0
  %303 = vmatmul.mubr.bf16.gmra.mrb[0].mxu0 %v82
  %v304 = vpop.f32.mrb[0].mxu0
  %v305 = vadd.f32 %v265, %v304
  %v306 = vpop.f32.mrb[0].mxu0
  %v307 = vpop.f32.mrb[0].mxu0
  %v308 = vpop.f32.mrb[0].mxu0
  %309 = vdwg.mxu0
  %v310 = vld [vmem:[%s3] sm:$0xf]
  %v311 = vunpack.c.l.bf16 %v310
  %v312 = vadd.f32 %v305, %v311
  %v313 = vmax.f32 %v312, 0.0
  %v314 = vpack.c.bf16 %v313, %v313
  %315 = vst [vmem:[%s4] sm:$0xf] %v314
  // Predicated region
  $region18: #{_lambda_.16} parent=0 // pred_check
    _
  $region19: #{_lambda_.16} parent=0 // pred_check_branch
    %317 = sbr.rel (0) target = $region21
  $region20: #{_lambda_.16} parent=0 // pred_region
    _
  $region21: #{_lambda_.16} parent=0 // pred_fallthru
    _
  // Predicated region
  $region22: #{_lambda_.16} parent=0 // pred_check
    _
  $region23: #{_lambda_.16} parent=0 // pred_check_branch
    %319 = sbr.rel (0) target = $region25
  $region24: #{_lambda_.16} parent=0 // pred_region
    _
  $region25: #{_lambda_.16} parent=0 // pred_fallthru
    _

// kernel: _lambda_.15
$region0: #{_lambda_.15}
  #allocation0 [shape = 'u32[]', space=smem, size = 0x4, offset = 0x4, fixed_abs, tag = 'smem constant byte address 0x4 - core index']
  #allocation1 [shape = 'u32[144,128]{1,0:T(1,128)}', space=vmem, size = 0x12000, scoped, tag = 'internal scratch']
  %s0 = inlined_call_operand.vmem [shape: bf16[8,128], index: 0, kind: input, shape index: {}]
  %s1 = inlined_call_operand.vmem [shape: bf16[128,128], index: 1, kind: input, shape index: {}]
  %s2 = inlined_call_operand.vmem [shape: f32[1,128], index: 2, kind: input, shape index: {}]
  %s3 = inlined_call_operand.vmem [shape: bf16[8,128], index: 3, kind: output, shape index: {}]
  %s4 = sld [smem:[#allocation0]]
  $region22: #{_lambda_.15} parent=0
    _
  %s6 = ssub.s32 1, %s4
  %s7 = scalar_select 0, %s6, %s4
  // Predicated region
  $region2: #{_lambda_.15} parent=0 // pred_check
    _
  $region3: #{_lambda_.15} parent=0 // pred_check_branch
    %9 = sbr.rel (0) target = $region5
  $region4: #{_lambda_.15} parent=0 // pred_region
    _
  $region5: #{_lambda_.15} parent=0 // pred_fallthru
    _
  // Predicated region
  $region6: #{_lambda_.15} parent=0 // pred_check
    _
  $region7: #{_lambda_.15} parent=0 // pred_check_branch
    %11 = sbr.rel (0) target = $region9
  $region8: #{_lambda_.15} parent=0 // pred_region
    _
  $region9: #{_lambda_.15} parent=0 // pred_fallthru
    _
  // Predicated region
  $region10: #{_lambda_.15} parent=0 // pred_check
    _
  $region11: #{_lambda_.15} parent=0 // pred_check_branch
    %13 = sbr.rel (0) target = $region13
  $region12: #{_lambda_.15} parent=0 // pred_region
    _
  $region13: #{_lambda_.15} parent=0 // pred_fallthru
    _
  %v15 = vld [vmem:[%s0] sm:$0xf]
  %v16 = vld [vmem:[%s1] sm:$0xf]
  %v17 = vld [vmem:[%s1 + $0x4] sm:$0xf]
  %v18 = vld [vmem:[%s1 + $0x8] sm:$0xf]
  %v19 = vld [vmem:[%s1 + $0xc] sm:$0xf]
  %v20 = vld [vmem:[%s1 + $0x10] sm:$0xf]
  %v21 = vld [vmem:[%s1 + $0x14] sm:$0xf]
  %v22 = vld [vmem:[%s1 + $0x18] sm:$0xf]
  %v23 = vld [vmem:[%s1 + $0x1c] sm:$0xf]
  %v24 = vld [vmem:[%s1 + $0x20] sm:$0xf]
  %v25 = vld [vmem:[%s1 + $0x24] sm:$0xf]
  %v26 = vld [vmem:[%s1 + $0x28] sm:$0xf]
  %v27 = vld [vmem:[%s1 + $0x2c] sm:$0xf]
  %v28 = vld [vmem:[%s1 + $0x30] sm:$0xf]
  %v29 = vld [vmem:[%s1 + $0x34] sm:$0xf]
  %v30 = vld [vmem:[%s1 + $0x38] sm:$0xf]
  %v31 = vld [vmem:[%s1 + $0x3c] sm:$0xf]
  %v32 = vld [vmem:[%s2] sm:$0x1]
  %v34 = vlaneseq
  %v35 = vshrl.u32 %v34, 7
  %v36 = vsub.s32 0, %v35
  %v37 = vrot.slane %v32, %v36
  %v55 = vunpack.c.l.b16 %v16
  %v56 = vunpack.c.l.b16 %v17
  %v57 = vunpack.c.l.b16 %v18
  %v58 = vunpack.c.l.b16 %v19
  %v59 = vunpack.c.l.b16 %v20
  %v60 = vunpack.c.l.b16 %v21
  %v61 = vunpack.c.l.b16 %v22
  %v62 = vunpack.c.l.b16 %v23
  %v63 = vunpack.c.l.b16 %v24
  %v64 = vunpack.c.l.b16 %v25
  %v65 = vunpack.c.l.b16 %v26
  %v66 = vunpack.c.l.b16 %v27
  %v67 = vunpack.c.l.b16 %v28
  %v68 = vunpack.c.l.b16 %v29
  %v69 = vunpack.c.l.b16 %v30
  %v70 = vunpack.c.l.b16 %v31
  %v71 = vpack.c.b16 %v56, %v55
  %v72 = vpack.c.b16 %v58, %v57
  %v73 = vpack.c.b16 %v60, %v59
  %v74 = vpack.c.b16 %v62, %v61
  %v75 = vpack.c.b16 %v64, %v63
  %v76 = vpack.c.b16 %v66, %v65
  %v77 = vpack.c.b16 %v68, %v67
  %v78 = vpack.c.b16 %v70, %v69
  %87 = vmatprep.subr.bf16.mxu0 0
  %88 = vmatpush1.bf16.msra.mxu0 %v71
  %89 = vmatprep.subr.bf16.mxu0 0
  %90 = vmatpush1.bf16.msra.mxu0 %v72
  %91 = vmatprep.subr.bf16.mxu0 0
  %92 = vmatpush1.bf16.msra.mxu0 %v73
  %93 = vmatprep.subr.bf16.mxu0 0
  %94 = vmatpush1.bf16.msra.mxu0 %v74
  %95 = vmatprep.subr.bf16.mxu0 0
  %96 = vmatpush1.bf16.msra.mxu0 %v75
  %97 = vmatprep.subr.bf16.mxu0 0
  %98 = vmatpush1.bf16.msra.mxu0 %v76
  %99 = vmatprep.subr.bf16.mxu0 0
  %100 = vmatpush1.bf16.msra.mxu0 %v77
  %101 = vmatprep.subr.bf16.mxu0 0
  %102 = vmatpush1.bf16.msra.mxu0 %v78
  %103 = vmatprep.subr.bf16.mxu0 0
  %104 = vmatpush1.bf16.msra.mxu0 0
  %105 = vmatprep.subr.bf16.mxu0 0
  %106 = vmatpush1.bf16.msra.mxu0 0
  %107 = vmatprep.subr.bf16.mxu0 0
  %108 = vmatpush1.bf16.msra.mxu0 0
  %109 = vmatprep.subr.bf16.mxu0 0
  %110 = vmatpush1.bf16.msra.mxu0 0
  %111 = vmatprep.subr.bf16.mxu0 0
  %112 = vmatpush1.bf16.msra.mxu0 0
  %113 = vmatprep.subr.bf16.mxu0 0
  %114 = vmatpush1.bf16.msra.mxu0 0
  %115 = vmatprep.subr.bf16.mxu0 0
  %116 = vmatpush1.bf16.msra.mxu0 0
  %117 = vmatprep.subr.bf16.mxu0 0
  %118 = vmatpush1.bf16.msra.mxu0 0
  %119 = vmatprep.mubr.bf16.mxu0 0
  %120 = vmatmul.mubr.bf16.gmra.mrb[0].mxu0 %v15
  %v121 = vpop.f32.mrb[0].mxu0
  %v122 = vadd.f32 %v37, %v121
  %v123 = vpop.f32.mrb[0].mxu0
  %v124 = vpop.f32.mrb[0].mxu0
  %v125 = vpop.f32.mrb[0].mxu0
  %126 = vdwg.mxu0
  %v127 = vpack.c.bf16 %v122, %v122
  %128 = vst [vmem:[%s3] sm:$0xf] %v127
  // Predicated region
  $region14: #{_lambda_.15} parent=0 // pred_check
    _
  $region15: #{_lambda_.15} parent=0 // pred_check_branch
    %130 = sbr.rel (0) target = $region17
  $region16: #{_lambda_.15} parent=0 // pred_region
    _
  $region17: #{_lambda_.15} parent=0 // pred_fallthru
    _
  // Predicated region
  $region18: #{_lambda_.15} parent=0 // pred_check
    _
  $region19: #{_lambda_.15} parent=0 // pred_check_branch
    %132 = sbr.rel (0) target = $region21
  $region20: #{_lambda_.15} parent=0 // pred_region
    _
  $region21: #{_lambda_.15} parent=0 // pred_fallthru
    _

// kernel: _lambda_.17
$region0: #{_lambda_.17}
  #allocation0 [shape = 'u32[]', space=smem, size = 0x4, offset = 0x4, fixed_abs, tag = 'smem constant byte address 0x4 - core index']
  #allocation1 [shape = 'u32[144,128]{1,0:T(1,128)}', space=vmem, size = 0x12000, scoped, tag = 'internal scratch']
  %s0 = inlined_call_operand.vmem [shape: bf16[2,4,128], index: 0, kind: input, shape index: {}]
  %s1 = inlined_call_operand.vmem [shape: bf16[128,128], index: 1, kind: input, shape index: {}]
  %s2 = inlined_call_operand.vmem [shape: f32[1,128], index: 2, kind: input, shape index: {}]
  %s3 = inlined_call_operand.hbm [shape: f32[2,128], index: 3, kind: output, shape index: {}]
  %s4 = sld [smem:[#allocation0]]
  $region22: #{_lambda_.17} parent=0
    _
  %s6 = ssub.s32 1, %s4
  %s7 = scalar_select 0, %s6, %s4
  $region1: #{_lambda_.17} parent=0
    #allocation2 [shape = 'u8[1024]{0}', space=vmem, size = 0x400, scoped, tag = 'output window, operand 0, single buffered']
    #allocation3 [shape = 's32[1]{0}', space=sflag, size = 0x4, scoped, tag = 'scoped memory for _lambda_.17']
    %8 = vsyncpa [#allocation3], 0
    // Predicated region
    $region2: #{_lambda_.17} parent=1 // pred_check
      _
    $region3: #{_lambda_.17} parent=1 // pred_check_branch
      %10 = sbr.rel (0) target = $region5
    $region4: #{_lambda_.17} parent=1 // pred_region
      _
    $region5: #{_lambda_.17} parent=1 // pred_fallthru
      _
    // Predicated region
    $region6: #{_lambda_.17} parent=1 // pred_check
      _
    $region7: #{_lambda_.17} parent=1 // pred_check_branch
      %12 = sbr.rel (0) target = $region9
    $region8: #{_lambda_.17} parent=1 // pred_region
      _
    $region9: #{_lambda_.17} parent=1 // pred_fallthru
      _
    // Predicated region
    $region10: #{_lambda_.17} parent=1 // pred_check
      _
    $region11: #{_lambda_.17} parent=1 // pred_check_branch
      %14 = sbr.rel (0) target = $region13
    $region12: #{_lambda_.17} parent=1 // pred_region
      _
    $region13: #{_lambda_.17} parent=1 // pred_fallthru
      _
    %v16 = vld [vmem:[%s0] sm:$0x3]
    %v17 = vld [vmem:[%s0 + $0x2] sm:$0x3]
    %v18 = vunpack.c.l.bf16 %v16
    %v19 = vunpack.c.l.bf16 %v17
    %vm20 = vcmask 1043456
    %v21 = vsel %vm20, %v18, 0.0
    %v22 = vrot.slane %v21, 4
    %v23 = vadd.f32 %v21, %v22
    %v24 = vrot.slane %v23, 2
    %v25 = vadd.f32 %v23, %v24
    %v26 = vrot.slane %v25, 1
    %v27 = vadd.f32 %v25, %v26
    %v28 = vsel %vm20, %v19, 0.0
    %v29 = vrot.slane %v28, 4
    %v30 = vadd.f32 %v28, %v29
    %v31 = vrot.slane %v30, 2
    %v32 = vadd.f32 %v30, %v31
    %v33 = vrot.slane %v32, 1
    %v34 = vadd.f32 %v32, %v33
    %v35 = vmul.f32 %v27, 0.25
    %v36 = vmul.f32 %v34, 0.25
    %v37 = vpack.c.bf16 %v35, %v35
    %v38 = vpack.c.bf16 %v36, %v36
    %v39 = vld [vmem:[%s1] sm:$0xf]
    %v40 = vld [vmem:[%s1 + $0x4] sm:$0xf]
    %v41 = vld [vmem:[%s1 + $0x8] sm:$0xf]
    %v42 = vld [vmem:[%s1 + $0xc] sm:$0xf]
    %v43 = vld [vmem:[%s1 + $0x10] sm:$0xf]
    %v44 = vld [vmem:[%s1 + $0x14] sm:$0xf]
    %v45 = vld [vmem:[%s1 + $0x18] sm:$0xf]
    %v46 = vld [vmem:[%s1 + $0x1c] sm:$0xf]
    %v47 = vld [vmem:[%s1 + $0x20] sm:$0xf]
    %v48 = vld [vmem:[%s1 + $0x24] sm:$0xf]
    %v49 = vld [vmem:[%s1 + $0x28] sm:$0xf]
    %v50 = vld [vmem:[%s1 + $0x2c] sm:$0xf]
    %v51 = vld [vmem:[%s1 + $0x30] sm:$0xf]
    %v52 = vld [vmem:[%s1 + $0x34] sm:$0xf]
    %v53 = vld [vmem:[%s1 + $0x38] sm:$0xf]
    %v54 = vld [vmem:[%s1 + $0x3c] sm:$0xf]
    %v55 = vld [vmem:[%s2] sm:$0x1]
    %v57 = vlaneseq
    %v58 = vshrl.u32 %v57, 7
    %v59 = vsub.s32 0, %v58
    %v60 = vrot.slane %v55, %v59
    %v64 = vunpack.c.l.b16 %v37
    %v65 = vunpack.c.l.b16 %v38
    %vm66 = vcmask 1041409
    %v67 = vsel %vm66, %v65, %v64
    %v68 = vpack.c.b16 %v67, %v67
    %v86 = vunpack.c.l.b16 %v39
    %v87 = vunpack.c.l.b16 %v40
    %v88 = vunpack.c.l.b16 %v41
    %v89 = vunpack.c.l.b16 %v42
    %v90 = vunpack.c.l.b16 %v43
    %v91 = vunpack.c.l.b16 %v44
    %v92 = vunpack.c.l.b16 %v45
    %v93 = vunpack.c.l.b16 %v46
    %v94 = vunpack.c.l.b16 %v47
    %v95 = vunpack.c.l.b16 %v48
    %v96 = vunpack.c.l.b16 %v49
    %v97 = vunpack.c.l.b16 %v50
    %v98 = vunpack.c.l.b16 %v51
    %v99 = vunpack.c.l.b16 %v52
    %v100 = vunpack.c.l.b16 %v53
    %v101 = vunpack.c.l.b16 %v54
    %v102 = vpack.c.b16 %v87, %v86
    %v103 = vpack.c.b16 %v89, %v88
    %v104 = vpack.c.b16 %v91, %v90
    %v105 = vpack.c.b16 %v93, %v92
    %v106 = vpack.c.b16 %v95, %v94
    %v107 = vpack.c.b16 %v97, %v96
    %v108 = vpack.c.b16 %v99, %v98
    %v109 = vpack.c.b16 %v101, %v100
    %118 = vmatprep.subr.bf16.mxu0 0
    %119 = vmatpush1.bf16.msra.mxu0 %v102
    %120 = vmatprep.subr.bf16.mxu0 0
    %121 = vmatpush1.bf16.msra.mxu0 %v103
    %122 = vmatprep.subr.bf16.mxu0 0
    %123 = vmatpush1.bf16.msra.mxu0 %v104
    %124 = vmatprep.subr.bf16.mxu0 0
    %125 = vmatpush1.bf16.msra.mxu0 %v105
    %126 = vmatprep.subr.bf16.mxu0 0
    %127 = vmatpush1.bf16.msra.mxu0 %v106
    %128 = vmatprep.subr.bf16.mxu0 0
    %129 = vmatpush1.bf16.msra.mxu0 %v107
    %130 = vmatprep.subr.bf16.mxu0 0
    %131 = vmatpush1.bf16.msra.mxu0 %v108
    %132 = vmatprep.subr.bf16.mxu0 0
    %133 = vmatpush1.bf16.msra.mxu0 %v109
    %134 = vmatprep.subr.bf16.mxu0 0
    %135 = vmatpush1.bf16.msra.mxu0 0
    %136 = vmatprep.subr.bf16.mxu0 0
    %137 = vmatpush1.bf16.msra.mxu0 0
    %138 = vmatprep.subr.bf16.mxu0 0
    %139 = vmatpush1.bf16.msra.mxu0 0
    %140 = vmatprep.subr.bf16.mxu0 0
    %141 = vmatpush1.bf16.msra.mxu0 0
    %142 = vmatprep.subr.bf16.mxu0 0
    %143 = vmatpush1.bf16.msra.mxu0 0
    %144 = vmatprep.subr.bf16.mxu0 0
    %145 = vmatpush1.bf16.msra.mxu0 0
    %146 = vmatprep.subr.bf16.mxu0 0
    %147 = vmatpush1.bf16.msra.mxu0 0
    %148 = vmatprep.subr.bf16.mxu0 0
    %149 = vmatpush1.bf16.msra.mxu0 0
    %150 = vmatprep.mubr.bf16.mxu0 0
    %151 = vmatmul.mubr.bf16.gmra.mrb[0].mxu0 %v68
    %v152 = vpop.f32.mrb[0].mxu0
    %v153 = vadd.f32 %v60, %v152
    %v154 = vpop.f32.mrb[0].mxu0
    %v155 = vpop.f32.mrb[0].mxu0
    %v156 = vpop.f32.mrb[0].mxu0
    %157 = vdwg.mxu0
    %158 = vst [vmem:[#allocation2] sm:$0x3] %v153
    // Predicated region
    $region14: #{_lambda_.17} parent=1 // pred_check
      _
    $region15: #{_lambda_.17} parent=1 // pred_check_branch
      %160 = sbr.rel (0) target = $region17
    $region16: #{_lambda_.17} parent=1 // pred_region
      %s162 = ssub.s32 32, 32
      %163 = vsyncadd [#allocation3], %s162
      %s165 = sshll.u32 [#allocation2], 4
      %s166 = int_to_ptr.vmem [resolvable:$true] %s165
      %168 = dma.vmem_to_hbm [thread:$0]  %s166, 32, %s3, [#allocation3]
    $region17: #{_lambda_.17} parent=1 // pred_fallthru
      _
    // Predicated region
    $region18: #{_lambda_.17} parent=1 // pred_check
      _
    $region19: #{_lambda_.17} parent=1 // pred_check_branch
      %170 = sbr.rel (0) target = $region21
    $region20: #{_lambda_.17} parent=1 // pred_region
      %171 = dma.done [#allocation3], 32
    $region21: #{_lambda_.17} parent=1 // pred_fallthru
      _
    %172 = vsyncpa [#allocation3], 1

</llo_original>
